<compile_context>
chip_gen: v6e
topology: v6e:2x2x1
jax: 0.10.0
libtpu: 0.0.40
codegen_flags: <defaults>
</compile_context>

<pallas_src>
import numpy as np
import jax
import jax.numpy as jnp
from jax.experimental import pallas as pl
from jax.experimental.pallas import tpu as pltpu

F32 = jnp.float32
BF16 = jnp.bfloat16


# --------------------------------------------------------------------------
# Compiler-parameter helpers
# --------------------------------------------------------------------------
def _vmem_limit_bytes():
    try:
        cap = int(pltpu.get_tpu_info().vmem_capacity_bytes)
    except Exception:
        cap = 64 * 1024 * 1024            # conservative fallback (fits v7x)
    return int(min(cap * 0.55, 96 * 1024 * 1024))


_VMEM_LIMIT = _vmem_limit_bytes()


def _cp(sem=None):
    return pltpu.CompilerParams(dimension_semantics=sem,
                                vmem_limit_bytes=_VMEM_LIMIT)


def _divisor_block(total, want):
    """Largest block size <= want that divides total."""
    r = max(1, min(total, want))
    while total % r:
        r -= 1
    return r


# --------------------------------------------------------------------------
# Conv2d 3x3 (stride 1, 'same') + bias (+ optional ReLU) + fused BN statistics
# --------------------------------------------------------------------------
def _conv_kernel(kH, kW, R, W, Cin, Cout, relu, with_stats):
    def kernel(x_ref, w_ref, b_ref, y_ref, *maybe_stats):
        hb = pl.program_id(1)
        row0 = hb * R
        bias = b_ref[...]                                   # (1, Cout) f32

        if W % 8 == 0:
            # Row-blocked path: M = R*W per tap matmul.
            acc = jnp.zeros((R * W, Cout), F32)
            for dy in range(kH):
                for dx in range(kW):
                    patch = x_ref[0, pl.ds(row0 + dy, R), pl.ds(dx, W), :]
                    patch = patch.reshape(R * W, Cin).astype(BF16)
                    tap = w_ref[pl.ds((dy * kW + dx) * Cin, Cin), :]
                    acc = acc + jnp.dot(patch, tap, preferred_element_type=F32)
            y = acc + bias
            if relu:
                y = jnp.maximum(y, 0.0)
            y_ref[0] = y.reshape(R, W, Cout)
            if with_stats:
                s = jnp.sum(y, axis=0, keepdims=True)
                ss = jnp.sum(y * y, axis=0, keepdims=True)
        else:
            # Small-width fallback (deep layers with W in {2,4}): per-row matmuls.
            s = jnp.zeros((1, Cout), F32)
            ss = jnp.zeros((1, Cout), F32)
            for r in range(R):
                acc = jnp.zeros((W, Cout), F32)
                for dy in range(kH):
                    for dx in range(kW):
                        row = x_ref[0, row0 + r + dy, pl.ds(dx, W), :].astype(BF16)
                        tap = w_ref[pl.ds((dy * kW + dx) * Cin, Cin), :]
                        acc = acc + jnp.dot(row, tap, preferred_element_type=F32)
                y = acc + bias
                if relu:
                    y = jnp.maximum(y, 0.0)
                y_ref[0, r] = y
                if with_stats:
                    s = s + jnp.sum(y, axis=0, keepdims=True)
                    ss = ss + jnp.sum(y * y, axis=0, keepdims=True)

        if with_stats:
            st_ref = maybe_stats[0]

            @pl.when(hb == 0)
            def _():
                st_ref[0] = jnp.zeros_like(st_ref[0])

            st_ref[0] = st_ref[0] + jnp.concatenate([s, ss], axis=0)

    return kernel


def conv2d(x, w, b, *, relu=False, with_stats=False):
    """x: (N,H,W,Cin) NHWC.  w: (Cout,Cin,kH,kW) PyTorch layout.  b: (Cout,).

    Returns y (N,H,W,Cout); if with_stats also returns per-image (N, 2, Cout)
    [sum, sum-of-squares] over (H, W), for a following BatchNorm.
    """
    N, H, W, Cin = x.shape
    Cout, cin_w, kH, kW = w.shape
    assert cin_w == Cin
    ph, pw = (kH - 1) // 2, (kW - 1) // 2
    xp = jnp.pad(x, ((0, 0), (ph, ph), (pw, pw), (0, 0)))
    Hp, Wp = H + 2 * ph, W + 2 * pw
    w_mat = jnp.transpose(w, (2, 3, 1, 0)).reshape(kH * kW * Cin, Cout).astype(BF16)
    b_mat = b.reshape(1, Cout).astype(F32)

    R = _divisor_block(H, max(1, 256 // W))        # rows per grid step

    out_shapes = [jax.ShapeDtypeStruct((N, H, W, Cout), F32)]
    out_specs = [pl.BlockSpec((1, R, W, Cout), lambda n, hb: (n, hb, 0, 0))]
    if with_stats:
        out_shapes.append(jax.ShapeDtypeStruct((N, 2, Cout), F32))
        out_specs.append(pl.BlockSpec((1, 2, Cout), lambda n, hb: (n, 0, 0)))

    res = pl.pallas_call(
        _conv_kernel(kH, kW, R, W, Cin, Cout, relu, with_stats),
        out_shape=tuple(out_shapes) if with_stats else out_shapes[0],
        grid=(N, H // R),
        in_specs=[
            pl.BlockSpec((1, Hp, Wp, Cin), lambda n, hb: (n, 0, 0, 0)),
            pl.BlockSpec((kH * kW * Cin, Cout), lambda n, hb: (0, 0)),
            pl.BlockSpec((1, Cout), lambda n, hb: (0, 0)),
        ],
        out_specs=tuple(out_specs) if with_stats else out_specs[0],
        compiler_params=_cp(("parallel", "arbitrary") if with_stats
                            else ("parallel", "parallel")),
    )(xp, w_mat, b_mat)
    return res


# --------------------------------------------------------------------------
# BatchNorm2d (training-mode batch stats) + ReLU, applied from fused conv stats
# --------------------------------------------------------------------------
def _bn_apply_kernel(x_ref, sc_ref, sh_ref, o_ref):
    o_ref[0] = jnp.maximum(x_ref[0] * sc_ref[...] + sh_ref[...], 0.0)


def batchnorm_relu_from_stats(x, stats, gamma, beta, eps=1e-5):
    N, H, W, C = x.shape
    cnt = float(N * H * W)
    s = jnp.sum(stats[:, 0, :], axis=0)
    ss = jnp.sum(stats[:, 1, :], axis=0)
    mean = s / cnt
    var = jnp.maximum(ss / cnt - mean * mean, 0.0)        # biased variance
    scale = gamma.astype(F32) * jax.lax.rsqrt(var + eps)
    shift = beta.astype(F32) - mean * scale

    Rb = _divisor_block(H, max(1, (2 * 1024 * 1024) // max(1, W * C * 4)))
    return pl.pallas_call(
        _bn_apply_kernel,
        out_shape=jax.ShapeDtypeStruct((N, H, W, C), F32),
        grid=(N, H // Rb),
        in_specs=[
            pl.BlockSpec((1, Rb, W, C), lambda n, hb: (n, hb, 0, 0)),
            pl.BlockSpec((1, C), lambda n, hb: (0, 0)),
            pl.BlockSpec((1, C), lambda n, hb: (0, 0)),
        ],
        out_specs=pl.BlockSpec((1, Rb, W, C), lambda n, hb: (n, hb, 0, 0)),
        compiler_params=_cp(("parallel", "parallel")),
    )(x, scale.reshape(1, C), shift.reshape(1, C))


# --------------------------------------------------------------------------
# MaxPool2d(kernel_size=2, stride=2)
# --------------------------------------------------------------------------
def _maxpool_kernel(Rb, Wo):
    def kernel(x_ref, o_ref):
        x = x_ref[0]                                          # (2Rb, W, C)
        W, C = x.shape[1], x.shape[2]
        m = jnp.max(x.reshape(Rb, 2, W, C), axis=1)           # row pairs
        o_ref[0] = jnp.max(m.reshape(Rb, Wo, 2, C), axis=2)   # column pairs
    return kernel


def maxpool2x2(x):
    N, H, W, C = x.shape
    Ho, Wo = H // 2, W // 2
    Rb = _divisor_block(Ho, max(1, (1024 * 1024) // max(1, 2 * W * C * 4)))
    return pl.pallas_call(
        _maxpool_kernel(Rb, Wo),
        out_shape=jax.ShapeDtypeStruct((N, Ho, Wo, C), F32),
        grid=(N, Ho // Rb),
        in_specs=[pl.BlockSpec((1, 2 * Rb, W, C), lambda n, hb: (n, hb, 0, 0))],
        out_specs=pl.BlockSpec((1, Rb, Wo, C), lambda n, hb: (n, hb, 0, 0)),
        compiler_params=_cp(("parallel", "parallel")),
    )(x)


# --------------------------------------------------------------------------
# Bilinear 2x upsample (align_corners=True)
# --------------------------------------------------------------------------
def _upsample_kernel(Rb):
    def kernel(x0_ref, x1_ref, f_ref, aw_ref, o_ref):
        f = f_ref[...]                                         # (Rb, 1)
        x0 = x0_ref[0]
        x1 = x1_ref[0]
        rows = x0 + (x1 - x0) * f[:, :, None]                  # (Rb, W, C) height blend
        aw = aw_ref[...]                                       # (W2, W)
        for r in range(Rb):
            o_ref[0, r] = jnp.dot(aw, rows[r], preferred_element_type=F32)
    return kernel


def _coords(sz, sz2):
    if sz == 1:
        src = np.zeros((sz2,), np.float64)
    else:
        src = np.arange(sz2, dtype=np.float64) * ((sz - 1) / (sz2 - 1))
    i0 = np.floor(src).astype(np.int32)
    i1 = np.minimum(i0 + 1, sz - 1)
    f = (src - i0).astype(np.float32)
    return i0, i1, f


def upsample2x_bilinear(x):
    N, H, W, C = x.shape
    H2, W2 = 2 * H, 2 * W
    hi0, hi1, hf = _coords(H, H2)
    wi0, wi1, wf = _coords(W, W2)
    eye = np.eye(W, dtype=np.float32)
    aw = (1.0 - wf)[:, None] * eye[wi0] + wf[:, None] * eye[wi1]   # (W2, W)

    # Static row gather in plain JAX; the kernel only blends + interpolates.
    x0 = jnp.take(x, jnp.asarray(hi0), axis=1)                     # (N, H2, W, C)
    x1 = jnp.take(x, jnp.asarray(hi1), axis=1)
    hf2 = jnp.asarray(hf).reshape(H2, 1)
    aw = jnp.asarray(aw)

    Rb = _divisor_block(H2, 8)
    return pl.pallas_call(
        _upsample_kernel(Rb),
        out_shape=jax.ShapeDtypeStruct((N, H2, W2, C), F32),
        grid=(N, H2 // Rb),
        in_specs=[
            pl.BlockSpec((1, Rb, W, C), lambda n, hb: (n, hb, 0, 0)),
            pl.BlockSpec((1, Rb, W, C), lambda n, hb: (n, hb, 0, 0)),
            pl.BlockSpec((Rb, 1), lambda n, hb: (hb, 0)),
            pl.BlockSpec((W2, W), lambda n, hb: (0, 0)),
        ],
        out_specs=pl.BlockSpec((1, Rb, W2, C), lambda n, hb: (n, hb, 0, 0)),
        compiler_params=_cp(("parallel", "parallel")),
    )(x0, x1, hf2, aw)


# --------------------------------------------------------------------------
# 1x1 conv with the whole (H*W) plane batched into one matmul per image (outc)
# --------------------------------------------------------------------------
def _matmul_bias_kernel(relu):
    def kernel(x_ref, w_ref, b_ref, o_ref):
        y = jnp.dot(x_ref[0], w_ref[...], preferred_element_type=F32) + b_ref[...]
        if relu:
            y = jnp.maximum(y, 0.0)
        o_ref[0] = y
    return kernel


def conv1x1(x, w, b, *, relu=False):
    N, H, W, Cin = x.shape
    Cout = w.shape[0]
    P = H * W
    xf = x.reshape(N, P, Cin)
    w_mat = w.reshape(Cout, Cin).T.astype(F32)
    b_mat = b.reshape(1, Cout).astype(F32)
    out = pl.pallas_call(
        _matmul_bias_kernel(relu),
        out_shape=jax.ShapeDtypeStruct((N, P, Cout), F32),
        grid=(N,),
        in_specs=[
            pl.BlockSpec((1, P, Cin), lambda n: (n, 0, 0)),
            pl.BlockSpec((Cin, Cout), lambda n: (0, 0)),
            pl.BlockSpec((1, Cout), lambda n: (0, 0)),
        ],
        out_specs=pl.BlockSpec((1, P, Cout), lambda n: (n, 0, 0)),
        compiler_params=_cp(("parallel",)),
    )(xf, w_mat, b_mat)
    return out.reshape(N, H, W, Cout)


# --------------------------------------------------------------------------
# Global-hints MLP: the whole chain of (1x1 conv + ReLU) in ONE pallas_call
# --------------------------------------------------------------------------
def _hints_kernel(n_layers):
    def kernel(*refs):
        h_ref = refs[0]
        o_ref = refs[-1]
        y = h_ref[...]                                         # (N, hist_len)
        for i in range(n_layers):
            w = refs[1 + 2 * i][...]
            b = refs[2 + 2 * i][...]
            y = jnp.maximum(jnp.dot(y, w, preferred_element_type=F32) + b, 0.0)
        o_ref[...] = y
    return kernel


def global_hints_forward(hints_params, hist_nhwc):
    N = hist_nhwc.shape[0]
    h2 = hist_nhwc.reshape(N, hist_nhwc.shape[-1]).astype(F32)
    args = [h2]
    for p in hints_params:
        cout, cin = p['w'].shape[0], p['w'].shape[1]
        args.append(p['w'].reshape(cout, cin).T.astype(F32))
        args.append(p['b'].reshape(1, cout).astype(F32))
    L = hints_params[-1]['w'].shape[0]
    return pl.pallas_call(
        _hints_kernel(len(hints_params)),
        out_shape=jax.ShapeDtypeStruct((N, L), F32),
        compiler_params=_cp(),
    )(*args)


# --------------------------------------------------------------------------
# Parameter construction (deterministic, synthetic)
# --------------------------------------------------------------------------
def conv_params(key, cin, cout, k):
    kw, kb = jax.random.split(key)
    fan_in = cin * k * k
    w = jax.random.normal(kw, (cout, cin, k, k), F32) * jnp.sqrt(2.0 / fan_in)
    b = jax.random.normal(kb, (cout,), F32) * 0.01
    return {'w': w, 'b': b}


def double_conv_params(key, cin, cout):
    k1, k2 = jax.random.split(key)
    return {
        'c1': conv_params(k1, cin, cout, 3),
        'g1': jnp.ones((cout,), F32), 'be1': jnp.zeros((cout,), F32),
        'c2': conv_params(k2, cout, cout, 3),
        'g2': jnp.ones((cout,), F32), 'be2': jnp.zeros((cout,), F32),
    }


def init_params(key, input_nc, output_nc, hist_len, num_hints_layers, len_hints_layers):
    keys = jax.random.split(key, 12)
    L = len_hints_layers
    p = {}
    p['inc'] = double_conv_params(keys[0], input_nc, 64)
    p['down1'] = double_conv_params(keys[1], 64, 128)
    p['down2'] = double_conv_params(keys[2], 128, 256)
    p['down3'] = double_conv_params(keys[3], 256, 512)
    p['down4'] = double_conv_params(keys[4], 512, 512)
    hk = jax.random.split(keys[5], num_hints_layers)
    p['hints'] = [conv_params(hk[0], hist_len, L, 1)]
    for i in range(1, num_hints_layers):
        p['hints'].append(conv_params(hk[i], L, L, 1))
    p['bottleneck'] = double_conv_params(keys[6], 512 + L, 512 + L)
    p['up1'] = double_conv_params(keys[7], 1024 + L, 256)
    p['up2'] = double_conv_params(keys[8], 512, 128)
    p['up3'] = double_conv_params(keys[9], 256, 64)
    p['up4'] = double_conv_params(keys[10], 128, 64)
    p['outc'] = conv_params(keys[11], 64, output_nc, 1)
    return p


# --------------------------------------------------------------------------
# Module forward
# --------------------------------------------------------------------------
def double_conv_fwd(p, x):
    y, st = conv2d(x, p['c1']['w'], p['c1']['b'], with_stats=True)
    x = batchnorm_relu_from_stats(y, st, p['g1'], p['be1'])
    y, st = conv2d(x, p['c2']['w'], p['c2']['b'], with_stats=True)
    x = batchnorm_relu_from_stats(y, st, p['g2'], p['be2'])
    return x


def down_fwd(p, x):
    return double_conv_fwd(p, maxpool2x2(x))


def up_fwd(p, x1, x2):
    x1u = upsample2x_bilinear(x1)
    # power-of-two spatial sizes -> the F.pad in unet_parts.up is a no-op here
    x = jnp.concatenate([x2, x1u], axis=-1)         # torch.cat([x2, x1], dim=1)
    return double_conv_fwd(p, x)


def unet_with_hints_forward(params, inputs):
    rgb = jnp.transpose(inputs['rgb'], (0, 2, 3, 1)).astype(F32)    # NCHW -> NHWC
    hist = jnp.transpose(inputs['hist'], (0, 2, 3, 1)).astype(F32)
    _ = inputs['mask']   # mask is read but unused in the reference forward

    x1 = double_conv_fwd(params['inc'], rgb)
    x2 = down_fwd(params['down1'], x1)
    x3 = down_fwd(params['down2'], x2)
    x4 = down_fwd(params['down3'], x3)
    x5 = down_fwd(params['down4'], x4)

    y = global_hints_forward(params['hints'], hist)                 # (N, L)

    # expand_and_cat(y, x5): broadcast hints over x5's spatial dims, channel-cat
    # TODO(synk): channel order [hints, x5] assumed (depthnet source not shown)
    yb = jnp.broadcast_to(y[:, None, None, :],
                          (x5.shape[0], x5.shape[1], x5.shape[2], y.shape[-1]))
    z = jnp.concatenate([yb, x5], axis=-1)
    z = double_conv_fwd(params['bottleneck'], z)

    x = up_fwd(params['up1'], z, x4)
    x = up_fwd(params['up2'], x, x3)
    x = up_fwd(params['up3'], x, x2)
    x = up_fwd(params['up4'], x, x1)
    x = conv1x1(x, params['outc']['w'], params['outc']['b'], relu=False)
    return jnp.transpose(x, (0, 3, 1, 2))                            # NHWC -> NCHW


if __name__ == "__main__":
    key = jax.random.PRNGKey(0)
    kp, kr, kh, km = jax.random.split(key, 4)

    input_nc, output_nc = 3, 1
    hist_len, num_hints_layers, len_hints_layers = 8, 2, 16
    N, H, W = 2, 32, 32

    params = init_params(kp, input_nc, output_nc, hist_len, num_hints_layers,
                         len_hints_layers)
    inputs = {
        'rgb': jax.random.normal(kr, (N, input_nc, H, W), F32),
        'hist': jax.nn.softmax(jax.random.normal(kh, (N, hist_len, 1, 1), F32), axis=1),
        'mask': (jax.random.uniform(km, (N, 1, H, W)) > 0.5).astype(F32),
    }

    out = unet_with_hints_forward(params, inputs)
    out = jax.block_until_ready(out)
    assert out.shape == (N, output_nc, H, W), out.shape
    assert bool(jnp.all(jnp.isfinite(out)))
    print("KERNEL_OK")
</pallas_src>

<mosaic_0001>
module attributes {stable_mosaic.version = 11 : i64} {
  func.func @kernel(%arg0: i32, %arg1: i32, %arg2: memref<1x34x34x3xf32, #tpu.memory_space<vmem>>, %arg3: memref<27x64xbf16, #tpu.memory_space<vmem>>, %arg4: memref<1x64xf32, #tpu.memory_space<vmem>>, %arg5: memref<1x8x32x64xf32, #tpu.memory_space<vmem>>, %arg6: memref<1x2x64xf32, #tpu.memory_space<vmem>>) attributes {dimension_semantics = [#tpu.dimension_semantics<parallel>, #tpu.dimension_semantics<arbitrary>], iteration_bounds = array<i64: 2, 4>, scalar_prefetch = 0 : i64, scratch_operands = 0 : i64, tpu.core_type = #tpu.core_type<tc>, window_params = [{transform_indices = @transform_0, window_bounds = array<i64: 1, 34, 34, 3>}, {pipeline_mode = #tpu.pipeline_mode<synchronous>, transform_indices = @transform_1, window_bounds = array<i64: 27, 64>}, {pipeline_mode = #tpu.pipeline_mode<synchronous>, transform_indices = @transform_2, window_bounds = array<i64: 1, 64>}, {transform_indices = @transform_3, window_bounds = array<i64: 1, 8, 32, 64>}, {transform_indices = @transform_4, window_bounds = array<i64: 1, 2, 64>}]} {
    %c8_i32 = arith.constant 8 : i32
    %0 = arith.muli %arg1, %c8_i32 : i32
    %c0 = arith.constant 0 : index
    %c0_0 = arith.constant 0 : index
    %1 = vector.load %arg4[%c0, %c0_0] : memref<1x64xf32, #tpu.memory_space<vmem>>, vector<1x64xf32>
    %cst = arith.constant 0.000000e+00 : f32
    %2 = vector.broadcast %cst : f32 to vector<256x64xf32>
    %c0_i32 = arith.constant 0 : i32
    %3 = arith.addi %0, %c0_i32 : i32
    %c0_1 = arith.constant 0 : index
    %4 = arith.index_cast %3 : i32 to index
    %c0_2 = arith.constant 0 : index
    %c0_3 = arith.constant 0 : index
    %5 = vector.load %arg2[%c0_1, %4, %c0_2, %c0_3] : memref<1x34x34x3xf32, #tpu.memory_space<vmem>>, vector<1x8x32x3xf32>
    %6 = vector.shape_cast %5 : vector<1x8x32x3xf32> to vector<8x32x3xf32>
    %7 = vector.shape_cast %6 : vector<8x32x3xf32> to vector<256x3xf32>
    %8 = arith.truncf %7 : vector<256x3xf32> to vector<256x3xbf16>
    %c0_4 = arith.constant 0 : index
    %c0_5 = arith.constant 0 : index
    %9 = vector.load %arg3[%c0_4, %c0_5] : memref<27x64xbf16, #tpu.memory_space<vmem>>, vector<3x64xbf16>
    %cst_6 = arith.constant dense<0.000000e+00> : vector<256x64xf32>
    %10 = tpu.matmul %8, %9, %cst_6 {dimension_numbers = #tpu.dot_dimension_numbers<[1], [0], [0], [1], [0, 0, 1, 1], [], []>} : vector<256x3xbf16>, vector<3x64xbf16>, vector<256x64xf32> -> vector<256x64xf32>
    %11 = arith.addf %2, %10 : vector<256x64xf32>
    %c0_i32_7 = arith.constant 0 : i32
    %12 = arith.addi %0, %c0_i32_7 : i32
    %c0_8 = arith.constant 0 : index
    %13 = arith.index_cast %12 : i32 to index
    %c1 = arith.constant 1 : index
    %c0_9 = arith.constant 0 : index
    %14 = vector.load %arg2[%c0_8, %13, %c1, %c0_9] : memref<1x34x34x3xf32, #tpu.memory_space<vmem>>, vector<1x8x32x3xf32>
    %15 = vector.shape_cast %14 : vector<1x8x32x3xf32> to vector<8x32x3xf32>
    %16 = vector.shape_cast %15 : vector<8x32x3xf32> to vector<256x3xf32>
    %17 = arith.truncf %16 : vector<256x3xf32> to vector<256x3xbf16>
    %c3 = arith.constant 3 : index
    %c0_10 = arith.constant 0 : index
    %18 = vector.load %arg3[%c3, %c0_10] : memref<27x64xbf16, #tpu.memory_space<vmem>>, vector<3x64xbf16>
    %cst_11 = arith.constant dense<0.000000e+00> : vector<256x64xf32>
    %19 = tpu.matmul %17, %18, %cst_11 {dimension_numbers = #tpu.dot_dimension_numbers<[1], [0], [0], [1], [0, 0, 1, 1], [], []>} : vector<256x3xbf16>, vector<3x64xbf16>, vector<256x64xf32> -> vector<256x64xf32>
    %20 = arith.addf %11, %19 : vector<256x64xf32>
    %c0_i32_12 = arith.constant 0 : i32
    %21 = arith.addi %0, %c0_i32_12 : i32
    %c0_13 = arith.constant 0 : index
    %22 = arith.index_cast %21 : i32 to index
    %c2 = arith.constant 2 : index
    %c0_14 = arith.constant 0 : index
    %23 = vector.load %arg2[%c0_13, %22, %c2, %c0_14] : memref<1x34x34x3xf32, #tpu.memory_space<vmem>>, vector<1x8x32x3xf32>
    %24 = vector.shape_cast %23 : vector<1x8x32x3xf32> to vector<8x32x3xf32>
    %25 = vector.shape_cast %24 : vector<8x32x3xf32> to vector<256x3xf32>
    %26 = arith.truncf %25 : vector<256x3xf32> to vector<256x3xbf16>
    %c6 = arith.constant 6 : index
    %c0_15 = arith.constant 0 : index
    %27 = vector.load %arg3[%c6, %c0_15] : memref<27x64xbf16, #tpu.memory_space<vmem>>, vector<3x64xbf16>
    %cst_16 = arith.constant dense<0.000000e+00> : vector<256x64xf32>
    %28 = tpu.matmul %26, %27, %cst_16 {dimension_numbers = #tpu.dot_dimension_numbers<[1], [0], [0], [1], [0, 0, 1, 1], [], []>} : vector<256x3xbf16>, vector<3x64xbf16>, vector<256x64xf32> -> vector<256x64xf32>
    %29 = arith.addf %20, %28 : vector<256x64xf32>
    %c1_i32 = arith.constant 1 : i32
    %30 = arith.addi %0, %c1_i32 : i32
    %c0_17 = arith.constant 0 : index
    %31 = arith.index_cast %30 : i32 to index
    %c0_18 = arith.constant 0 : index
    %c0_19 = arith.constant 0 : index
    %32 = vector.load %arg2[%c0_17, %31, %c0_18, %c0_19] : memref<1x34x34x3xf32, #tpu.memory_space<vmem>>, vector<1x8x32x3xf32>
    %33 = vector.shape_cast %32 : vector<1x8x32x3xf32> to vector<8x32x3xf32>
    %34 = vector.shape_cast %33 : vector<8x32x3xf32> to vector<256x3xf32>
    %35 = arith.truncf %34 : vector<256x3xf32> to vector<256x3xbf16>
    %c9 = arith.constant 9 : index
    %c0_20 = arith.constant 0 : index
    %36 = vector.load %arg3[%c9, %c0_20] : memref<27x64xbf16, #tpu.memory_space<vmem>>, vector<3x64xbf16>
    %cst_21 = arith.constant dense<0.000000e+00> : vector<256x64xf32>
    %37 = tpu.matmul %35, %36, %cst_21 {dimension_numbers = #tpu.dot_dimension_numbers<[1], [0], [0], [1], [0, 0, 1, 1], [], []>} : vector<256x3xbf16>, vector<3x64xbf16>, vector<256x64xf32> -> vector<256x64xf32>
    %38 = arith.addf %29, %37 : vector<256x64xf32>
    %c1_i32_22 = arith.constant 1 : i32
    %39 = arith.addi %0, %c1_i32_22 : i32
    %c0_23 = arith.constant 0 : index
    %40 = arith.index_cast %39 : i32 to index
    %c1_24 = arith.constant 1 : index
    %c0_25 = arith.constant 0 : index
    %41 = vector.load %arg2[%c0_23, %40, %c1_24, %c0_25] : memref<1x34x34x3xf32, #tpu.memory_space<vmem>>, vector<1x8x32x3xf32>
    %42 = vector.shape_cast %41 : vector<1x8x32x3xf32> to vector<8x32x3xf32>
    %43 = vector.shape_cast %42 : vector<8x32x3xf32> to vector<256x3xf32>
    %44 = arith.truncf %43 : vector<256x3xf32> to vector<256x3xbf16>
    %c12 = arith.constant 12 : index
    %c0_26 = arith.constant 0 : index
    %45 = vector.load %arg3[%c12, %c0_26] : memref<27x64xbf16, #tpu.memory_space<vmem>>, vector<3x64xbf16>
    %cst_27 = arith.constant dense<0.000000e+00> : vector<256x64xf32>
    %46 = tpu.matmul %44, %45, %cst_27 {dimension_numbers = #tpu.dot_dimension_numbers<[1], [0], [0], [1], [0, 0, 1, 1], [], []>} : vector<256x3xbf16>, vector<3x64xbf16>, vector<256x64xf32> -> vector<256x64xf32>
    %47 = arith.addf %38, %46 : vector<256x64xf32>
    %c1_i32_28 = arith.constant 1 : i32
    %48 = arith.addi %0, %c1_i32_28 : i32
    %c0_29 = arith.constant 0 : index
    %49 = arith.index_cast %48 : i32 to index
    %c2_30 = arith.constant 2 : index
    %c0_31 = arith.constant 0 : index
    %50 = vector.load %arg2[%c0_29, %49, %c2_30, %c0_31] : memref<1x34x34x3xf32, #tpu.memory_space<vmem>>, vector<1x8x32x3xf32>
    %51 = vector.shape_cast %50 : vector<1x8x32x3xf32> to vector<8x32x3xf32>
    %52 = vector.shape_cast %51 : vector<8x32x3xf32> to vector<256x3xf32>
    %53 = arith.truncf %52 : vector<256x3xf32> to vector<256x3xbf16>
    %c15 = arith.constant 15 : index
    %c0_32 = arith.constant 0 : index
    %54 = vector.load %arg3[%c15, %c0_32] : memref<27x64xbf16, #tpu.memory_space<vmem>>, vector<3x64xbf16>
    %cst_33 = arith.constant dense<0.000000e+00> : vector<256x64xf32>
    %55 = tpu.matmul %53, %54, %cst_33 {dimension_numbers = #tpu.dot_dimension_numbers<[1], [0], [0], [1], [0, 0, 1, 1], [], []>} : vector<256x3xbf16>, vector<3x64xbf16>, vector<256x64xf32> -> vector<256x64xf32>
    %56 = arith.addf %47, %55 : vector<256x64xf32>
    %c2_i32 = arith.constant 2 : i32
    %57 = arith.addi %0, %c2_i32 : i32
    %c0_34 = arith.constant 0 : index
    %58 = arith.index_cast %57 : i32 to index
    %c0_35 = arith.constant 0 : index
    %c0_36 = arith.constant 0 : index
    %59 = vector.load %arg2[%c0_34, %58, %c0_35, %c0_36] : memref<1x34x34x3xf32, #tpu.memory_space<vmem>>, vector<1x8x32x3xf32>
    %60 = vector.shape_cast %59 : vector<1x8x32x3xf32> to vector<8x32x3xf32>
    %61 = vector.shape_cast %60 : vector<8x32x3xf32> to vector<256x3xf32>
    %62 = arith.truncf %61 : vector<256x3xf32> to vector<256x3xbf16>
    %c18 = arith.constant 18 : index
    %c0_37 = arith.constant 0 : index
    %63 = vector.load %arg3[%c18, %c0_37] : memref<27x64xbf16, #tpu.memory_space<vmem>>, vector<3x64xbf16>
    %cst_38 = arith.constant dense<0.000000e+00> : vector<256x64xf32>
    %64 = tpu.matmul %62, %63, %cst_38 {dimension_numbers = #tpu.dot_dimension_numbers<[1], [0], [0], [1], [0, 0, 1, 1], [], []>} : vector<256x3xbf16>, vector<3x64xbf16>, vector<256x64xf32> -> vector<256x64xf32>
    %65 = arith.addf %56, %64 : vector<256x64xf32>
    %c2_i32_39 = arith.constant 2 : i32
    %66 = arith.addi %0, %c2_i32_39 : i32
    %c0_40 = arith.constant 0 : index
    %67 = arith.index_cast %66 : i32 to index
    %c1_41 = arith.constant 1 : index
    %c0_42 = arith.constant 0 : index
    %68 = vector.load %arg2[%c0_40, %67, %c1_41, %c0_42] : memref<1x34x34x3xf32, #tpu.memory_space<vmem>>, vector<1x8x32x3xf32>
    %69 = vector.shape_cast %68 : vector<1x8x32x3xf32> to vector<8x32x3xf32>
    %70 = vector.shape_cast %69 : vector<8x32x3xf32> to vector<256x3xf32>
    %71 = arith.truncf %70 : vector<256x3xf32> to vector<256x3xbf16>
    %c21 = arith.constant 21 : index
    %c0_43 = arith.constant 0 : index
    %72 = vector.load %arg3[%c21, %c0_43] : memref<27x64xbf16, #tpu.memory_space<vmem>>, vector<3x64xbf16>
    %cst_44 = arith.constant dense<0.000000e+00> : vector<256x64xf32>
    %73 = tpu.matmul %71, %72, %cst_44 {dimension_numbers = #tpu.dot_dimension_numbers<[1], [0], [0], [1], [0, 0, 1, 1], [], []>} : vector<256x3xbf16>, vector<3x64xbf16>, vector<256x64xf32> -> vector<256x64xf32>
    %74 = arith.addf %65, %73 : vector<256x64xf32>
    %c2_i32_45 = arith.constant 2 : i32
    %75 = arith.addi %0, %c2_i32_45 : i32
    %c0_46 = arith.constant 0 : index
    %76 = arith.index_cast %75 : i32 to index
    %c2_47 = arith.constant 2 : index
    %c0_48 = arith.constant 0 : index
    %77 = vector.load %arg2[%c0_46, %76, %c2_47, %c0_48] : memref<1x34x34x3xf32, #tpu.memory_space<vmem>>, vector<1x8x32x3xf32>
    %78 = vector.shape_cast %77 : vector<1x8x32x3xf32> to vector<8x32x3xf32>
    %79 = vector.shape_cast %78 : vector<8x32x3xf32> to vector<256x3xf32>
    %80 = arith.truncf %79 : vector<256x3xf32> to vector<256x3xbf16>
    %c24 = arith.constant 24 : index
    %c0_49 = arith.constant 0 : index
    %81 = vector.load %arg3[%c24, %c0_49] : memref<27x64xbf16, #tpu.memory_space<vmem>>, vector<3x64xbf16>
    %cst_50 = arith.constant dense<0.000000e+00> : vector<256x64xf32>
    %82 = tpu.matmul %80, %81, %cst_50 {dimension_numbers = #tpu.dot_dimension_numbers<[1], [0], [0], [1], [0, 0, 1, 1], [], []>} : vector<256x3xbf16>, vector<3x64xbf16>, vector<256x64xf32> -> vector<256x64xf32>
    %83 = arith.addf %74, %82 : vector<256x64xf32>
    %84 = vector.broadcast %1 : vector<1x64xf32> to vector<256x64xf32>
    %85 = arith.addf %83, %84 : vector<256x64xf32>
    %86 = vector.shape_cast %85 : vector<256x64xf32> to vector<8x32x64xf32>
    %c0_51 = arith.constant 0 : index
    %c0_52 = arith.constant 0 : index
    %c0_53 = arith.constant 0 : index
    %c0_54 = arith.constant 0 : index
    %87 = vector.load %arg5[%c0_51, %c0_52, %c0_53, %c0_54] : memref<1x8x32x64xf32, #tpu.memory_space<vmem>>, vector<1x8x32x64xf32>
    %88 = vector.shape_cast %87 : vector<1x8x32x64xf32> to vector<8x32x64xf32>
    %89 = vector.shape_cast %86 : vector<8x32x64xf32> to vector<1x8x32x64xf32>
    tpu.vector_store %arg5[%c0_51, %c0_52, %c0_53, %c0_54], %89 {strides = array<i32>} : memref<1x8x32x64xf32, #tpu.memory_space<vmem>>, vector<1x8x32x64xf32>,
    %cst_55 = arith.constant dense<0.000000e+00> : vector<64xf32>
    %90 = vector.multi_reduction <add>, %85, %cst_55 [0] : vector<256x64xf32> to vector<64xf32>
    %91 = vector.shape_cast %90 : vector<64xf32> to vector<1x64xf32>
    %92 = arith.mulf %85, %85 : vector<256x64xf32>
    %cst_56 = arith.constant dense<0.000000e+00> : vector<64xf32>
    %93 = vector.multi_reduction <add>, %92, %cst_56 [0] : vector<256x64xf32> to vector<64xf32>
    %94 = vector.shape_cast %93 : vector<64xf32> to vector<1x64xf32>
    %c0_i32_57 = arith.constant 0 : i32
    %95 = arith.cmpi eq, %arg1, %c0_i32_57 : i32
    %96 = arith.extui %95 : i1 to i32
    %c0_i32_58 = arith.constant 0 : i32
    %97 = arith.cmpi ne, %96, %c0_i32_58 : i32
    scf.if %97 {
      %cst_65 = arith.constant 0.000000e+00 : f32
      %105 = vector.broadcast %cst_65 : f32 to vector<2x64xf32>
      %c0_66 = arith.constant 0 : index
      %c0_67 = arith.constant 0 : index
      %c0_68 = arith.constant 0 : index
      %106 = vector.load %arg6[%c0_66, %c0_67, %c0_68] : memref<1x2x64xf32, #tpu.memory_space<vmem>>, vector<1x2x64xf32>
      %107 = vector.shape_cast %106 : vector<1x2x64xf32> to vector<2x64xf32>
      %108 = vector.shape_cast %105 : vector<2x64xf32> to vector<1x2x64xf32>
      tpu.vector_store %arg6[%c0_66, %c0_67, %c0_68], %108 {strides = array<i32>} : memref<1x2x64xf32, #tpu.memory_space<vmem>>, vector<1x2x64xf32>,
    } else {
    }
    %c0_59 = arith.constant 0 : index
    %c0_60 = arith.constant 0 : index
    %c0_61 = arith.constant 0 : index
    %98 = vector.load %arg6[%c0_59, %c0_60, %c0_61] : memref<1x2x64xf32, #tpu.memory_space<vmem>>, vector<1x2x64xf32>
    %99 = vector.shape_cast %98 : vector<1x2x64xf32> to vector<2x64xf32>
    %100 = tpu.concatenate %91, %94 in 0 : vector<1x64xf32>, vector<1x64xf32> -> vector<2x64xf32>
    %101 = arith.addf %99, %100 : vector<2x64xf32>
    %c0_62 = arith.constant 0 : index
    %c0_63 = arith.constant 0 : index
    %c0_64 = arith.constant 0 : index
    %102 = vector.load %arg6[%c0_62, %c0_63, %c0_64] : memref<1x2x64xf32, #tpu.memory_space<vmem>>, vector<1x2x64xf32>
    %103 = vector.shape_cast %102 : vector<1x2x64xf32> to vector<2x64xf32>
    %104 = vector.shape_cast %101 : vector<2x64xf32> to vector<1x2x64xf32>
    tpu.vector_store %arg6[%c0_62, %c0_63, %c0_64], %104 {strides = array<i32>} : memref<1x2x64xf32, #tpu.memory_space<vmem>>, vector<1x2x64xf32>,
    return
  }
  func.func @transform_0(%arg0: i32, %arg1: i32) -> (i32, i32, i32, i32) {
    %c0_i32 = arith.constant 0 : i32
    %c0_i32_0 = arith.constant 0 : i32
    %c0_i32_1 = arith.constant 0 : i32
    %c0_i32_2 = arith.constant 0 : i32
    return %arg0, %c0_i32, %c0_i32_0, %c0_i32_1 : i32, i32, i32, i32
  }
  func.func @transform_1(%arg0: i32, %arg1: i32) -> (i32, i32) {
    %c0_i32 = arith.constant 0 : i32
    %c0_i32_0 = arith.constant 0 : i32
    %c0_i32_1 = arith.constant 0 : i32
    return %c0_i32, %c0_i32_0 : i32, i32
  }
  func.func @transform_2(%arg0: i32, %arg1: i32) -> (i32, i32) {
    %c0_i32 = arith.constant 0 : i32
    %c0_i32_0 = arith.constant 0 : i32
    %c0_i32_1 = arith.constant 0 : i32
    return %c0_i32, %c0_i32_0 : i32, i32
  }
  func.func @transform_3(%arg0: i32, %arg1: i32) -> (i32, i32, i32, i32) {
    %c0_i32 = arith.constant 0 : i32
    %c0_i32_0 = arith.constant 0 : i32
    %c0_i32_1 = arith.constant 0 : i32
    return %arg0, %arg1, %c0_i32, %c0_i32_0 : i32, i32, i32, i32
  }
  func.func @transform_4(%arg0: i32, %arg1: i32) -> (i32, i32, i32) {
    %c0_i32 = arith.constant 0 : i32
    %c0_i32_0 = arith.constant 0 : i32
    %c0_i32_1 = arith.constant 0 : i32
    return %arg0, %c0_i32, %c0_i32_0 : i32, i32, i32
  }
}

</mosaic_0001>

<llo_original>
// kernel: tpu_custom_call.1
$region0: #{tpu_custom_call.1}
  #allocation0 [shape = 'u32[]', space=smem, size = 0x4, offset = 0x4, fixed_abs, tag = 'smem constant byte address 0x4 - core index']
  #allocation1 [shape = 'u32[144,128]{1,0:T(1,128)}', space=vmem, size = 0x12000, scoped, tag = 'internal scratch']
  %s0 = inlined_call_operand.vmem [shape: f32[2,34,34,3], index: 0, kind: input, shape index: {}]
  %s1 = inlined_call_operand.vmem [shape: bf16[27,64], index: 1, kind: input, shape index: {}]
  %s2 = inlined_call_operand.vmem [shape: f32[1,64], index: 2, kind: input, shape index: {}]
  %s3 = inlined_call_operand.hbm [shape: f32[2,32,32,64], index: 3, kind: output, shape index: {0}]
  %s4 = inlined_call_operand.hbm [shape: f32[2,2,64], index: 4, kind: output, shape index: {1}]
  %5 = xla_tuple %s3, %s4
  %s6 = sld [smem:[#allocation0]]
  $region57: #{tpu_custom_call.1} parent=0
    _
  %s8 = ssub.s32 1, %s6
  %s9 = scalar_select 0, %s8, %s6
  $region1: #{tpu_custom_call.1} parent=0
    #allocation2 [shape = 'u8[262144]{0}', space=vmem, size = 0x40000, scoped, tag = 'output window, operand 0']
    #allocation3 [shape = 's32[2]{0}', space=sflag, size = 0x8, scoped, tag = 'scoped memory for tpu_custom_call.1']
    #allocation4 [shape = 'u8[2048]{0}', space=vmem, size = 0x800, scoped, tag = 'output window, operand 1']
    #allocation5 [shape = 's32[2]{0}', space=sflag, size = 0x8, scoped, tag = 'scoped memory for tpu_custom_call.1']
    %10 = vsyncpa [#allocation3], 0
    %s11 = scalar_lea.sflag [#allocation3], 1
    %12 = vsyncpa %s11, 0
    %13 = vsyncpa [#allocation5], 0
    %s14 = scalar_lea.sflag [#allocation5], 1
    %15 = vsyncpa %s14, 0
    loop: start=0, step=1, limit=10
    $region2: #{tpu_custom_call.1} parent=1 // loop_pre_header
      _
    $region3: #{tpu_custom_call.1} parent=1 // loop_header
      %s17 = sphi 0, %s21
      %p18 = scmp.ge.s32.totalorder %s17, 10
      %s24 = sphi 0, %s36
      %s25 = sphi 0, %s32
      %s26 = sphi 0, %s24
      %s27 = sphi 0, %s25
      %s28 = sphi 0, %s26
      %s29 = sphi 0, %s27
      %s39 = sphi 0, %s41
      %s42 = sphi 0, %s39
      %s43 = sphi 0, %s42
      %s59 = sphi 0, %s43
      %s63 = sphi 0, %s63
      %s65 = sphi 0, %s63
      %s66 = sphi 0, %s65
      %s80 = sphi 0, %s66
      %s84 = sphi 0, %s84
      %s86 = sphi 0, %s84
      %s87 = sphi 0, %s86
      %s101 = sphi 0, %s87
      %s109 = sphi 0, %s111
      %s112 = sphi 0, %s109
      %s113 = sphi 0, %s112
      %s129 = sphi 0, %s113
      %s135 = sphi 0, %s137
      %s138 = sphi 0, %s135
      %s139 = sphi 0, %s138
      %s155 = sphi 0, %s139
    $region4: #{tpu_custom_call.1} parent=1 // loop_header_branch
      %20 = sbr.rel (%p18) target = $region8
    $region5: #{tpu_custom_call.1} parent=1 // loop_body
      %s22 = ssub.s32 %s17, 1
      %s23 = ssub.s32 %s17, 2
      %s30 = sadd.s32 1, %s25
      %p31 = scmp.ge.s32.totalorder %s30, 4
      %s32 = scalar_select %p31, 0, %s30
      %s33 = sadd.s32 1, %s24
      %s34 = scalar_select %p31, %s33, %s24
      %p35 = scmp.ge.s32.totalorder %s34, 2
      %s36 = scalar_select %p35, 0, %s34
      %s37 = ssub.s32 %s24, %s36
      %p38 = scmp.eq.s32.totalorder %s37, 0
      %s40 = sadd.s32 %s39, 1
      %s41 = scalar_select %p38, %s39, %s40
      %p44 = pneg %p38
      %p45 = scmp.eq.s32.totalorder %s17, 7
      %p46 = por %p44, %p45
      %p47 = scmp.ne.s32.totalorder %s39, %s42
      %p48 = scmp.eq.s32.totalorder %s17, 0
      %p49 = por %p47, %p48
      %p50 = scmp.ne.s32.totalorder %s39, %s42
      %p51 = scmp.eq.s32.totalorder %s22, 7
      %p52 = por %p50, %p51
      %p53 = scmp.ne.s32.totalorder %s42, %s43
      %p54 = scmp.eq.s32.totalorder %s22, 0
      %p55 = por %p53, %p54
      %p56 = scmp.ne.s32.totalorder %s42, %s43
      %p57 = scmp.eq.s32.totalorder %s23, 7
      %p58 = por %p56, %p57
      %p60 = scmp.ne.s32.totalorder %s43, %s59
      %p61 = scmp.eq.s32.totalorder %s23, 0
      %p62 = por %p60, %p61
      %s64 = sadd.s32 %s63, 1
      %p67 = scmp.eq.s32.totalorder %s17, 7
      %p68 = scmp.ne.s32.totalorder %s63, %s65
      %p69 = scmp.eq.s32.totalorder %s17, 0
      %p70 = por %p68, %p69
      %p71 = scmp.ne.s32.totalorder %s63, %s65
      %p72 = scmp.eq.s32.totalorder %s22, 7
      %p73 = por %p71, %p72
      %p74 = scmp.ne.s32.totalorder %s65, %s66
      %p75 = scmp.eq.s32.totalorder %s22, 0
      %p76 = por %p74, %p75
      %p77 = scmp.ne.s32.totalorder %s65, %s66
      %p78 = scmp.eq.s32.totalorder %s23, 7
      %p79 = por %p77, %p78
      %p81 = scmp.ne.s32.totalorder %s66, %s80
      %p82 = scmp.eq.s32.totalorder %s23, 0
      %p83 = por %p81, %p82
      %s85 = sadd.s32 %s84, 1
      %p88 = scmp.eq.s32.totalorder %s17, 7
      %p89 = scmp.ne.s32.totalorder %s84, %s86
      %p90 = scmp.eq.s32.totalorder %s17, 0
      %p91 = por %p89, %p90
      %p92 = scmp.ne.s32.totalorder %s84, %s86
      %p93 = scmp.eq.s32.totalorder %s22, 7
      %p94 = por %p92, %p93
      %p95 = scmp.ne.s32.totalorder %s86, %s87
      %p96 = scmp.eq.s32.totalorder %s22, 0
      %p97 = por %p95, %p96
      %p98 = scmp.ne.s32.totalorder %s86, %s87
      %p99 = scmp.eq.s32.totalorder %s23, 7
      %p100 = por %p98, %p99
      %p102 = scmp.ne.s32.totalorder %s87, %s101
      %p103 = scmp.eq.s32.totalorder %s23, 0
      %p104 = por %p102, %p103
      %s105 = ssub.s32 %s24, %s36
      %s106 = ssub.s32 %s25, %s32
      %s107 = sor.u32 %s105, %s106
      %p108 = scmp.eq.s32.totalorder %s107, 0
      %s110 = sadd.s32 %s109, 1
      %s111 = scalar_select %p108, %s109, %s110
      %p114 = pneg %p108
      %p115 = scmp.eq.s32.totalorder %s17, 7
      %p116 = por %p114, %p115
      %p117 = scmp.ne.s32.totalorder %s109, %s112
      %p118 = scmp.eq.s32.totalorder %s17, 0
      %p119 = por %p117, %p118
      %p120 = scmp.ne.s32.totalorder %s109, %s112
      %p121 = scmp.eq.s32.totalorder %s22, 7
      %p122 = por %p120, %p121
      %p123 = scmp.ne.s32.totalorder %s112, %s113
      %p124 = scmp.eq.s32.totalorder %s22, 0
      %p125 = por %p123, %p124
      %p126 = scmp.ne.s32.totalorder %s112, %s113
      %p127 = scmp.eq.s32.totalorder %s23, 7
      %p128 = por %p126, %p127
      %p130 = scmp.ne.s32.totalorder %s113, %s129
      %p131 = scmp.eq.s32.totalorder %s23, 0
      %p132 = por %p130, %p131
      %s133 = ssub.s32 %s24, %s36
      %p134 = scmp.eq.s32.totalorder %s133, 0
      %s136 = sadd.s32 %s135, 1
      %s137 = scalar_select %p134, %s135, %s136
      %p140 = pneg %p134
      %p141 = scmp.eq.s32.totalorder %s17, 7
      %p142 = por %p140, %p141
      %p143 = scmp.ne.s32.totalorder %s135, %s138
      %p144 = scmp.eq.s32.totalorder %s17, 0
      %p145 = por %p143, %p144
      %p146 = scmp.ne.s32.totalorder %s135, %s138
      %p147 = scmp.eq.s32.totalorder %s22, 7
      %p148 = por %p146, %p147
      %p149 = scmp.ne.s32.totalorder %s138, %s139
      %p150 = scmp.eq.s32.totalorder %s22, 0
      %p151 = por %p149, %p150
      %p152 = scmp.ne.s32.totalorder %s138, %s139
      %p153 = scmp.eq.s32.totalorder %s23, 7
      %p154 = por %p152, %p153
      %p156 = scmp.ne.s32.totalorder %s139, %s155
      %p157 = scmp.eq.s32.totalorder %s23, 0
      %p158 = por %p156, %p157
      %p159 = scmp.le.s32.totalorder 1, %s17
      %p160 = scmp.lt.s32.totalorder %s17, 9
      %p161 = pnand %p159, %p160
      %p162 = pneg %p161
      // Predicated region
      $region9: #{tpu_custom_call.1} parent=5 // pred_check
        _
      $region10: #{tpu_custom_call.1} parent=5 // pred_check_branch
        %164 = sbr.rel (%p161) target = $region12
      $region11: #{tpu_custom_call.1} parent=5 // pred_region
        %s165 = ssub.s32 %s17, 1
        // Predicated region
        $region13: #{tpu_custom_call.1} parent=11 // pred_check
          %p166 = pneg %p76
        $region14: #{tpu_custom_call.1} parent=11 // pred_check_branch
          %168 = sbr.rel (%p166) target = $region16
        $region15: #{tpu_custom_call.1} parent=11 // pred_region
          _
        $region16: #{tpu_custom_call.1} parent=11 // pred_fallthru
          _
        // Predicated region
        $region17: #{tpu_custom_call.1} parent=11 // pred_check
          %p169 = pneg %p97
        $region18: #{tpu_custom_call.1} parent=11 // pred_check_branch
          %171 = sbr.rel (%p169) target = $region20
        $region19: #{tpu_custom_call.1} parent=11 // pred_region
          _
        $region20: #{tpu_custom_call.1} parent=11 // pred_fallthru
          _
      $region12: #{tpu_custom_call.1} parent=5 // pred_fallthru
        _
      %p172 = scmp.lt.s32.totalorder %s17, 8
      // Predicated region
      $region21: #{tpu_custom_call.1} parent=5 // pred_check
        %p173 = pneg %p172
      $region22: #{tpu_custom_call.1} parent=5 // pred_check_branch
        %175 = sbr.rel (%p173) target = $region24
      $region23: #{tpu_custom_call.1} parent=5 // pred_region
        // Predicated region
        $region25: #{tpu_custom_call.1} parent=23 // pred_check
          %p176 = pneg %p49
        $region26: #{tpu_custom_call.1} parent=23 // pred_check_branch
          %178 = sbr.rel (%p176) target = $region28
        $region27: #{tpu_custom_call.1} parent=23 // pred_region
          %p179 = scmp.lt.s32.totalorder %s24, 1
          %s180 = scalar_select %p179, %s24, 1
          %s181 = smul.addr %s180, 170
          %s182 = smul.addr %s181, 8
          %s183 = scalar_lea.vmem %s0, %s182
        $region28: #{tpu_custom_call.1} parent=23 // pred_fallthru
          _
      $region24: #{tpu_custom_call.1} parent=5 // pred_fallthru
        _
      %p184 = scmp.le.s32.totalorder 1, %s17
      %p185 = scmp.lt.s32.totalorder %s17, 9
      %p186 = pnand %p184, %p185
      %p187 = pneg %p186
      // Predicated region
      $region29: #{tpu_custom_call.1} parent=5 // pred_check
        _
      $region30: #{tpu_custom_call.1} parent=5 // pred_check_branch
        %189 = sbr.rel (%p186) target = $region32
      $region31: #{tpu_custom_call.1} parent=5 // pred_region
        %s190 = ssub.s32 %s17, 1
        %p191 = scmp.lt.s32.totalorder %s26, 1
        %s192 = scalar_select %p191, %s26, 1
        %s193 = smul.addr %s192, 170
        %s194 = smul.addr %s193, 8
        %s195 = scalar_lea.vmem %s0, %s194
        %p196 = pneg %p55
        %p197 = pneg %p52
        %p198 = pneg %p76
        %p199 = pneg %p73
        %p200 = pneg %p97
        %p201 = pneg %p94
        %p202 = pneg %p125
        %p203 = pneg %p122
        %s204 = sand.u32 %s112, 1
        %s205 = scalar_lea.sflag [#allocation3], %s204
        %s206 = sand.u32 %s112, 1
        %s207 = smul.addr %s206, 256
        %s208 = scalar_lea.vmem [#allocation2], %s207
        %p209 = pneg %p151
        %p210 = pneg %p148
        %s211 = sand.u32 %s138, 1
        %s212 = scalar_lea.sflag [#allocation5], %s211
        %s213 = sand.u32 %s138, 1
        %s214 = smul.addr %s213, 2
        %s215 = scalar_lea.vmem [#allocation4], %s214
        %p216 = scmp.lt.s32.totalorder %s26, 1
        %s217 = scalar_select %p216, %s26, 1
        %s218 = smul.addr %s217, 170
        %s219 = smul.addr %s218, 8
        %s220 = scalar_lea.vmem %s0, %s219
        %s221 = smul.u32 8, %s27
        %s223 = smul.u32 %s27, 8
        %v224 = vld [vmem:[%s2] sm:$0x1]
        %s225 = smul.u32 %s223, 40
        %s226 = scalar_lea.vmem %s220, %s225
        %v227 = vld [vmem:[%s226] sm:$0xff]
        %v228 = vld [vmem:[%s226 + $0x8] sm:$0xff]
        %v229 = vld [vmem:[%s226 + $0x10] sm:$0xff]
        %v230 = vld [vmem:[%s226 + $0x18] sm:$0xff]
        %v231 = vld [vmem:[%s226 + $0x28] sm:$0xff]
        %v232 = vld [vmem:[%s226 + $0x30] sm:$0xff]
        %v233 = vld [vmem:[%s226 + $0x38] sm:$0xff]
        %v234 = vld [vmem:[%s226 + $0x40] sm:$0xff]
        %v235 = vld [vmem:[%s226 + $0x50] sm:$0xff]
        %v236 = vld [vmem:[%s226 + $0x58] sm:$0xff]
        %v237 = vld [vmem:[%s226 + $0x60] sm:$0xff]
        %v238 = vld [vmem:[%s226 + $0x68] sm:$0xff]
        %v239 = vld [vmem:[%s226 + $0x78] sm:$0xff]
        %v240 = vld [vmem:[%s226 + $0x80] sm:$0xff]
        %v241 = vld [vmem:[%s226 + $0x88] sm:$0xff]
        %v242 = vld [vmem:[%s226 + $0x90] sm:$0xff]
        %v243 = vld [vmem:[%s226 + $0xa0] sm:$0xff]
        %v244 = vld [vmem:[%s226 + $0xa8] sm:$0xff]
        %v245 = vld [vmem:[%s226 + $0xb0] sm:$0xff]
        %v246 = vld [vmem:[%s226 + $0xb8] sm:$0xff]
        %v247 = vld [vmem:[%s226 + $0xc8] sm:$0xff]
        %v248 = vld [vmem:[%s226 + $0xd0] sm:$0xff]
        %v249 = vld [vmem:[%s226 + $0xd8] sm:$0xff]
        %v250 = vld [vmem:[%s226 + $0xe0] sm:$0xff]
        %v251 = vld [vmem:[%s226 + $0xf0] sm:$0xff]
        %v252 = vld [vmem:[%s226 + $0xf8] sm:$0xff]
        %v253 = vld [vmem:[%s226 + $0x100] sm:$0xff]
        %v254 = vld [vmem:[%s226 + $0x108] sm:$0xff]
        %v255 = vld [vmem:[%s226 + $0x118] sm:$0xff]
        %v256 = vld [vmem:[%s226 + $0x120] sm:$0xff]
        %v257 = vld [vmem:[%s226 + $0x128] sm:$0xff]
        %v258 = vld [vmem:[%s226 + $0x130] sm:$0xff]
        %v259 = vpack.c.bf16 %v228, %v227
        %v260 = vpack.c.bf16 %v230, %v229
        %v261 = vpack.c.bf16 %v232, %v231
        %v262 = vpack.c.bf16 %v234, %v233
        %v263 = vpack.c.bf16 %v236, %v235
        %v264 = vpack.c.bf16 %v238, %v237
        %v265 = vpack.c.bf16 %v240, %v239
        %v266 = vpack.c.bf16 %v242, %v241
        %v267 = vpack.c.bf16 %v244, %v243
        %v268 = vpack.c.bf16 %v246, %v245
        %v269 = vpack.c.bf16 %v248, %v247
        %v270 = vpack.c.bf16 %v250, %v249
        %v271 = vpack.c.bf16 %v252, %v251
        %v272 = vpack.c.bf16 %v254, %v253
        %v273 = vpack.c.bf16 %v256, %v255
        %v274 = vpack.c.bf16 %v258, %v257
        %v275 = vld [vmem:[%s1] sm:$0x3]
        %v276 = vld [vmem:[%s226 + $0x1] sm:$0xff]
        %v277 = vld [vmem:[%s226 + $0x9] sm:$0xff]
        %v278 = vld [vmem:[%s226 + $0x11] sm:$0xff]
        %v279 = vld [vmem:[%s226 + $0x19] sm:$0xff]
        %v280 = vld [vmem:[%s226 + $0x29] sm:$0xff]
        %v281 = vld [vmem:[%s226 + $0x31] sm:$0xff]
        %v282 = vld [vmem:[%s226 + $0x39] sm:$0xff]
        %v283 = vld [vmem:[%s226 + $0x41] sm:$0xff]
        %v284 = vld [vmem:[%s226 + $0x51] sm:$0xff]
        %v285 = vld [vmem:[%s226 + $0x59] sm:$0xff]
        %v286 = vld [vmem:[%s226 + $0x61] sm:$0xff]
        %v287 = vld [vmem:[%s226 + $0x69] sm:$0xff]
        %v288 = vld [vmem:[%s226 + $0x79] sm:$0xff]
        %v289 = vld [vmem:[%s226 + $0x81] sm:$0xff]
        %v290 = vld [vmem:[%s226 + $0x89] sm:$0xff]
        %v291 = vld [vmem:[%s226 + $0x91] sm:$0xff]
        %v292 = vld [vmem:[%s226 + $0xa1] sm:$0xff]
        %v293 = vld [vmem:[%s226 + $0xa9] sm:$0xff]
        %v294 = vld [vmem:[%s226 + $0xb1] sm:$0xff]
        %v295 = vld [vmem:[%s226 + $0xb9] sm:$0xff]
        %v296 = vld [vmem:[%s226 + $0xc9] sm:$0xff]
        %v297 = vld [vmem:[%s226 + $0xd1] sm:$0xff]
        %v298 = vld [vmem:[%s226 + $0xd9] sm:$0xff]
        %v299 = vld [vmem:[%s226 + $0xe1] sm:$0xff]
        %v300 = vld [vmem:[%s226 + $0xf1] sm:$0xff]
        %v301 = vld [vmem:[%s226 + $0xf9] sm:$0xff]
        %v302 = vld [vmem:[%s226 + $0x101] sm:$0xff]
        %v303 = vld [vmem:[%s226 + $0x109] sm:$0xff]
        %v304 = vld [vmem:[%s226 + $0x119] sm:$0xff]
        %v305 = vld [vmem:[%s226 + $0x121] sm:$0xff]
        %v306 = vld [vmem:[%s226 + $0x129] sm:$0xff]
        %v307 = vld [vmem:[%s226 + $0x131] sm:$0xff]
        %v308 = vpack.c.bf16 %v277, %v276
        %v309 = vpack.c.bf16 %v279, %v278
        %v310 = vpack.c.bf16 %v281, %v280
        %v311 = vpack.c.bf16 %v283, %v282
        %v312 = vpack.c.bf16 %v285, %v284
        %v313 = vpack.c.bf16 %v287, %v286
        %v314 = vpack.c.bf16 %v289, %v288
        %v315 = vpack.c.bf16 %v291, %v290
        %v316 = vpack.c.bf16 %v293, %v292
        %v317 = vpack.c.bf16 %v295, %v294
        %v318 = vpack.c.bf16 %v297, %v296
        %v319 = vpack.c.bf16 %v299, %v298
        %v320 = vpack.c.bf16 %v301, %v300
        %v321 = vpack.c.bf16 %v303, %v302
        %v322 = vpack.c.bf16 %v305, %v304
        %v323 = vpack.c.bf16 %v307, %v306
        %v324 = vld [vmem:[%s1] sm:$0x6]
        %v326 = vunpack.c.l.b16 %v324
        %v327 = vpack.c.b16 %v326, %v326
        %v329 = vshrl.u32 %v327, 16
        %v331 = vrot.slane %v329, 1
        %v332 = vshll.u32 %v327, 16
        %v334 = vrot.slane %v332, 2
        %v335 = vor.u32 %v331, %v334
        %vm336 = vcmask 23552
        %v338 = vsel %vm336, %v308, 0
        %v341 = vsel %vm336, %v309, 0
        %v344 = vsel %vm336, %v310, 0
        %v347 = vsel %vm336, %v311, 0
        %v350 = vsel %vm336, %v312, 0
        %v353 = vsel %vm336, %v313, 0
        %v356 = vsel %vm336, %v314, 0
        %v359 = vsel %vm336, %v315, 0
        %v362 = vsel %vm336, %v316, 0
        %v365 = vsel %vm336, %v317, 0
        %v368 = vsel %vm336, %v318, 0
        %v371 = vsel %vm336, %v319, 0
        %v374 = vsel %vm336, %v320, 0
        %v377 = vsel %vm336, %v321, 0
        %v380 = vsel %vm336, %v322, 0
        %v383 = vsel %vm336, %v323, 0
        %vm385 = vcmask 1040384
        %vm386 = vcmask 1041408
        %v387 = vsel %vm385, 4294967295, 65535
        %v388 = vsel %vm386, %v387, 0
        %v390 = vand.u32 %v335, %v388
        %392 = vmatprep.subr.bf16.mxu0 0
        %393 = vmatpush1.bf16.msra.mxu0 0
        %394 = vmatprep.subr.bf16.mxu0 0
        %395 = vmatpush1.bf16.msra.mxu0 0
        %396 = vmatprep.subr.bf16.mxu0 0
        %397 = vmatpush1.bf16.msra.mxu0 0
        %398 = vmatprep.subr.bf16.mxu0 0
        %399 = vmatpush1.bf16.msra.mxu0 0
        %400 = vmatprep.subr.bf16.mxu0 0
        %401 = vmatpush1.bf16.msra.mxu0 0
        %402 = vmatprep.subr.bf16.mxu0 0
        %403 = vmatpush1.bf16.msra.mxu0 0
        %404 = vmatprep.subr.bf16.mxu0 0
        %405 = vmatpush1.bf16.msra.mxu0 0
        %406 = vmatprep.subr.bf16.mxu0 0
        %407 = vmatpush1.bf16.msra.mxu0 %v390
        %408 = vmatprep.subr.bf16.mxu0 0
        %409 = vmatpush2.bf16.msra.mxu0 0
        %410 = vmatprep.subr.bf16.mxu0 0
        %411 = vmatpush2.bf16.msra.mxu0 0
        %412 = vmatprep.subr.bf16.mxu0 0
        %413 = vmatpush2.bf16.msra.mxu0 0
        %414 = vmatprep.subr.bf16.mxu0 0
        %415 = vmatpush2.bf16.msra.mxu0 0
        %416 = vmatprep.subr.bf16.mxu0 0
        %417 = vmatpush2.bf16.msra.mxu0 0
        %418 = vmatprep.subr.bf16.mxu0 0
        %419 = vmatpush2.bf16.msra.mxu0 0
        %420 = vmatprep.subr.bf16.mxu0 0
        %421 = vmatpush2.bf16.msra.mxu0 0
        %422 = vmatprep.subr.bf16.mxu0 0
        %423 = vmatpush2.bf16.msra.mxu0 0
        %424 = vmatprep.mubr.bf16.mxu0 0
        %425 = vmatmul.mubr.bf16.gmra.mxu0 %v338
        %v426 = vpop.f32.mrf.mxu0
        %v427 = vadd.f32 0.0, %v426
        %v428 = vpop.f32.mrf.mxu0
        %v429 = vpop.f32.mrf.mxu0
        %v430 = vadd.f32 0.0, %v429
        %v431 = vpop.f32.mrf.mxu0
        %432 = vmatprep.mubr.bf16.mxu0 0
        %433 = vmatmul.mubr.bf16.gmra.mxu0 %v341
        %v434 = vpop.f32.mrf.mxu0
        %v435 = vadd.f32 0.0, %v434
        %v436 = vpop.f32.mrf.mxu0
        %v437 = vpop.f32.mrf.mxu0
        %v438 = vadd.f32 0.0, %v437
        %v439 = vpop.f32.mrf.mxu0
        %440 = vmatprep.mubr.bf16.mxu0 0
        %441 = vmatmul.mubr.bf16.gmra.mxu0 %v344
        %v442 = vpop.f32.mrf.mxu0
        %v443 = vadd.f32 0.0, %v442
        %v444 = vpop.f32.mrf.mxu0
        %v445 = vpop.f32.mrf.mxu0
        %v446 = vadd.f32 0.0, %v445
        %v447 = vpop.f32.mrf.mxu0
        %448 = vmatprep.mubr.bf16.mxu0 0
        %449 = vmatmul.mubr.bf16.gmra.mxu0 %v347
        %v450 = vpop.f32.mrf.mxu0
        %v451 = vadd.f32 0.0, %v450
        %v452 = vpop.f32.mrf.mxu0
        %v453 = vpop.f32.mrf.mxu0
        %v454 = vadd.f32 0.0, %v453
        %v455 = vpop.f32.mrf.mxu0
        %456 = vmatprep.mubr.bf16.mxu0 0
        %457 = vmatmul.mubr.bf16.gmra.mxu0 %v350
        %v458 = vpop.f32.mrf.mxu0
        %v459 = vadd.f32 0.0, %v458
        %v460 = vpop.f32.mrf.mxu0
        %v461 = vpop.f32.mrf.mxu0
        %v462 = vadd.f32 0.0, %v461
        %v463 = vpop.f32.mrf.mxu0
        %464 = vmatprep.mubr.bf16.mxu0 0
        %465 = vmatmul.mubr.bf16.gmra.mxu0 %v353
        %v466 = vpop.f32.mrf.mxu0
        %v467 = vadd.f32 0.0, %v466
        %v468 = vpop.f32.mrf.mxu0
        %v469 = vpop.f32.mrf.mxu0
        %v470 = vadd.f32 0.0, %v469
        %v471 = vpop.f32.mrf.mxu0
        %472 = vmatprep.mubr.bf16.mxu0 0
        %473 = vmatmul.mubr.bf16.gmra.mxu0 %v356
        %v474 = vpop.f32.mrf.mxu0
        %v475 = vadd.f32 0.0, %v474
        %v476 = vpop.f32.mrf.mxu0
        %v477 = vpop.f32.mrf.mxu0
        %v478 = vadd.f32 0.0, %v477
        %v479 = vpop.f32.mrf.mxu0
        %480 = vmatprep.mubr.bf16.mxu0 0
        %481 = vmatmul.mubr.bf16.gmra.mxu0 %v359
        %v482 = vpop.f32.mrf.mxu0
        %v483 = vadd.f32 0.0, %v482
        %v484 = vpop.f32.mrf.mxu0
        %v485 = vpop.f32.mrf.mxu0
        %v486 = vadd.f32 0.0, %v485
        %v487 = vpop.f32.mrf.mxu0
        %488 = vmatprep.mubr.bf16.mxu0 0
        %489 = vmatmul.mubr.bf16.gmra.mxu0 %v362
        %v490 = vpop.f32.mrf.mxu0
        %v491 = vadd.f32 0.0, %v490
        %v492 = vpop.f32.mrf.mxu0
        %v493 = vpop.f32.mrf.mxu0
        %v494 = vadd.f32 0.0, %v493
        %v495 = vpop.f32.mrf.mxu0
        %496 = vmatprep.mubr.bf16.mxu0 0
        %497 = vmatmul.mubr.bf16.gmra.mxu0 %v365
        %v498 = vpop.f32.mrf.mxu0
        %v499 = vadd.f32 0.0, %v498
        %v500 = vpop.f32.mrf.mxu0
        %v501 = vpop.f32.mrf.mxu0
        %v502 = vadd.f32 0.0, %v501
        %v503 = vpop.f32.mrf.mxu0
        %504 = vmatprep.mubr.bf16.mxu0 0
        %505 = vmatmul.mubr.bf16.gmra.mxu0 %v368
        %v506 = vpop.f32.mrf.mxu0
        %v507 = vadd.f32 0.0, %v506
        %v508 = vpop.f32.mrf.mxu0
        %v509 = vpop.f32.mrf.mxu0
        %v510 = vadd.f32 0.0, %v509
        %v511 = vpop.f32.mrf.mxu0
        %512 = vmatprep.mubr.bf16.mxu0 0
        %513 = vmatmul.mubr.bf16.gmra.mxu0 %v371
        %v514 = vpop.f32.mrf.mxu0
        %v515 = vadd.f32 0.0, %v514
        %v516 = vpop.f32.mrf.mxu0
        %v517 = vpop.f32.mrf.mxu0
        %v518 = vadd.f32 0.0, %v517
        %v519 = vpop.f32.mrf.mxu0
        %520 = vmatprep.mubr.bf16.mxu0 0
        %521 = vmatmul.mubr.bf16.gmra.mxu0 %v374
        %v522 = vpop.f32.mrf.mxu0
        %v523 = vadd.f32 0.0, %v522
        %v524 = vpop.f32.mrf.mxu0
        %v525 = vpop.f32.mrf.mxu0
        %v526 = vadd.f32 0.0, %v525
        %v527 = vpop.f32.mrf.mxu0
        %528 = vmatprep.mubr.bf16.mxu0 0
        %529 = vmatmul.mubr.bf16.gmra.mxu0 %v377
        %v530 = vpop.f32.mrf.mxu0
        %v531 = vadd.f32 0.0, %v530
        %v532 = vpop.f32.mrf.mxu0
        %v533 = vpop.f32.mrf.mxu0
        %v534 = vadd.f32 0.0, %v533
        %v535 = vpop.f32.mrf.mxu0
        %536 = vmatprep.mubr.bf16.mxu0 0
        %537 = vmatmul.mubr.bf16.gmra.mxu0 %v380
        %v538 = vpop.f32.mrf.mxu0
        %v539 = vadd.f32 0.0, %v538
        %v540 = vpop.f32.mrf.mxu0
        %v541 = vpop.f32.mrf.mxu0
        %v542 = vadd.f32 0.0, %v541
        %v543 = vpop.f32.mrf.mxu0
        %544 = vmatprep.mubr.bf16.mxu0 0
        %545 = vmatmul.mubr.bf16.gmra.mxu0 %v383
        %v546 = vpop.f32.mrf.mxu0
        %v547 = vadd.f32 0.0, %v546
        %v548 = vpop.f32.mrf.mxu0
        %v549 = vpop.f32.mrf.mxu0
        %v550 = vadd.f32 0.0, %v549
        %v551 = vpop.f32.mrf.mxu0
        %552 = vdwg.mxu0
        %v554 = vsel %vm336, %v259, 0
        %v557 = vsel %vm336, %v260, 0
        %v560 = vsel %vm336, %v261, 0
        %v563 = vsel %vm336, %v262, 0
        %v566 = vsel %vm336, %v263, 0
        %v569 = vsel %vm336, %v264, 0
        %v572 = vsel %vm336, %v265, 0
        %v575 = vsel %vm336, %v266, 0
        %v578 = vsel %vm336, %v267, 0
        %v581 = vsel %vm336, %v268, 0
        %v584 = vsel %vm336, %v269, 0
        %v587 = vsel %vm336, %v270, 0
        %v590 = vsel %vm336, %v271, 0
        %v593 = vsel %vm336, %v272, 0
        %v596 = vsel %vm336, %v273, 0
        %v599 = vsel %vm336, %v274, 0
        %v602 = vand.u32 %v275, %v388
        %604 = vmatprep.subr.bf16.mxu0 0
        %605 = vmatpush1.bf16.msra.mxu0 0
        %606 = vmatprep.subr.bf16.mxu0 0
        %607 = vmatpush1.bf16.msra.mxu0 0
        %608 = vmatprep.subr.bf16.mxu0 0
        %609 = vmatpush1.bf16.msra.mxu0 0
        %610 = vmatprep.subr.bf16.mxu0 0
        %611 = vmatpush1.bf16.msra.mxu0 0
        %612 = vmatprep.subr.bf16.mxu0 0
        %613 = vmatpush1.bf16.msra.mxu0 0
        %614 = vmatprep.subr.bf16.mxu0 0
        %615 = vmatpush1.bf16.msra.mxu0 0
        %616 = vmatprep.subr.bf16.mxu0 0
        %617 = vmatpush1.bf16.msra.mxu0 0
        %618 = vmatprep.subr.bf16.mxu0 0
        %619 = vmatpush1.bf16.msra.mxu0 %v602
        %620 = vmatprep.subr.bf16.mxu0 0
        %621 = vmatpush2.bf16.msra.mxu0 0
        %622 = vmatprep.subr.bf16.mxu0 0
        %623 = vmatpush2.bf16.msra.mxu0 0
        %624 = vmatprep.subr.bf16.mxu0 0
        %625 = vmatpush2.bf16.msra.mxu0 0
        %626 = vmatprep.subr.bf16.mxu0 0
        %627 = vmatpush2.bf16.msra.mxu0 0
        %628 = vmatprep.subr.bf16.mxu0 0
        %629 = vmatpush2.bf16.msra.mxu0 0
        %630 = vmatprep.subr.bf16.mxu0 0
        %631 = vmatpush2.bf16.msra.mxu0 0
        %632 = vmatprep.subr.bf16.mxu0 0
        %633 = vmatpush2.bf16.msra.mxu0 0
        %634 = vmatprep.subr.bf16.mxu0 0
        %635 = vmatpush2.bf16.msra.mxu0 0
        %636 = vmatprep.mubr.bf16.mxu0 0
        %637 = vmatmul.mubr.bf16.gmra.mxu0 %v554
        %v638 = vpop.f32.mrf.mxu0
        %v639 = vadd.f32 %v427, %v638
        %v640 = vpop.f32.mrf.mxu0
        %v641 = vpop.f32.mrf.mxu0
        %v642 = vadd.f32 %v430, %v641
        %v643 = vpop.f32.mrf.mxu0
        %644 = vmatprep.mubr.bf16.mxu0 0
        %645 = vmatmul.mubr.bf16.gmra.mxu0 %v557
        %v646 = vpop.f32.mrf.mxu0
        %v647 = vadd.f32 %v435, %v646
        %v648 = vpop.f32.mrf.mxu0
        %v649 = vpop.f32.mrf.mxu0
        %v650 = vadd.f32 %v438, %v649
        %v651 = vpop.f32.mrf.mxu0
        %652 = vmatprep.mubr.bf16.mxu0 0
        %653 = vmatmul.mubr.bf16.gmra.mxu0 %v560
        %v654 = vpop.f32.mrf.mxu0
        %v655 = vadd.f32 %v443, %v654
        %v656 = vpop.f32.mrf.mxu0
        %v657 = vpop.f32.mrf.mxu0
        %v658 = vadd.f32 %v446, %v657
        %v659 = vpop.f32.mrf.mxu0
        %660 = vmatprep.mubr.bf16.mxu0 0
        %661 = vmatmul.mubr.bf16.gmra.mxu0 %v563
        %v662 = vpop.f32.mrf.mxu0
        %v663 = vadd.f32 %v451, %v662
        %v664 = vpop.f32.mrf.mxu0
        %v665 = vpop.f32.mrf.mxu0
        %v666 = vadd.f32 %v454, %v665
        %v667 = vpop.f32.mrf.mxu0
        %668 = vmatprep.mubr.bf16.mxu0 0
        %669 = vmatmul.mubr.bf16.gmra.mxu0 %v566
        %v670 = vpop.f32.mrf.mxu0
        %v671 = vadd.f32 %v459, %v670
        %v672 = vpop.f32.mrf.mxu0
        %v673 = vpop.f32.mrf.mxu0
        %v674 = vadd.f32 %v462, %v673
        %v675 = vpop.f32.mrf.mxu0
        %676 = vmatprep.mubr.bf16.mxu0 0
        %677 = vmatmul.mubr.bf16.gmra.mxu0 %v569
        %v678 = vpop.f32.mrf.mxu0
        %v679 = vadd.f32 %v467, %v678
        %v680 = vpop.f32.mrf.mxu0
        %v681 = vpop.f32.mrf.mxu0
        %v682 = vadd.f32 %v470, %v681
        %v683 = vpop.f32.mrf.mxu0
        %684 = vmatprep.mubr.bf16.mxu0 0
        %685 = vmatmul.mubr.bf16.gmra.mxu0 %v572
        %v686 = vpop.f32.mrf.mxu0
        %v687 = vadd.f32 %v475, %v686
        %v688 = vpop.f32.mrf.mxu0
        %v689 = vpop.f32.mrf.mxu0
        %v690 = vadd.f32 %v478, %v689
        %v691 = vpop.f32.mrf.mxu0
        %692 = vmatprep.mubr.bf16.mxu0 0
        %693 = vmatmul.mubr.bf16.gmra.mxu0 %v575
        %v694 = vpop.f32.mrf.mxu0
        %v695 = vadd.f32 %v483, %v694
        %v696 = vpop.f32.mrf.mxu0
        %v697 = vpop.f32.mrf.mxu0
        %v698 = vadd.f32 %v486, %v697
        %v699 = vpop.f32.mrf.mxu0
        %700 = vmatprep.mubr.bf16.mxu0 0
        %701 = vmatmul.mubr.bf16.gmra.mxu0 %v578
        %v702 = vpop.f32.mrf.mxu0
        %v703 = vadd.f32 %v491, %v702
        %v704 = vpop.f32.mrf.mxu0
        %v705 = vpop.f32.mrf.mxu0
        %v706 = vadd.f32 %v494, %v705
        %v707 = vpop.f32.mrf.mxu0
        %708 = vmatprep.mubr.bf16.mxu0 0
        %709 = vmatmul.mubr.bf16.gmra.mxu0 %v581
        %v710 = vpop.f32.mrf.mxu0
        %v711 = vadd.f32 %v499, %v710
        %v712 = vpop.f32.mrf.mxu0
        %v713 = vpop.f32.mrf.mxu0
        %v714 = vadd.f32 %v502, %v713
        %v715 = vpop.f32.mrf.mxu0
        %716 = vmatprep.mubr.bf16.mxu0 0
        %717 = vmatmul.mubr.bf16.gmra.mxu0 %v584
        %v718 = vpop.f32.mrf.mxu0
        %v719 = vadd.f32 %v507, %v718
        %v720 = vpop.f32.mrf.mxu0
        %v721 = vpop.f32.mrf.mxu0
        %v722 = vadd.f32 %v510, %v721
        %v723 = vpop.f32.mrf.mxu0
        %724 = vmatprep.mubr.bf16.mxu0 0
        %725 = vmatmul.mubr.bf16.gmra.mxu0 %v587
        %v726 = vpop.f32.mrf.mxu0
        %v727 = vadd.f32 %v515, %v726
        %v728 = vpop.f32.mrf.mxu0
        %v729 = vpop.f32.mrf.mxu0
        %v730 = vadd.f32 %v518, %v729
        %v731 = vpop.f32.mrf.mxu0
        %732 = vmatprep.mubr.bf16.mxu0 0
        %733 = vmatmul.mubr.bf16.gmra.mxu0 %v590
        %v734 = vpop.f32.mrf.mxu0
        %v735 = vadd.f32 %v523, %v734
        %v736 = vpop.f32.mrf.mxu0
        %v737 = vpop.f32.mrf.mxu0
        %v738 = vadd.f32 %v526, %v737
        %v739 = vpop.f32.mrf.mxu0
        %740 = vmatprep.mubr.bf16.mxu0 0
        %741 = vmatmul.mubr.bf16.gmra.mxu0 %v593
        %v742 = vpop.f32.mrf.mxu0
        %v743 = vadd.f32 %v531, %v742
        %v744 = vpop.f32.mrf.mxu0
        %v745 = vpop.f32.mrf.mxu0
        %v746 = vadd.f32 %v534, %v745
        %v747 = vpop.f32.mrf.mxu0
        %748 = vmatprep.mubr.bf16.mxu0 0
        %749 = vmatmul.mubr.bf16.gmra.mxu0 %v596
        %v750 = vpop.f32.mrf.mxu0
        %v751 = vadd.f32 %v539, %v750
        %v752 = vpop.f32.mrf.mxu0
        %v753 = vpop.f32.mrf.mxu0
        %v754 = vadd.f32 %v542, %v753
        %v755 = vpop.f32.mrf.mxu0
        %756 = vmatprep.mubr.bf16.mxu0 0
        %757 = vmatmul.mubr.bf16.gmra.mxu0 %v599
        %v758 = vpop.f32.mrf.mxu0
        %v759 = vadd.f32 %v547, %v758
        %v760 = vpop.f32.mrf.mxu0
        %v761 = vpop.f32.mrf.mxu0
        %v762 = vadd.f32 %v550, %v761
        %v763 = vpop.f32.mrf.mxu0
        %764 = vdwg.mxu0
        %v765 = vld [vmem:[%s226 + $0x2] sm:$0xff]
        %v766 = vld [vmem:[%s226 + $0xa] sm:$0xff]
        %v767 = vld [vmem:[%s226 + $0x12] sm:$0xff]
        %v768 = vld [vmem:[%s226 + $0x1a] sm:$0xff]
        %v769 = vld [vmem:[%s226 + $0x2a] sm:$0xff]
        %v770 = vld [vmem:[%s226 + $0x32] sm:$0xff]
        %v771 = vld [vmem:[%s226 + $0x3a] sm:$0xff]
        %v772 = vld [vmem:[%s226 + $0x42] sm:$0xff]
        %v773 = vld [vmem:[%s226 + $0x52] sm:$0xff]
        %v774 = vld [vmem:[%s226 + $0x5a] sm:$0xff]
        %v775 = vld [vmem:[%s226 + $0x62] sm:$0xff]
        %v776 = vld [vmem:[%s226 + $0x6a] sm:$0xff]
        %v777 = vld [vmem:[%s226 + $0x7a] sm:$0xff]
        %v778 = vld [vmem:[%s226 + $0x82] sm:$0xff]
        %v779 = vld [vmem:[%s226 + $0x8a] sm:$0xff]
        %v780 = vld [vmem:[%s226 + $0x92] sm:$0xff]
        %v781 = vld [vmem:[%s226 + $0xa2] sm:$0xff]
        %v782 = vld [vmem:[%s226 + $0xaa] sm:$0xff]
        %v783 = vld [vmem:[%s226 + $0xb2] sm:$0xff]
        %v784 = vld [vmem:[%s226 + $0xba] sm:$0xff]
        %v785 = vld [vmem:[%s226 + $0xca] sm:$0xff]
        %v786 = vld [vmem:[%s226 + $0xd2] sm:$0xff]
        %v787 = vld [vmem:[%s226 + $0xda] sm:$0xff]
        %v788 = vld [vmem:[%s226 + $0xe2] sm:$0xff]
        %v789 = vld [vmem:[%s226 + $0xf2] sm:$0xff]
        %v790 = vld [vmem:[%s226 + $0xfa] sm:$0xff]
        %v791 = vld [vmem:[%s226 + $0x102] sm:$0xff]
        %v792 = vld [vmem:[%s226 + $0x10a] sm:$0xff]
        %v793 = vld [vmem:[%s226 + $0x11a] sm:$0xff]
        %v794 = vld [vmem:[%s226 + $0x122] sm:$0xff]
        %v795 = vld [vmem:[%s226 + $0x12a] sm:$0xff]
        %v796 = vld [vmem:[%s226 + $0x132] sm:$0xff]
        %v797 = vpack.c.bf16 %v766, %v765
        %v798 = vpack.c.bf16 %v768, %v767
        %v799 = vpack.c.bf16 %v770, %v769
        %v800 = vpack.c.bf16 %v772, %v771
        %v801 = vpack.c.bf16 %v774, %v773
        %v802 = vpack.c.bf16 %v776, %v775
        %v803 = vpack.c.bf16 %v778, %v777
        %v804 = vpack.c.bf16 %v780, %v779
        %v805 = vpack.c.bf16 %v782, %v781
        %v806 = vpack.c.bf16 %v784, %v783
        %v807 = vpack.c.bf16 %v786, %v785
        %v808 = vpack.c.bf16 %v788, %v787
        %v809 = vpack.c.bf16 %v790, %v789
        %v810 = vpack.c.bf16 %v792, %v791
        %v811 = vpack.c.bf16 %v794, %v793
        %v812 = vpack.c.bf16 %v796, %v795
        %v813 = vld [vmem:[%s1] sm:$0x8]
        %v814 = vld [vmem:[%s1 + $0x4] sm:$0x1]
        %v817 = vunpack.c.l.b16 %v813
        %v818 = vunpack.c.l.b16 %v814
        %v819 = vpack.c.b16 %v818, %v817
        %v820 = vrot.slane %v819, 3
        %v822 = vsel %vm336, %v797, 0
        %v825 = vsel %vm336, %v798, 0
        %v828 = vsel %vm336, %v799, 0
        %v831 = vsel %vm336, %v800, 0
        %v834 = vsel %vm336, %v801, 0
        %v837 = vsel %vm336, %v802, 0
        %v840 = vsel %vm336, %v803, 0
        %v843 = vsel %vm336, %v804, 0
        %v846 = vsel %vm336, %v805, 0
        %v849 = vsel %vm336, %v806, 0
        %v852 = vsel %vm336, %v807, 0
        %v855 = vsel %vm336, %v808, 0
        %v858 = vsel %vm336, %v809, 0
        %v861 = vsel %vm336, %v810, 0
        %v864 = vsel %vm336, %v811, 0
        %v867 = vsel %vm336, %v812, 0
        %v870 = vand.u32 %v820, %v388
        %872 = vmatprep.subr.bf16.mxu0 0
        %873 = vmatpush1.bf16.msra.mxu0 0
        %874 = vmatprep.subr.bf16.mxu0 0
        %875 = vmatpush1.bf16.msra.mxu0 0
        %876 = vmatprep.subr.bf16.mxu0 0
        %877 = vmatpush1.bf16.msra.mxu0 0
        %878 = vmatprep.subr.bf16.mxu0 0
        %879 = vmatpush1.bf16.msra.mxu0 0
        %880 = vmatprep.subr.bf16.mxu0 0
        %881 = vmatpush1.bf16.msra.mxu0 0
        %882 = vmatprep.subr.bf16.mxu0 0
        %883 = vmatpush1.bf16.msra.mxu0 0
        %884 = vmatprep.subr.bf16.mxu0 0
        %885 = vmatpush1.bf16.msra.mxu0 0
        %886 = vmatprep.subr.bf16.mxu0 0
        %887 = vmatpush1.bf16.msra.mxu0 %v870
        %888 = vmatprep.subr.bf16.mxu0 0
        %889 = vmatpush2.bf16.msra.mxu0 0
        %890 = vmatprep.subr.bf16.mxu0 0
        %891 = vmatpush2.bf16.msra.mxu0 0
        %892 = vmatprep.subr.bf16.mxu0 0
        %893 = vmatpush2.bf16.msra.mxu0 0
        %894 = vmatprep.subr.bf16.mxu0 0
        %895 = vmatpush2.bf16.msra.mxu0 0
        %896 = vmatprep.subr.bf16.mxu0 0
        %897 = vmatpush2.bf16.msra.mxu0 0
        %898 = vmatprep.subr.bf16.mxu0 0
        %899 = vmatpush2.bf16.msra.mxu0 0
        %900 = vmatprep.subr.bf16.mxu0 0
        %901 = vmatpush2.bf16.msra.mxu0 0
        %902 = vmatprep.subr.bf16.mxu0 0
        %903 = vmatpush2.bf16.msra.mxu0 0
        %904 = vmatprep.mubr.bf16.mxu0 0
        %905 = vmatmul.mubr.bf16.gmra.mxu0 %v822
        %v906 = vpop.f32.mrf.mxu0
        %v907 = vadd.f32 0.0, %v906
        %v908 = vpop.f32.mrf.mxu0
        %v909 = vpop.f32.mrf.mxu0
        %v910 = vadd.f32 0.0, %v909
        %v911 = vpop.f32.mrf.mxu0
        %912 = vmatprep.mubr.bf16.mxu0 0
        %913 = vmatmul.mubr.bf16.gmra.mxu0 %v825
        %v914 = vpop.f32.mrf.mxu0
        %v915 = vadd.f32 0.0, %v914
        %v916 = vpop.f32.mrf.mxu0
        %v917 = vpop.f32.mrf.mxu0
        %v918 = vadd.f32 0.0, %v917
        %v919 = vpop.f32.mrf.mxu0
        %920 = vmatprep.mubr.bf16.mxu0 0
        %921 = vmatmul.mubr.bf16.gmra.mxu0 %v828
        %v922 = vpop.f32.mrf.mxu0
        %v923 = vadd.f32 0.0, %v922
        %v924 = vpop.f32.mrf.mxu0
        %v925 = vpop.f32.mrf.mxu0
        %v926 = vadd.f32 0.0, %v925
        %v927 = vpop.f32.mrf.mxu0
        %928 = vmatprep.mubr.bf16.mxu0 0
        %929 = vmatmul.mubr.bf16.gmra.mxu0 %v831
        %v930 = vpop.f32.mrf.mxu0
        %v931 = vadd.f32 0.0, %v930
        %v932 = vpop.f32.mrf.mxu0
        %v933 = vpop.f32.mrf.mxu0
        %v934 = vadd.f32 0.0, %v933
        %v935 = vpop.f32.mrf.mxu0
        %936 = vmatprep.mubr.bf16.mxu0 0
        %937 = vmatmul.mubr.bf16.gmra.mxu0 %v834
        %v938 = vpop.f32.mrf.mxu0
        %v939 = vadd.f32 0.0, %v938
        %v940 = vpop.f32.mrf.mxu0
        %v941 = vpop.f32.mrf.mxu0
        %v942 = vadd.f32 0.0, %v941
        %v943 = vpop.f32.mrf.mxu0
        %944 = vmatprep.mubr.bf16.mxu0 0
        %945 = vmatmul.mubr.bf16.gmra.mxu0 %v837
        %v946 = vpop.f32.mrf.mxu0
        %v947 = vadd.f32 0.0, %v946
        %v948 = vpop.f32.mrf.mxu0
        %v949 = vpop.f32.mrf.mxu0
        %v950 = vadd.f32 0.0, %v949
        %v951 = vpop.f32.mrf.mxu0
        %952 = vmatprep.mubr.bf16.mxu0 0
        %953 = vmatmul.mubr.bf16.gmra.mxu0 %v840
        %v954 = vpop.f32.mrf.mxu0
        %v955 = vadd.f32 0.0, %v954
        %v956 = vpop.f32.mrf.mxu0
        %v957 = vpop.f32.mrf.mxu0
        %v958 = vadd.f32 0.0, %v957
        %v959 = vpop.f32.mrf.mxu0
        %960 = vmatprep.mubr.bf16.mxu0 0
        %961 = vmatmul.mubr.bf16.gmra.mxu0 %v843
        %v962 = vpop.f32.mrf.mxu0
        %v963 = vadd.f32 0.0, %v962
        %v964 = vpop.f32.mrf.mxu0
        %v965 = vpop.f32.mrf.mxu0
        %v966 = vadd.f32 0.0, %v965
        %v967 = vpop.f32.mrf.mxu0
        %968 = vmatprep.mubr.bf16.mxu0 0
        %969 = vmatmul.mubr.bf16.gmra.mxu0 %v846
        %v970 = vpop.f32.mrf.mxu0
        %v971 = vadd.f32 0.0, %v970
        %v972 = vpop.f32.mrf.mxu0
        %v973 = vpop.f32.mrf.mxu0
        %v974 = vadd.f32 0.0, %v973
        %v975 = vpop.f32.mrf.mxu0
        %976 = vmatprep.mubr.bf16.mxu0 0
        %977 = vmatmul.mubr.bf16.gmra.mxu0 %v849
        %v978 = vpop.f32.mrf.mxu0
        %v979 = vadd.f32 0.0, %v978
        %v980 = vpop.f32.mrf.mxu0
        %v981 = vpop.f32.mrf.mxu0
        %v982 = vadd.f32 0.0, %v981
        %v983 = vpop.f32.mrf.mxu0
        %984 = vmatprep.mubr.bf16.mxu0 0
        %985 = vmatmul.mubr.bf16.gmra.mxu0 %v852
        %v986 = vpop.f32.mrf.mxu0
        %v987 = vadd.f32 0.0, %v986
        %v988 = vpop.f32.mrf.mxu0
        %v989 = vpop.f32.mrf.mxu0
        %v990 = vadd.f32 0.0, %v989
        %v991 = vpop.f32.mrf.mxu0
        %992 = vmatprep.mubr.bf16.mxu0 0
        %993 = vmatmul.mubr.bf16.gmra.mxu0 %v855
        %v994 = vpop.f32.mrf.mxu0
        %v995 = vadd.f32 0.0, %v994
        %v996 = vpop.f32.mrf.mxu0
        %v997 = vpop.f32.mrf.mxu0
        %v998 = vadd.f32 0.0, %v997
        %v999 = vpop.f32.mrf.mxu0
        %1000 = vmatprep.mubr.bf16.mxu0 0
        %1001 = vmatmul.mubr.bf16.gmra.mxu0 %v858
        %v1002 = vpop.f32.mrf.mxu0
        %v1003 = vadd.f32 0.0, %v1002
        %v1004 = vpop.f32.mrf.mxu0
        %v1005 = vpop.f32.mrf.mxu0
        %v1006 = vadd.f32 0.0, %v1005
        %v1007 = vpop.f32.mrf.mxu0
        %1008 = vmatprep.mubr.bf16.mxu0 0
        %1009 = vmatmul.mubr.bf16.gmra.mxu0 %v861
        %v1010 = vpop.f32.mrf.mxu0
        %v1011 = vadd.f32 0.0, %v1010
        %v1012 = vpop.f32.mrf.mxu0
        %v1013 = vpop.f32.mrf.mxu0
        %v1014 = vadd.f32 0.0, %v1013
        %v1015 = vpop.f32.mrf.mxu0
        %1016 = vmatprep.mubr.bf16.mxu0 0
        %1017 = vmatmul.mubr.bf16.gmra.mxu0 %v864
        %v1018 = vpop.f32.mrf.mxu0
        %v1019 = vadd.f32 0.0, %v1018
        %v1020 = vpop.f32.mrf.mxu0
        %v1021 = vpop.f32.mrf.mxu0
        %v1022 = vadd.f32 0.0, %v1021
        %v1023 = vpop.f32.mrf.mxu0
        %1024 = vmatprep.mubr.bf16.mxu0 0
        %1025 = vmatmul.mubr.bf16.gmra.mxu0 %v867
        %v1026 = vpop.f32.mrf.mxu0
        %v1027 = vadd.f32 0.0, %v1026
        %v1028 = vpop.f32.mrf.mxu0
        %v1029 = vpop.f32.mrf.mxu0
        %v1030 = vadd.f32 0.0, %v1029
        %v1031 = vpop.f32.mrf.mxu0
        %1032 = vdwg.mxu0
        %v1033 = vadd.f32 %v639, %v907
        %v1034 = vadd.f32 %v642, %v910
        %v1035 = vadd.f32 %v647, %v915
        %v1036 = vadd.f32 %v650, %v918
        %v1037 = vadd.f32 %v655, %v923
        %v1038 = vadd.f32 %v658, %v926
        %v1039 = vadd.f32 %v663, %v931
        %v1040 = vadd.f32 %v666, %v934
        %v1041 = vadd.f32 %v671, %v939
        %v1042 = vadd.f32 %v674, %v942
        %v1043 = vadd.f32 %v679, %v947
        %v1044 = vadd.f32 %v682, %v950
        %v1045 = vadd.f32 %v687, %v955
        %v1046 = vadd.f32 %v690, %v958
        %v1047 = vadd.f32 %v695, %v963
        %v1048 = vadd.f32 %v698, %v966
        %v1049 = vadd.f32 %v703, %v971
        %v1050 = vadd.f32 %v706, %v974
        %v1051 = vadd.f32 %v711, %v979
        %v1052 = vadd.f32 %v714, %v982
        %v1053 = vadd.f32 %v719, %v987
        %v1054 = vadd.f32 %v722, %v990
        %v1055 = vadd.f32 %v727, %v995
        %v1056 = vadd.f32 %v730, %v998
        %v1057 = vadd.f32 %v735, %v1003
        %v1058 = vadd.f32 %v738, %v1006
        %v1059 = vadd.f32 %v743, %v1011
        %v1060 = vadd.f32 %v746, %v1014
        %v1061 = vadd.f32 %v751, %v1019
        %v1062 = vadd.f32 %v754, %v1022
        %v1063 = vadd.f32 %v759, %v1027
        %v1064 = vadd.f32 %v762, %v1030
        %s1065 = sadd.s32 %s223, 1
        %s1066 = smul.u32 %s1065, 40
        %s1067 = scalar_lea.vmem %s220, %s1066
        %v1068 = vld [vmem:[%s1067] sm:$0xff]
        %v1069 = vld [vmem:[%s1067 + $0x8] sm:$0xff]
        %v1070 = vld [vmem:[%s1067 + $0x10] sm:$0xff]
        %v1071 = vld [vmem:[%s1067 + $0x18] sm:$0xff]
        %v1072 = vld [vmem:[%s1067 + $0x28] sm:$0xff]
        %v1073 = vld [vmem:[%s1067 + $0x30] sm:$0xff]
        %v1074 = vld [vmem:[%s1067 + $0x38] sm:$0xff]
        %v1075 = vld [vmem:[%s1067 + $0x40] sm:$0xff]
        %v1076 = vld [vmem:[%s1067 + $0x50] sm:$0xff]
        %v1077 = vld [vmem:[%s1067 + $0x58] sm:$0xff]
        %v1078 = vld [vmem:[%s1067 + $0x60] sm:$0xff]
        %v1079 = vld [vmem:[%s1067 + $0x68] sm:$0xff]
        %v1080 = vld [vmem:[%s1067 + $0x78] sm:$0xff]
        %v1081 = vld [vmem:[%s1067 + $0x80] sm:$0xff]
        %v1082 = vld [vmem:[%s1067 + $0x88] sm:$0xff]
        %v1083 = vld [vmem:[%s1067 + $0x90] sm:$0xff]
        %v1084 = vld [vmem:[%s1067 + $0xa0] sm:$0xff]
        %v1085 = vld [vmem:[%s1067 + $0xa8] sm:$0xff]
        %v1086 = vld [vmem:[%s1067 + $0xb0] sm:$0xff]
        %v1087 = vld [vmem:[%s1067 + $0xb8] sm:$0xff]
        %v1088 = vld [vmem:[%s1067 + $0xc8] sm:$0xff]
        %v1089 = vld [vmem:[%s1067 + $0xd0] sm:$0xff]
        %v1090 = vld [vmem:[%s1067 + $0xd8] sm:$0xff]
        %v1091 = vld [vmem:[%s1067 + $0xe0] sm:$0xff]
        %v1092 = vld [vmem:[%s1067 + $0xf0] sm:$0xff]
        %v1093 = vld [vmem:[%s1067 + $0xf8] sm:$0xff]
        %v1094 = vld [vmem:[%s1067 + $0x100] sm:$0xff]
        %v1095 = vld [vmem:[%s1067 + $0x108] sm:$0xff]
        %v1096 = vld [vmem:[%s1067 + $0x118] sm:$0xff]
        %v1097 = vld [vmem:[%s1067 + $0x120] sm:$0xff]
        %v1098 = vld [vmem:[%s1067 + $0x128] sm:$0xff]
        %v1099 = vld [vmem:[%s1067 + $0x130] sm:$0xff]
        %v1100 = vpack.c.bf16 %v1069, %v1068
        %v1101 = vpack.c.bf16 %v1071, %v1070
        %v1102 = vpack.c.bf16 %v1073, %v1072
        %v1103 = vpack.c.bf16 %v1075, %v1074
        %v1104 = vpack.c.bf16 %v1077, %v1076
        %v1105 = vpack.c.bf16 %v1079, %v1078
        %v1106 = vpack.c.bf16 %v1081, %v1080
        %v1107 = vpack.c.bf16 %v1083, %v1082
        %v1108 = vpack.c.bf16 %v1085, %v1084
        %v1109 = vpack.c.bf16 %v1087, %v1086
        %v1110 = vpack.c.bf16 %v1089, %v1088
        %v1111 = vpack.c.bf16 %v1091, %v1090
        %v1112 = vpack.c.bf16 %v1093, %v1092
        %v1113 = vpack.c.bf16 %v1095, %v1094
        %v1114 = vpack.c.bf16 %v1097, %v1096
        %v1115 = vpack.c.bf16 %v1099, %v1098
        %v1116 = vld [vmem:[%s1 + $0x4] sm:$0x3]
        %v1118 = vunpack.c.l.b16 %v1116
        %v1119 = vpack.c.b16 %v1118, %v1118
        %v1121 = vshrl.u32 %v1119, 16
        %v1123 = vshll.u32 %v1119, 16
        %v1125 = vrot.slane %v1123, 1
        %v1126 = vor.u32 %v1121, %v1125
        %v1128 = vsel %vm336, %v1100, 0
        %v1131 = vsel %vm336, %v1101, 0
        %v1134 = vsel %vm336, %v1102, 0
        %v1137 = vsel %vm336, %v1103, 0
        %v1140 = vsel %vm336, %v1104, 0
        %v1143 = vsel %vm336, %v1105, 0
        %v1146 = vsel %vm336, %v1106, 0
        %v1149 = vsel %vm336, %v1107, 0
        %v1152 = vsel %vm336, %v1108, 0
        %v1155 = vsel %vm336, %v1109, 0
        %v1158 = vsel %vm336, %v1110, 0
        %v1161 = vsel %vm336, %v1111, 0
        %v1164 = vsel %vm336, %v1112, 0
        %v1167 = vsel %vm336, %v1113, 0
        %v1170 = vsel %vm336, %v1114, 0
        %v1173 = vsel %vm336, %v1115, 0
        %v1176 = vand.u32 %v1126, %v388
        %1178 = vmatprep.subr.bf16.mxu0 0
        %1179 = vmatpush1.bf16.msra.mxu0 0
        %1180 = vmatprep.subr.bf16.mxu0 0
        %1181 = vmatpush1.bf16.msra.mxu0 0
        %1182 = vmatprep.subr.bf16.mxu0 0
        %1183 = vmatpush1.bf16.msra.mxu0 0
        %1184 = vmatprep.subr.bf16.mxu0 0
        %1185 = vmatpush1.bf16.msra.mxu0 0
        %1186 = vmatprep.subr.bf16.mxu0 0
        %1187 = vmatpush1.bf16.msra.mxu0 0
        %1188 = vmatprep.subr.bf16.mxu0 0
        %1189 = vmatpush1.bf16.msra.mxu0 0
        %1190 = vmatprep.subr.bf16.mxu0 0
        %1191 = vmatpush1.bf16.msra.mxu0 0
        %1192 = vmatprep.subr.bf16.mxu0 0
        %1193 = vmatpush1.bf16.msra.mxu0 %v1176
        %1194 = vmatprep.subr.bf16.mxu0 0
        %1195 = vmatpush2.bf16.msra.mxu0 0
        %1196 = vmatprep.subr.bf16.mxu0 0
        %1197 = vmatpush2.bf16.msra.mxu0 0
        %1198 = vmatprep.subr.bf16.mxu0 0
        %1199 = vmatpush2.bf16.msra.mxu0 0
        %1200 = vmatprep.subr.bf16.mxu0 0
        %1201 = vmatpush2.bf16.msra.mxu0 0
        %1202 = vmatprep.subr.bf16.mxu0 0
        %1203 = vmatpush2.bf16.msra.mxu0 0
        %1204 = vmatprep.subr.bf16.mxu0 0
        %1205 = vmatpush2.bf16.msra.mxu0 0
        %1206 = vmatprep.subr.bf16.mxu0 0
        %1207 = vmatpush2.bf16.msra.mxu0 0
        %1208 = vmatprep.subr.bf16.mxu0 0
        %1209 = vmatpush2.bf16.msra.mxu0 0
        %1210 = vmatprep.mubr.bf16.mxu0 0
        %1211 = vmatmul.mubr.bf16.gmra.mxu0 %v1128
        %v1212 = vpop.f32.mrf.mxu0
        %v1213 = vadd.f32 0.0, %v1212
        %v1214 = vpop.f32.mrf.mxu0
        %v1215 = vpop.f32.mrf.mxu0
        %v1216 = vadd.f32 0.0, %v1215
        %v1217 = vpop.f32.mrf.mxu0
        %1218 = vmatprep.mubr.bf16.mxu0 0
        %1219 = vmatmul.mubr.bf16.gmra.mxu0 %v1131
        %v1220 = vpop.f32.mrf.mxu0
        %v1221 = vadd.f32 0.0, %v1220
        %v1222 = vpop.f32.mrf.mxu0
        %v1223 = vpop.f32.mrf.mxu0
        %v1224 = vadd.f32 0.0, %v1223
        %v1225 = vpop.f32.mrf.mxu0
        %1226 = vmatprep.mubr.bf16.mxu0 0
        %1227 = vmatmul.mubr.bf16.gmra.mxu0 %v1134
        %v1228 = vpop.f32.mrf.mxu0
        %v1229 = vadd.f32 0.0, %v1228
        %v1230 = vpop.f32.mrf.mxu0
        %v1231 = vpop.f32.mrf.mxu0
        %v1232 = vadd.f32 0.0, %v1231
        %v1233 = vpop.f32.mrf.mxu0
        %1234 = vmatprep.mubr.bf16.mxu0 0
        %1235 = vmatmul.mubr.bf16.gmra.mxu0 %v1137
        %v1236 = vpop.f32.mrf.mxu0
        %v1237 = vadd.f32 0.0, %v1236
        %v1238 = vpop.f32.mrf.mxu0
        %v1239 = vpop.f32.mrf.mxu0
        %v1240 = vadd.f32 0.0, %v1239
        %v1241 = vpop.f32.mrf.mxu0
        %1242 = vmatprep.mubr.bf16.mxu0 0
        %1243 = vmatmul.mubr.bf16.gmra.mxu0 %v1140
        %v1244 = vpop.f32.mrf.mxu0
        %v1245 = vadd.f32 0.0, %v1244
        %v1246 = vpop.f32.mrf.mxu0
        %v1247 = vpop.f32.mrf.mxu0
        %v1248 = vadd.f32 0.0, %v1247
        %v1249 = vpop.f32.mrf.mxu0
        %1250 = vmatprep.mubr.bf16.mxu0 0
        %1251 = vmatmul.mubr.bf16.gmra.mxu0 %v1143
        %v1252 = vpop.f32.mrf.mxu0
        %v1253 = vadd.f32 0.0, %v1252
        %v1254 = vpop.f32.mrf.mxu0
        %v1255 = vpop.f32.mrf.mxu0
        %v1256 = vadd.f32 0.0, %v1255
        %v1257 = vpop.f32.mrf.mxu0
        %1258 = vmatprep.mubr.bf16.mxu0 0
        %1259 = vmatmul.mubr.bf16.gmra.mxu0 %v1146
        %v1260 = vpop.f32.mrf.mxu0
        %v1261 = vadd.f32 0.0, %v1260
        %v1262 = vpop.f32.mrf.mxu0
        %v1263 = vpop.f32.mrf.mxu0
        %v1264 = vadd.f32 0.0, %v1263
        %v1265 = vpop.f32.mrf.mxu0
        %1266 = vmatprep.mubr.bf16.mxu0 0
        %1267 = vmatmul.mubr.bf16.gmra.mxu0 %v1149
        %v1268 = vpop.f32.mrf.mxu0
        %v1269 = vadd.f32 0.0, %v1268
        %v1270 = vpop.f32.mrf.mxu0
        %v1271 = vpop.f32.mrf.mxu0
        %v1272 = vadd.f32 0.0, %v1271
        %v1273 = vpop.f32.mrf.mxu0
        %1274 = vmatprep.mubr.bf16.mxu0 0
        %1275 = vmatmul.mubr.bf16.gmra.mxu0 %v1152
        %v1276 = vpop.f32.mrf.mxu0
        %v1277 = vadd.f32 0.0, %v1276
        %v1278 = vpop.f32.mrf.mxu0
        %v1279 = vpop.f32.mrf.mxu0
        %v1280 = vadd.f32 0.0, %v1279
        %v1281 = vpop.f32.mrf.mxu0
        %1282 = vmatprep.mubr.bf16.mxu0 0
        %1283 = vmatmul.mubr.bf16.gmra.mxu0 %v1155
        %v1284 = vpop.f32.mrf.mxu0
        %v1285 = vadd.f32 0.0, %v1284
        %v1286 = vpop.f32.mrf.mxu0
        %v1287 = vpop.f32.mrf.mxu0
        %v1288 = vadd.f32 0.0, %v1287
        %v1289 = vpop.f32.mrf.mxu0
        %1290 = vmatprep.mubr.bf16.mxu0 0
        %1291 = vmatmul.mubr.bf16.gmra.mxu0 %v1158
        %v1292 = vpop.f32.mrf.mxu0
        %v1293 = vadd.f32 0.0, %v1292
        %v1294 = vpop.f32.mrf.mxu0
        %v1295 = vpop.f32.mrf.mxu0
        %v1296 = vadd.f32 0.0, %v1295
        %v1297 = vpop.f32.mrf.mxu0
        %1298 = vmatprep.mubr.bf16.mxu0 0
        %1299 = vmatmul.mubr.bf16.gmra.mxu0 %v1161
        %v1300 = vpop.f32.mrf.mxu0
        %v1301 = vadd.f32 0.0, %v1300
        %v1302 = vpop.f32.mrf.mxu0
        %v1303 = vpop.f32.mrf.mxu0
        %v1304 = vadd.f32 0.0, %v1303
        %v1305 = vpop.f32.mrf.mxu0
        %1306 = vmatprep.mubr.bf16.mxu0 0
        %1307 = vmatmul.mubr.bf16.gmra.mxu0 %v1164
        %v1308 = vpop.f32.mrf.mxu0
        %v1309 = vadd.f32 0.0, %v1308
        %v1310 = vpop.f32.mrf.mxu0
        %v1311 = vpop.f32.mrf.mxu0
        %v1312 = vadd.f32 0.0, %v1311
        %v1313 = vpop.f32.mrf.mxu0
        %1314 = vmatprep.mubr.bf16.mxu0 0
        %1315 = vmatmul.mubr.bf16.gmra.mxu0 %v1167
        %v1316 = vpop.f32.mrf.mxu0
        %v1317 = vadd.f32 0.0, %v1316
        %v1318 = vpop.f32.mrf.mxu0
        %v1319 = vpop.f32.mrf.mxu0
        %v1320 = vadd.f32 0.0, %v1319
        %v1321 = vpop.f32.mrf.mxu0
        %1322 = vmatprep.mubr.bf16.mxu0 0
        %1323 = vmatmul.mubr.bf16.gmra.mxu0 %v1170
        %v1324 = vpop.f32.mrf.mxu0
        %v1325 = vadd.f32 0.0, %v1324
        %v1326 = vpop.f32.mrf.mxu0
        %v1327 = vpop.f32.mrf.mxu0
        %v1328 = vadd.f32 0.0, %v1327
        %v1329 = vpop.f32.mrf.mxu0
        %1330 = vmatprep.mubr.bf16.mxu0 0
        %1331 = vmatmul.mubr.bf16.gmra.mxu0 %v1173
        %v1332 = vpop.f32.mrf.mxu0
        %v1333 = vadd.f32 0.0, %v1332
        %v1334 = vpop.f32.mrf.mxu0
        %v1335 = vpop.f32.mrf.mxu0
        %v1336 = vadd.f32 0.0, %v1335
        %v1337 = vpop.f32.mrf.mxu0
        %1338 = vdwg.mxu0
        %v1339 = vadd.f32 %v1033, %v1213
        %v1340 = vadd.f32 %v1034, %v1216
        %v1341 = vadd.f32 %v1035, %v1221
        %v1342 = vadd.f32 %v1036, %v1224
        %v1343 = vadd.f32 %v1037, %v1229
        %v1344 = vadd.f32 %v1038, %v1232
        %v1345 = vadd.f32 %v1039, %v1237
        %v1346 = vadd.f32 %v1040, %v1240
        %v1347 = vadd.f32 %v1041, %v1245
        %v1348 = vadd.f32 %v1042, %v1248
        %v1349 = vadd.f32 %v1043, %v1253
        %v1350 = vadd.f32 %v1044, %v1256
        %v1351 = vadd.f32 %v1045, %v1261
        %v1352 = vadd.f32 %v1046, %v1264
        %v1353 = vadd.f32 %v1047, %v1269
        %v1354 = vadd.f32 %v1048, %v1272
        %v1355 = vadd.f32 %v1049, %v1277
        %v1356 = vadd.f32 %v1050, %v1280
        %v1357 = vadd.f32 %v1051, %v1285
        %v1358 = vadd.f32 %v1052, %v1288
        %v1359 = vadd.f32 %v1053, %v1293
        %v1360 = vadd.f32 %v1054, %v1296
        %v1361 = vadd.f32 %v1055, %v1301
        %v1362 = vadd.f32 %v1056, %v1304
        %v1363 = vadd.f32 %v1057, %v1309
        %v1364 = vadd.f32 %v1058, %v1312
        %v1365 = vadd.f32 %v1059, %v1317
        %v1366 = vadd.f32 %v1060, %v1320
        %v1367 = vadd.f32 %v1061, %v1325
        %v1368 = vadd.f32 %v1062, %v1328
        %v1369 = vadd.f32 %v1063, %v1333
        %v1370 = vadd.f32 %v1064, %v1336
        %v1371 = vld [vmem:[%s1067 + $0x1] sm:$0xff]
        %v1372 = vld [vmem:[%s1067 + $0x9] sm:$0xff]
        %v1373 = vld [vmem:[%s1067 + $0x11] sm:$0xff]
        %v1374 = vld [vmem:[%s1067 + $0x19] sm:$0xff]
        %v1375 = vld [vmem:[%s1067 + $0x29] sm:$0xff]
        %v1376 = vld [vmem:[%s1067 + $0x31] sm:$0xff]
        %v1377 = vld [vmem:[%s1067 + $0x39] sm:$0xff]
        %v1378 = vld [vmem:[%s1067 + $0x41] sm:$0xff]
        %v1379 = vld [vmem:[%s1067 + $0x51] sm:$0xff]
        %v1380 = vld [vmem:[%s1067 + $0x59] sm:$0xff]
        %v1381 = vld [vmem:[%s1067 + $0x61] sm:$0xff]
        %v1382 = vld [vmem:[%s1067 + $0x69] sm:$0xff]
        %v1383 = vld [vmem:[%s1067 + $0x79] sm:$0xff]
        %v1384 = vld [vmem:[%s1067 + $0x81] sm:$0xff]
        %v1385 = vld [vmem:[%s1067 + $0x89] sm:$0xff]
        %v1386 = vld [vmem:[%s1067 + $0x91] sm:$0xff]
        %v1387 = vld [vmem:[%s1067 + $0xa1] sm:$0xff]
        %v1388 = vld [vmem:[%s1067 + $0xa9] sm:$0xff]
        %v1389 = vld [vmem:[%s1067 + $0xb1] sm:$0xff]
        %v1390 = vld [vmem:[%s1067 + $0xb9] sm:$0xff]
        %v1391 = vld [vmem:[%s1067 + $0xc9] sm:$0xff]
        %v1392 = vld [vmem:[%s1067 + $0xd1] sm:$0xff]
        %v1393 = vld [vmem:[%s1067 + $0xd9] sm:$0xff]
        %v1394 = vld [vmem:[%s1067 + $0xe1] sm:$0xff]
        %v1395 = vld [vmem:[%s1067 + $0xf1] sm:$0xff]
        %v1396 = vld [vmem:[%s1067 + $0xf9] sm:$0xff]
        %v1397 = vld [vmem:[%s1067 + $0x101] sm:$0xff]
        %v1398 = vld [vmem:[%s1067 + $0x109] sm:$0xff]
        %v1399 = vld [vmem:[%s1067 + $0x119] sm:$0xff]
        %v1400 = vld [vmem:[%s1067 + $0x121] sm:$0xff]
        %v1401 = vld [vmem:[%s1067 + $0x129] sm:$0xff]
        %v1402 = vld [vmem:[%s1067 + $0x131] sm:$0xff]
        %v1403 = vpack.c.bf16 %v1372, %v1371
        %v1404 = vpack.c.bf16 %v1374, %v1373
        %v1405 = vpack.c.bf16 %v1376, %v1375
        %v1406 = vpack.c.bf16 %v1378, %v1377
        %v1407 = vpack.c.bf16 %v1380, %v1379
        %v1408 = vpack.c.bf16 %v1382, %v1381
        %v1409 = vpack.c.bf16 %v1384, %v1383
        %v1410 = vpack.c.bf16 %v1386, %v1385
        %v1411 = vpack.c.bf16 %v1388, %v1387
        %v1412 = vpack.c.bf16 %v1390, %v1389
        %v1413 = vpack.c.bf16 %v1392, %v1391
        %v1414 = vpack.c.bf16 %v1394, %v1393
        %v1415 = vpack.c.bf16 %v1396, %v1395
        %v1416 = vpack.c.bf16 %v1398, %v1397
        %v1417 = vpack.c.bf16 %v1400, %v1399
        %v1418 = vpack.c.bf16 %v1402, %v1401
        %v1419 = vld [vmem:[%s1 + $0x4] sm:$0xc]
        %v1421 = vunpack.c.l.b16 %v1419
        %v1422 = vpack.c.b16 %v1421, %v1421
        %v1423 = vrot.slane %v1422, 2
        %v1425 = vsel %vm336, %v1403, 0
        %v1428 = vsel %vm336, %v1404, 0
        %v1431 = vsel %vm336, %v1405, 0
        %v1434 = vsel %vm336, %v1406, 0
        %v1437 = vsel %vm336, %v1407, 0
        %v1440 = vsel %vm336, %v1408, 0
        %v1443 = vsel %vm336, %v1409, 0
        %v1446 = vsel %vm336, %v1410, 0
        %v1449 = vsel %vm336, %v1411, 0
        %v1452 = vsel %vm336, %v1412, 0
        %v1455 = vsel %vm336, %v1413, 0
        %v1458 = vsel %vm336, %v1414, 0
        %v1461 = vsel %vm336, %v1415, 0
        %v1464 = vsel %vm336, %v1416, 0
        %v1467 = vsel %vm336, %v1417, 0
        %v1470 = vsel %vm336, %v1418, 0
        %v1473 = vand.u32 %v1423, %v388
        %1475 = vmatprep.subr.bf16.mxu0 0
        %1476 = vmatpush1.bf16.msra.mxu0 0
        %1477 = vmatprep.subr.bf16.mxu0 0
        %1478 = vmatpush1.bf16.msra.mxu0 0
        %1479 = vmatprep.subr.bf16.mxu0 0
        %1480 = vmatpush1.bf16.msra.mxu0 0
        %1481 = vmatprep.subr.bf16.mxu0 0
        %1482 = vmatpush1.bf16.msra.mxu0 0
        %1483 = vmatprep.subr.bf16.mxu0 0
        %1484 = vmatpush1.bf16.msra.mxu0 0
        %1485 = vmatprep.subr.bf16.mxu0 0
        %1486 = vmatpush1.bf16.msra.mxu0 0
        %1487 = vmatprep.subr.bf16.mxu0 0
        %1488 = vmatpush1.bf16.msra.mxu0 0
        %1489 = vmatprep.subr.bf16.mxu0 0
        %1490 = vmatpush1.bf16.msra.mxu0 %v1473
        %1491 = vmatprep.subr.bf16.mxu0 0
        %1492 = vmatpush2.bf16.msra.mxu0 0
        %1493 = vmatprep.subr.bf16.mxu0 0
        %1494 = vmatpush2.bf16.msra.mxu0 0
        %1495 = vmatprep.subr.bf16.mxu0 0
        %1496 = vmatpush2.bf16.msra.mxu0 0
        %1497 = vmatprep.subr.bf16.mxu0 0
        %1498 = vmatpush2.bf16.msra.mxu0 0
        %1499 = vmatprep.subr.bf16.mxu0 0
        %1500 = vmatpush2.bf16.msra.mxu0 0
        %1501 = vmatprep.subr.bf16.mxu0 0
        %1502 = vmatpush2.bf16.msra.mxu0 0
        %1503 = vmatprep.subr.bf16.mxu0 0
        %1504 = vmatpush2.bf16.msra.mxu0 0
        %1505 = vmatprep.subr.bf16.mxu0 0
        %1506 = vmatpush2.bf16.msra.mxu0 0
        %1507 = vmatprep.mubr.bf16.mxu0 0
        %1508 = vmatmul.mubr.bf16.gmra.mxu0 %v1425
        %v1509 = vpop.f32.mrf.mxu0
        %v1510 = vadd.f32 0.0, %v1509
        %v1511 = vpop.f32.mrf.mxu0
        %v1512 = vpop.f32.mrf.mxu0
        %v1513 = vadd.f32 0.0, %v1512
        %v1514 = vpop.f32.mrf.mxu0
        %1515 = vmatprep.mubr.bf16.mxu0 0
        %1516 = vmatmul.mubr.bf16.gmra.mxu0 %v1428
        %v1517 = vpop.f32.mrf.mxu0
        %v1518 = vadd.f32 0.0, %v1517
        %v1519 = vpop.f32.mrf.mxu0
        %v1520 = vpop.f32.mrf.mxu0
        %v1521 = vadd.f32 0.0, %v1520
        %v1522 = vpop.f32.mrf.mxu0
        %1523 = vmatprep.mubr.bf16.mxu0 0
        %1524 = vmatmul.mubr.bf16.gmra.mxu0 %v1431
        %v1525 = vpop.f32.mrf.mxu0
        %v1526 = vadd.f32 0.0, %v1525
        %v1527 = vpop.f32.mrf.mxu0
        %v1528 = vpop.f32.mrf.mxu0
        %v1529 = vadd.f32 0.0, %v1528
        %v1530 = vpop.f32.mrf.mxu0
        %1531 = vmatprep.mubr.bf16.mxu0 0
        %1532 = vmatmul.mubr.bf16.gmra.mxu0 %v1434
        %v1533 = vpop.f32.mrf.mxu0
        %v1534 = vadd.f32 0.0, %v1533
        %v1535 = vpop.f32.mrf.mxu0
        %v1536 = vpop.f32.mrf.mxu0
        %v1537 = vadd.f32 0.0, %v1536
        %v1538 = vpop.f32.mrf.mxu0
        %1539 = vmatprep.mubr.bf16.mxu0 0
        %1540 = vmatmul.mubr.bf16.gmra.mxu0 %v1437
        %v1541 = vpop.f32.mrf.mxu0
        %v1542 = vadd.f32 0.0, %v1541
        %v1543 = vpop.f32.mrf.mxu0
        %v1544 = vpop.f32.mrf.mxu0
        %v1545 = vadd.f32 0.0, %v1544
        %v1546 = vpop.f32.mrf.mxu0
        %1547 = vmatprep.mubr.bf16.mxu0 0
        %1548 = vmatmul.mubr.bf16.gmra.mxu0 %v1440
        %v1549 = vpop.f32.mrf.mxu0
        %v1550 = vadd.f32 0.0, %v1549
        %v1551 = vpop.f32.mrf.mxu0
        %v1552 = vpop.f32.mrf.mxu0
        %v1553 = vadd.f32 0.0, %v1552
        %v1554 = vpop.f32.mrf.mxu0
        %1555 = vmatprep.mubr.bf16.mxu0 0
        %1556 = vmatmul.mubr.bf16.gmra.mxu0 %v1443
        %v1557 = vpop.f32.mrf.mxu0
        %v1558 = vadd.f32 0.0, %v1557
        %v1559 = vpop.f32.mrf.mxu0
        %v1560 = vpop.f32.mrf.mxu0
        %v1561 = vadd.f32 0.0, %v1560
        %v1562 = vpop.f32.mrf.mxu0
        %1563 = vmatprep.mubr.bf16.mxu0 0
        %1564 = vmatmul.mubr.bf16.gmra.mxu0 %v1446
        %v1565 = vpop.f32.mrf.mxu0
        %v1566 = vadd.f32 0.0, %v1565
        %v1567 = vpop.f32.mrf.mxu0
        %v1568 = vpop.f32.mrf.mxu0
        %v1569 = vadd.f32 0.0, %v1568
        %v1570 = vpop.f32.mrf.mxu0
        %1571 = vmatprep.mubr.bf16.mxu0 0
        %1572 = vmatmul.mubr.bf16.gmra.mxu0 %v1449
        %v1573 = vpop.f32.mrf.mxu0
        %v1574 = vadd.f32 0.0, %v1573
        %v1575 = vpop.f32.mrf.mxu0
        %v1576 = vpop.f32.mrf.mxu0
        %v1577 = vadd.f32 0.0, %v1576
        %v1578 = vpop.f32.mrf.mxu0
        %1579 = vmatprep.mubr.bf16.mxu0 0
        %1580 = vmatmul.mubr.bf16.gmra.mxu0 %v1452
        %v1581 = vpop.f32.mrf.mxu0
        %v1582 = vadd.f32 0.0, %v1581
        %v1583 = vpop.f32.mrf.mxu0
        %v1584 = vpop.f32.mrf.mxu0
        %v1585 = vadd.f32 0.0, %v1584
        %v1586 = vpop.f32.mrf.mxu0
        %1587 = vmatprep.mubr.bf16.mxu0 0
        %1588 = vmatmul.mubr.bf16.gmra.mxu0 %v1455
        %v1589 = vpop.f32.mrf.mxu0
        %v1590 = vadd.f32 0.0, %v1589
        %v1591 = vpop.f32.mrf.mxu0
        %v1592 = vpop.f32.mrf.mxu0
        %v1593 = vadd.f32 0.0, %v1592
        %v1594 = vpop.f32.mrf.mxu0
        %1595 = vmatprep.mubr.bf16.mxu0 0
        %1596 = vmatmul.mubr.bf16.gmra.mxu0 %v1458
        %v1597 = vpop.f32.mrf.mxu0
        %v1598 = vadd.f32 0.0, %v1597
        %v1599 = vpop.f32.mrf.mxu0
        %v1600 = vpop.f32.mrf.mxu0
        %v1601 = vadd.f32 0.0, %v1600
        %v1602 = vpop.f32.mrf.mxu0
        %1603 = vmatprep.mubr.bf16.mxu0 0
        %1604 = vmatmul.mubr.bf16.gmra.mxu0 %v1461
        %v1605 = vpop.f32.mrf.mxu0
        %v1606 = vadd.f32 0.0, %v1605
        %v1607 = vpop.f32.mrf.mxu0
        %v1608 = vpop.f32.mrf.mxu0
        %v1609 = vadd.f32 0.0, %v1608
        %v1610 = vpop.f32.mrf.mxu0
        %1611 = vmatprep.mubr.bf16.mxu0 0
        %1612 = vmatmul.mubr.bf16.gmra.mxu0 %v1464
        %v1613 = vpop.f32.mrf.mxu0
        %v1614 = vadd.f32 0.0, %v1613
        %v1615 = vpop.f32.mrf.mxu0
        %v1616 = vpop.f32.mrf.mxu0
        %v1617 = vadd.f32 0.0, %v1616
        %v1618 = vpop.f32.mrf.mxu0
        %1619 = vmatprep.mubr.bf16.mxu0 0
        %1620 = vmatmul.mubr.bf16.gmra.mxu0 %v1467
        %v1621 = vpop.f32.mrf.mxu0
        %v1622 = vadd.f32 0.0, %v1621
        %v1623 = vpop.f32.mrf.mxu0
        %v1624 = vpop.f32.mrf.mxu0
        %v1625 = vadd.f32 0.0, %v1624
        %v1626 = vpop.f32.mrf.mxu0
        %1627 = vmatprep.mubr.bf16.mxu0 0
        %1628 = vmatmul.mubr.bf16.gmra.mxu0 %v1470
        %v1629 = vpop.f32.mrf.mxu0
        %v1630 = vadd.f32 0.0, %v1629
        %v1631 = vpop.f32.mrf.mxu0
        %v1632 = vpop.f32.mrf.mxu0
        %v1633 = vadd.f32 0.0, %v1632
        %v1634 = vpop.f32.mrf.mxu0
        %1635 = vdwg.mxu0
        %v1636 = vadd.f32 %v1339, %v1510
        %v1637 = vadd.f32 %v1340, %v1513
        %v1638 = vadd.f32 %v1341, %v1518
        %v1639 = vadd.f32 %v1342, %v1521
        %v1640 = vadd.f32 %v1343, %v1526
        %v1641 = vadd.f32 %v1344, %v1529
        %v1642 = vadd.f32 %v1345, %v1534
        %v1643 = vadd.f32 %v1346, %v1537
        %v1644 = vadd.f32 %v1347, %v1542
        %v1645 = vadd.f32 %v1348, %v1545
        %v1646 = vadd.f32 %v1349, %v1550
        %v1647 = vadd.f32 %v1350, %v1553
        %v1648 = vadd.f32 %v1351, %v1558
        %v1649 = vadd.f32 %v1352, %v1561
        %v1650 = vadd.f32 %v1353, %v1566
        %v1651 = vadd.f32 %v1354, %v1569
        %v1652 = vadd.f32 %v1355, %v1574
        %v1653 = vadd.f32 %v1356, %v1577
        %v1654 = vadd.f32 %v1357, %v1582
        %v1655 = vadd.f32 %v1358, %v1585
        %v1656 = vadd.f32 %v1359, %v1590
        %v1657 = vadd.f32 %v1360, %v1593
        %v1658 = vadd.f32 %v1361, %v1598
        %v1659 = vadd.f32 %v1362, %v1601
        %v1660 = vadd.f32 %v1363, %v1606
        %v1661 = vadd.f32 %v1364, %v1609
        %v1662 = vadd.f32 %v1365, %v1614
        %v1663 = vadd.f32 %v1366, %v1617
        %v1664 = vadd.f32 %v1367, %v1622
        %v1665 = vadd.f32 %v1368, %v1625
        %v1666 = vadd.f32 %v1369, %v1630
        %v1667 = vadd.f32 %v1370, %v1633
        %v1668 = vld [vmem:[%s1067 + $0x2] sm:$0xff]
        %v1669 = vld [vmem:[%s1067 + $0xa] sm:$0xff]
        %v1670 = vld [vmem:[%s1067 + $0x12] sm:$0xff]
        %v1671 = vld [vmem:[%s1067 + $0x1a] sm:$0xff]
        %v1672 = vld [vmem:[%s1067 + $0x2a] sm:$0xff]
        %v1673 = vld [vmem:[%s1067 + $0x32] sm:$0xff]
        %v1674 = vld [vmem:[%s1067 + $0x3a] sm:$0xff]
        %v1675 = vld [vmem:[%s1067 + $0x42] sm:$0xff]
        %v1676 = vld [vmem:[%s1067 + $0x52] sm:$0xff]
        %v1677 = vld [vmem:[%s1067 + $0x5a] sm:$0xff]
        %v1678 = vld [vmem:[%s1067 + $0x62] sm:$0xff]
        %v1679 = vld [vmem:[%s1067 + $0x6a] sm:$0xff]
        %v1680 = vld [vmem:[%s1067 + $0x7a] sm:$0xff]
        %v1681 = vld [vmem:[%s1067 + $0x82] sm:$0xff]
        %v1682 = vld [vmem:[%s1067 + $0x8a] sm:$0xff]
        %v1683 = vld [vmem:[%s1067 + $0x92] sm:$0xff]
        %v1684 = vld [vmem:[%s1067 + $0xa2] sm:$0xff]
        %v1685 = vld [vmem:[%s1067 + $0xaa] sm:$0xff]
        %v1686 = vld [vmem:[%s1067 + $0xb2] sm:$0xff]
        %v1687 = vld [vmem:[%s1067 + $0xba] sm:$0xff]
        %v1688 = vld [vmem:[%s1067 + $0xca] sm:$0xff]
        %v1689 = vld [vmem:[%s1067 + $0xd2] sm:$0xff]
        %v1690 = vld [vmem:[%s1067 + $0xda] sm:$0xff]
        %v1691 = vld [vmem:[%s1067 + $0xe2] sm:$0xff]
        %v1692 = vld [vmem:[%s1067 + $0xf2] sm:$0xff]
        %v1693 = vld [vmem:[%s1067 + $0xfa] sm:$0xff]
        %v1694 = vld [vmem:[%s1067 + $0x102] sm:$0xff]
        %v1695 = vld [vmem:[%s1067 + $0x10a] sm:$0xff]
        %v1696 = vld [vmem:[%s1067 + $0x11a] sm:$0xff]
        %v1697 = vld [vmem:[%s1067 + $0x122] sm:$0xff]
        %v1698 = vld [vmem:[%s1067 + $0x12a] sm:$0xff]
        %v1699 = vld [vmem:[%s1067 + $0x132] sm:$0xff]
        %v1700 = vpack.c.bf16 %v1669, %v1668
        %v1701 = vpack.c.bf16 %v1671, %v1670
        %v1702 = vpack.c.bf16 %v1673, %v1672
        %v1703 = vpack.c.bf16 %v1675, %v1674
        %v1704 = vpack.c.bf16 %v1677, %v1676
        %v1705 = vpack.c.bf16 %v1679, %v1678
        %v1706 = vpack.c.bf16 %v1681, %v1680
        %v1707 = vpack.c.bf16 %v1683, %v1682
        %v1708 = vpack.c.bf16 %v1685, %v1684
        %v1709 = vpack.c.bf16 %v1687, %v1686
        %v1710 = vpack.c.bf16 %v1689, %v1688
        %v1711 = vpack.c.bf16 %v1691, %v1690
        %v1712 = vpack.c.bf16 %v1693, %v1692
        %v1713 = vpack.c.bf16 %v1695, %v1694
        %v1714 = vpack.c.bf16 %v1697, %v1696
        %v1715 = vpack.c.bf16 %v1699, %v1698
        %v1716 = vld [vmem:[%s1 + $0x4] sm:$0x8]
        %v1717 = vld [vmem:[%s1 + $0x8] sm:$0x1]
        %v1720 = vunpack.c.l.b16 %v1716
        %v1721 = vunpack.c.l.b16 %v1717
        %v1722 = vpack.c.b16 %v1721, %v1720
        %v1724 = vshrl.u32 %v1722, 16
        %v1726 = vrot.slane %v1724, 3
        %v1727 = vshll.u32 %v1722, 16
        %v1729 = vrot.slane %v1727, 4
        %v1730 = vor.u32 %v1726, %v1729
        %v1732 = vsel %vm336, %v1700, 0
        %v1735 = vsel %vm336, %v1701, 0
        %v1738 = vsel %vm336, %v1702, 0
        %v1741 = vsel %vm336, %v1703, 0
        %v1744 = vsel %vm336, %v1704, 0
        %v1747 = vsel %vm336, %v1705, 0
        %v1750 = vsel %vm336, %v1706, 0
        %v1753 = vsel %vm336, %v1707, 0
        %v1756 = vsel %vm336, %v1708, 0
        %v1759 = vsel %vm336, %v1709, 0
        %v1762 = vsel %vm336, %v1710, 0
        %v1765 = vsel %vm336, %v1711, 0
        %v1768 = vsel %vm336, %v1712, 0
        %v1771 = vsel %vm336, %v1713, 0
        %v1774 = vsel %vm336, %v1714, 0
        %v1777 = vsel %vm336, %v1715, 0
        %v1780 = vand.u32 %v1730, %v388
        %1782 = vmatprep.subr.bf16.mxu0 0
        %1783 = vmatpush1.bf16.msra.mxu0 0
        %1784 = vmatprep.subr.bf16.mxu0 0
        %1785 = vmatpush1.bf16.msra.mxu0 0
        %1786 = vmatprep.subr.bf16.mxu0 0
        %1787 = vmatpush1.bf16.msra.mxu0 0
        %1788 = vmatprep.subr.bf16.mxu0 0
        %1789 = vmatpush1.bf16.msra.mxu0 0
        %1790 = vmatprep.subr.bf16.mxu0 0
        %1791 = vmatpush1.bf16.msra.mxu0 0
        %1792 = vmatprep.subr.bf16.mxu0 0
        %1793 = vmatpush1.bf16.msra.mxu0 0
        %1794 = vmatprep.subr.bf16.mxu0 0
        %1795 = vmatpush1.bf16.msra.mxu0 0
        %1796 = vmatprep.subr.bf16.mxu0 0
        %1797 = vmatpush1.bf16.msra.mxu0 %v1780
        %1798 = vmatprep.subr.bf16.mxu0 0
        %1799 = vmatpush2.bf16.msra.mxu0 0
        %1800 = vmatprep.subr.bf16.mxu0 0
        %1801 = vmatpush2.bf16.msra.mxu0 0
        %1802 = vmatprep.subr.bf16.mxu0 0
        %1803 = vmatpush2.bf16.msra.mxu0 0
        %1804 = vmatprep.subr.bf16.mxu0 0
        %1805 = vmatpush2.bf16.msra.mxu0 0
        %1806 = vmatprep.subr.bf16.mxu0 0
        %1807 = vmatpush2.bf16.msra.mxu0 0
        %1808 = vmatprep.subr.bf16.mxu0 0
        %1809 = vmatpush2.bf16.msra.mxu0 0
        %1810 = vmatprep.subr.bf16.mxu0 0
        %1811 = vmatpush2.bf16.msra.mxu0 0
        %1812 = vmatprep.subr.bf16.mxu0 0
        %1813 = vmatpush2.bf16.msra.mxu0 0
        %1814 = vmatprep.mubr.bf16.mxu0 0
        %1815 = vmatmul.mubr.bf16.gmra.mxu0 %v1732
        %v1816 = vpop.f32.mrf.mxu0
        %v1817 = vadd.f32 0.0, %v1816
        %v1818 = vpop.f32.mrf.mxu0
        %v1819 = vpop.f32.mrf.mxu0
        %v1820 = vadd.f32 0.0, %v1819
        %v1821 = vpop.f32.mrf.mxu0
        %1822 = vmatprep.mubr.bf16.mxu0 0
        %1823 = vmatmul.mubr.bf16.gmra.mxu0 %v1735
        %v1824 = vpop.f32.mrf.mxu0
        %v1825 = vadd.f32 0.0, %v1824
        %v1826 = vpop.f32.mrf.mxu0
        %v1827 = vpop.f32.mrf.mxu0
        %v1828 = vadd.f32 0.0, %v1827
        %v1829 = vpop.f32.mrf.mxu0
        %1830 = vmatprep.mubr.bf16.mxu0 0
        %1831 = vmatmul.mubr.bf16.gmra.mxu0 %v1738
        %v1832 = vpop.f32.mrf.mxu0
        %v1833 = vadd.f32 0.0, %v1832
        %v1834 = vpop.f32.mrf.mxu0
        %v1835 = vpop.f32.mrf.mxu0
        %v1836 = vadd.f32 0.0, %v1835
        %v1837 = vpop.f32.mrf.mxu0
        %1838 = vmatprep.mubr.bf16.mxu0 0
        %1839 = vmatmul.mubr.bf16.gmra.mxu0 %v1741
        %v1840 = vpop.f32.mrf.mxu0
        %v1841 = vadd.f32 0.0, %v1840
        %v1842 = vpop.f32.mrf.mxu0
        %v1843 = vpop.f32.mrf.mxu0
        %v1844 = vadd.f32 0.0, %v1843
        %v1845 = vpop.f32.mrf.mxu0
        %1846 = vmatprep.mubr.bf16.mxu0 0
        %1847 = vmatmul.mubr.bf16.gmra.mxu0 %v1744
        %v1848 = vpop.f32.mrf.mxu0
        %v1849 = vadd.f32 0.0, %v1848
        %v1850 = vpop.f32.mrf.mxu0
        %v1851 = vpop.f32.mrf.mxu0
        %v1852 = vadd.f32 0.0, %v1851
        %v1853 = vpop.f32.mrf.mxu0
        %1854 = vmatprep.mubr.bf16.mxu0 0
        %1855 = vmatmul.mubr.bf16.gmra.mxu0 %v1747
        %v1856 = vpop.f32.mrf.mxu0
        %v1857 = vadd.f32 0.0, %v1856
        %v1858 = vpop.f32.mrf.mxu0
        %v1859 = vpop.f32.mrf.mxu0
        %v1860 = vadd.f32 0.0, %v1859
        %v1861 = vpop.f32.mrf.mxu0
        %1862 = vmatprep.mubr.bf16.mxu0 0
        %1863 = vmatmul.mubr.bf16.gmra.mxu0 %v1750
        %v1864 = vpop.f32.mrf.mxu0
        %v1865 = vadd.f32 0.0, %v1864
        %v1866 = vpop.f32.mrf.mxu0
        %v1867 = vpop.f32.mrf.mxu0
        %v1868 = vadd.f32 0.0, %v1867
        %v1869 = vpop.f32.mrf.mxu0
        %1870 = vmatprep.mubr.bf16.mxu0 0
        %1871 = vmatmul.mubr.bf16.gmra.mxu0 %v1753
        %v1872 = vpop.f32.mrf.mxu0
        %v1873 = vadd.f32 0.0, %v1872
        %v1874 = vpop.f32.mrf.mxu0
        %v1875 = vpop.f32.mrf.mxu0
        %v1876 = vadd.f32 0.0, %v1875
        %v1877 = vpop.f32.mrf.mxu0
        %1878 = vmatprep.mubr.bf16.mxu0 0
        %1879 = vmatmul.mubr.bf16.gmra.mxu0 %v1756
        %v1880 = vpop.f32.mrf.mxu0
        %v1881 = vadd.f32 0.0, %v1880
        %v1882 = vpop.f32.mrf.mxu0
        %v1883 = vpop.f32.mrf.mxu0
        %v1884 = vadd.f32 0.0, %v1883
        %v1885 = vpop.f32.mrf.mxu0
        %1886 = vmatprep.mubr.bf16.mxu0 0
        %1887 = vmatmul.mubr.bf16.gmra.mxu0 %v1759
        %v1888 = vpop.f32.mrf.mxu0
        %v1889 = vadd.f32 0.0, %v1888
        %v1890 = vpop.f32.mrf.mxu0
        %v1891 = vpop.f32.mrf.mxu0
        %v1892 = vadd.f32 0.0, %v1891
        %v1893 = vpop.f32.mrf.mxu0
        %1894 = vmatprep.mubr.bf16.mxu0 0
        %1895 = vmatmul.mubr.bf16.gmra.mxu0 %v1762
        %v1896 = vpop.f32.mrf.mxu0
        %v1897 = vadd.f32 0.0, %v1896
        %v1898 = vpop.f32.mrf.mxu0
        %v1899 = vpop.f32.mrf.mxu0
        %v1900 = vadd.f32 0.0, %v1899
        %v1901 = vpop.f32.mrf.mxu0
        %1902 = vmatprep.mubr.bf16.mxu0 0
        %1903 = vmatmul.mubr.bf16.gmra.mxu0 %v1765
        %v1904 = vpop.f32.mrf.mxu0
        %v1905 = vadd.f32 0.0, %v1904
        %v1906 = vpop.f32.mrf.mxu0
        %v1907 = vpop.f32.mrf.mxu0
        %v1908 = vadd.f32 0.0, %v1907
        %v1909 = vpop.f32.mrf.mxu0
        %1910 = vmatprep.mubr.bf16.mxu0 0
        %1911 = vmatmul.mubr.bf16.gmra.mxu0 %v1768
        %v1912 = vpop.f32.mrf.mxu0
        %v1913 = vadd.f32 0.0, %v1912
        %v1914 = vpop.f32.mrf.mxu0
        %v1915 = vpop.f32.mrf.mxu0
        %v1916 = vadd.f32 0.0, %v1915
        %v1917 = vpop.f32.mrf.mxu0
        %1918 = vmatprep.mubr.bf16.mxu0 0
        %1919 = vmatmul.mubr.bf16.gmra.mxu0 %v1771
        %v1920 = vpop.f32.mrf.mxu0
        %v1921 = vadd.f32 0.0, %v1920
        %v1922 = vpop.f32.mrf.mxu0
        %v1923 = vpop.f32.mrf.mxu0
        %v1924 = vadd.f32 0.0, %v1923
        %v1925 = vpop.f32.mrf.mxu0
        %1926 = vmatprep.mubr.bf16.mxu0 0
        %1927 = vmatmul.mubr.bf16.gmra.mxu0 %v1774
        %v1928 = vpop.f32.mrf.mxu0
        %v1929 = vadd.f32 0.0, %v1928
        %v1930 = vpop.f32.mrf.mxu0
        %v1931 = vpop.f32.mrf.mxu0
        %v1932 = vadd.f32 0.0, %v1931
        %v1933 = vpop.f32.mrf.mxu0
        %1934 = vmatprep.mubr.bf16.mxu0 0
        %1935 = vmatmul.mubr.bf16.gmra.mxu0 %v1777
        %v1936 = vpop.f32.mrf.mxu0
        %v1937 = vadd.f32 0.0, %v1936
        %v1938 = vpop.f32.mrf.mxu0
        %v1939 = vpop.f32.mrf.mxu0
        %v1940 = vadd.f32 0.0, %v1939
        %v1941 = vpop.f32.mrf.mxu0
        %1942 = vdwg.mxu0
        %v1943 = vadd.f32 %v1636, %v1817
        %v1944 = vadd.f32 %v1637, %v1820
        %v1945 = vadd.f32 %v1638, %v1825
        %v1946 = vadd.f32 %v1639, %v1828
        %v1947 = vadd.f32 %v1640, %v1833
        %v1948 = vadd.f32 %v1641, %v1836
        %v1949 = vadd.f32 %v1642, %v1841
        %v1950 = vadd.f32 %v1643, %v1844
        %v1951 = vadd.f32 %v1644, %v1849
        %v1952 = vadd.f32 %v1645, %v1852
        %v1953 = vadd.f32 %v1646, %v1857
        %v1954 = vadd.f32 %v1647, %v1860
        %v1955 = vadd.f32 %v1648, %v1865
        %v1956 = vadd.f32 %v1649, %v1868
        %v1957 = vadd.f32 %v1650, %v1873
        %v1958 = vadd.f32 %v1651, %v1876
        %v1959 = vadd.f32 %v1652, %v1881
        %v1960 = vadd.f32 %v1653, %v1884
        %v1961 = vadd.f32 %v1654, %v1889
        %v1962 = vadd.f32 %v1655, %v1892
        %v1963 = vadd.f32 %v1656, %v1897
        %v1964 = vadd.f32 %v1657, %v1900
        %v1965 = vadd.f32 %v1658, %v1905
        %v1966 = vadd.f32 %v1659, %v1908
        %v1967 = vadd.f32 %v1660, %v1913
        %v1968 = vadd.f32 %v1661, %v1916
        %v1969 = vadd.f32 %v1662, %v1921
        %v1970 = vadd.f32 %v1663, %v1924
        %v1971 = vadd.f32 %v1664, %v1929
        %v1972 = vadd.f32 %v1665, %v1932
        %v1973 = vadd.f32 %v1666, %v1937
        %v1974 = vadd.f32 %v1667, %v1940
        %s1975 = sadd.s32 %s223, 2
        %s1976 = smul.u32 %s1975, 40
        %s1977 = scalar_lea.vmem %s220, %s1976
        %v1978 = vld [vmem:[%s1977] sm:$0xff]
        %v1979 = vld [vmem:[%s1977 + $0x8] sm:$0xff]
        %v1980 = vld [vmem:[%s1977 + $0x10] sm:$0xff]
        %v1981 = vld [vmem:[%s1977 + $0x18] sm:$0xff]
        %v1982 = vld [vmem:[%s1977 + $0x28] sm:$0xff]
        %v1983 = vld [vmem:[%s1977 + $0x30] sm:$0xff]
        %v1984 = vld [vmem:[%s1977 + $0x38] sm:$0xff]
        %v1985 = vld [vmem:[%s1977 + $0x40] sm:$0xff]
        %v1986 = vld [vmem:[%s1977 + $0x50] sm:$0xff]
        %v1987 = vld [vmem:[%s1977 + $0x58] sm:$0xff]
        %v1988 = vld [vmem:[%s1977 + $0x60] sm:$0xff]
        %v1989 = vld [vmem:[%s1977 + $0x68] sm:$0xff]
        %v1990 = vld [vmem:[%s1977 + $0x78] sm:$0xff]
        %v1991 = vld [vmem:[%s1977 + $0x80] sm:$0xff]
        %v1992 = vld [vmem:[%s1977 + $0x88] sm:$0xff]
        %v1993 = vld [vmem:[%s1977 + $0x90] sm:$0xff]
        %v1994 = vld [vmem:[%s1977 + $0xa0] sm:$0xff]
        %v1995 = vld [vmem:[%s1977 + $0xa8] sm:$0xff]
        %v1996 = vld [vmem:[%s1977 + $0xb0] sm:$0xff]
        %v1997 = vld [vmem:[%s1977 + $0xb8] sm:$0xff]
        %v1998 = vld [vmem:[%s1977 + $0xc8] sm:$0xff]
        %v1999 = vld [vmem:[%s1977 + $0xd0] sm:$0xff]
        %v2000 = vld [vmem:[%s1977 + $0xd8] sm:$0xff]
        %v2001 = vld [vmem:[%s1977 + $0xe0] sm:$0xff]
        %v2002 = vld [vmem:[%s1977 + $0xf0] sm:$0xff]
        %v2003 = vld [vmem:[%s1977 + $0xf8] sm:$0xff]
        %v2004 = vld [vmem:[%s1977 + $0x100] sm:$0xff]
        %v2005 = vld [vmem:[%s1977 + $0x108] sm:$0xff]
        %v2006 = vld [vmem:[%s1977 + $0x118] sm:$0xff]
        %v2007 = vld [vmem:[%s1977 + $0x120] sm:$0xff]
        %v2008 = vld [vmem:[%s1977 + $0x128] sm:$0xff]
        %v2009 = vld [vmem:[%s1977 + $0x130] sm:$0xff]
        %v2010 = vpack.c.bf16 %v1979, %v1978
        %v2011 = vpack.c.bf16 %v1981, %v1980
        %v2012 = vpack.c.bf16 %v1983, %v1982
        %v2013 = vpack.c.bf16 %v1985, %v1984
        %v2014 = vpack.c.bf16 %v1987, %v1986
        %v2015 = vpack.c.bf16 %v1989, %v1988
        %v2016 = vpack.c.bf16 %v1991, %v1990
        %v2017 = vpack.c.bf16 %v1993, %v1992
        %v2018 = vpack.c.bf16 %v1995, %v1994
        %v2019 = vpack.c.bf16 %v1997, %v1996
        %v2020 = vpack.c.bf16 %v1999, %v1998
        %v2021 = vpack.c.bf16 %v2001, %v2000
        %v2022 = vpack.c.bf16 %v2003, %v2002
        %v2023 = vpack.c.bf16 %v2005, %v2004
        %v2024 = vpack.c.bf16 %v2007, %v2006
        %v2025 = vpack.c.bf16 %v2009, %v2008
        %v2026 = vld [vmem:[%s1 + $0x8] sm:$0x6]
        %v2028 = vunpack.c.l.b16 %v2026
        %v2029 = vpack.c.b16 %v2028, %v2028
        %v2030 = vrot.slane %v2029, 1
        %v2032 = vsel %vm336, %v2010, 0
        %v2035 = vsel %vm336, %v2011, 0
        %v2038 = vsel %vm336, %v2012, 0
        %v2041 = vsel %vm336, %v2013, 0
        %v2044 = vsel %vm336, %v2014, 0
        %v2047 = vsel %vm336, %v2015, 0
        %v2050 = vsel %vm336, %v2016, 0
        %v2053 = vsel %vm336, %v2017, 0
        %v2056 = vsel %vm336, %v2018, 0
        %v2059 = vsel %vm336, %v2019, 0
        %v2062 = vsel %vm336, %v2020, 0
        %v2065 = vsel %vm336, %v2021, 0
        %v2068 = vsel %vm336, %v2022, 0
        %v2071 = vsel %vm336, %v2023, 0
        %v2074 = vsel %vm336, %v2024, 0
        %v2077 = vsel %vm336, %v2025, 0
        %v2080 = vand.u32 %v2030, %v388
        %2082 = vmatprep.subr.bf16.mxu0 0
        %2083 = vmatpush1.bf16.msra.mxu0 0
        %2084 = vmatprep.subr.bf16.mxu0 0
        %2085 = vmatpush1.bf16.msra.mxu0 0
        %2086 = vmatprep.subr.bf16.mxu0 0
        %2087 = vmatpush1.bf16.msra.mxu0 0
        %2088 = vmatprep.subr.bf16.mxu0 0
        %2089 = vmatpush1.bf16.msra.mxu0 0
        %2090 = vmatprep.subr.bf16.mxu0 0
        %2091 = vmatpush1.bf16.msra.mxu0 0
        %2092 = vmatprep.subr.bf16.mxu0 0
        %2093 = vmatpush1.bf16.msra.mxu0 0
        %2094 = vmatprep.subr.bf16.mxu0 0
        %2095 = vmatpush1.bf16.msra.mxu0 0
        %2096 = vmatprep.subr.bf16.mxu0 0
        %2097 = vmatpush1.bf16.msra.mxu0 %v2080
        %2098 = vmatprep.subr.bf16.mxu0 0
        %2099 = vmatpush2.bf16.msra.mxu0 0
        %2100 = vmatprep.subr.bf16.mxu0 0
        %2101 = vmatpush2.bf16.msra.mxu0 0
        %2102 = vmatprep.subr.bf16.mxu0 0
        %2103 = vmatpush2.bf16.msra.mxu0 0
        %2104 = vmatprep.subr.bf16.mxu0 0
        %2105 = vmatpush2.bf16.msra.mxu0 0
        %2106 = vmatprep.subr.bf16.mxu0 0
        %2107 = vmatpush2.bf16.msra.mxu0 0
        %2108 = vmatprep.subr.bf16.mxu0 0
        %2109 = vmatpush2.bf16.msra.mxu0 0
        %2110 = vmatprep.subr.bf16.mxu0 0
        %2111 = vmatpush2.bf16.msra.mxu0 0
        %2112 = vmatprep.subr.bf16.mxu0 0
        %2113 = vmatpush2.bf16.msra.mxu0 0
        %2114 = vmatprep.mubr.bf16.mxu0 0
        %2115 = vmatmul.mubr.bf16.gmra.mxu0 %v2032
        %v2116 = vpop.f32.mrf.mxu0
        %v2117 = vadd.f32 0.0, %v2116
        %v2118 = vpop.f32.mrf.mxu0
        %v2119 = vpop.f32.mrf.mxu0
        %v2120 = vadd.f32 0.0, %v2119
        %v2121 = vpop.f32.mrf.mxu0
        %2122 = vmatprep.mubr.bf16.mxu0 0
        %2123 = vmatmul.mubr.bf16.gmra.mxu0 %v2035
        %v2124 = vpop.f32.mrf.mxu0
        %v2125 = vadd.f32 0.0, %v2124
        %v2126 = vpop.f32.mrf.mxu0
        %v2127 = vpop.f32.mrf.mxu0
        %v2128 = vadd.f32 0.0, %v2127
        %v2129 = vpop.f32.mrf.mxu0
        %2130 = vmatprep.mubr.bf16.mxu0 0
        %2131 = vmatmul.mubr.bf16.gmra.mxu0 %v2038
        %v2132 = vpop.f32.mrf.mxu0
        %v2133 = vadd.f32 0.0, %v2132
        %v2134 = vpop.f32.mrf.mxu0
        %v2135 = vpop.f32.mrf.mxu0
        %v2136 = vadd.f32 0.0, %v2135
        %v2137 = vpop.f32.mrf.mxu0
        %2138 = vmatprep.mubr.bf16.mxu0 0
        %2139 = vmatmul.mubr.bf16.gmra.mxu0 %v2041
        %v2140 = vpop.f32.mrf.mxu0
        %v2141 = vadd.f32 0.0, %v2140
        %v2142 = vpop.f32.mrf.mxu0
        %v2143 = vpop.f32.mrf.mxu0
        %v2144 = vadd.f32 0.0, %v2143
        %v2145 = vpop.f32.mrf.mxu0
        %2146 = vmatprep.mubr.bf16.mxu0 0
        %2147 = vmatmul.mubr.bf16.gmra.mxu0 %v2044
        %v2148 = vpop.f32.mrf.mxu0
        %v2149 = vadd.f32 0.0, %v2148
        %v2150 = vpop.f32.mrf.mxu0
        %v2151 = vpop.f32.mrf.mxu0
        %v2152 = vadd.f32 0.0, %v2151
        %v2153 = vpop.f32.mrf.mxu0
        %2154 = vmatprep.mubr.bf16.mxu0 0
        %2155 = vmatmul.mubr.bf16.gmra.mxu0 %v2047
        %v2156 = vpop.f32.mrf.mxu0
        %v2157 = vadd.f32 0.0, %v2156
        %v2158 = vpop.f32.mrf.mxu0
        %v2159 = vpop.f32.mrf.mxu0
        %v2160 = vadd.f32 0.0, %v2159
        %v2161 = vpop.f32.mrf.mxu0
        %2162 = vmatprep.mubr.bf16.mxu0 0
        %2163 = vmatmul.mubr.bf16.gmra.mxu0 %v2050
        %v2164 = vpop.f32.mrf.mxu0
        %v2165 = vadd.f32 0.0, %v2164
        %v2166 = vpop.f32.mrf.mxu0
        %v2167 = vpop.f32.mrf.mxu0
        %v2168 = vadd.f32 0.0, %v2167
        %v2169 = vpop.f32.mrf.mxu0
        %2170 = vmatprep.mubr.bf16.mxu0 0
        %2171 = vmatmul.mubr.bf16.gmra.mxu0 %v2053
        %v2172 = vpop.f32.mrf.mxu0
        %v2173 = vadd.f32 0.0, %v2172
        %v2174 = vpop.f32.mrf.mxu0
        %v2175 = vpop.f32.mrf.mxu0
        %v2176 = vadd.f32 0.0, %v2175
        %v2177 = vpop.f32.mrf.mxu0
        %2178 = vmatprep.mubr.bf16.mxu0 0
        %2179 = vmatmul.mubr.bf16.gmra.mxu0 %v2056
        %v2180 = vpop.f32.mrf.mxu0
        %v2181 = vadd.f32 0.0, %v2180
        %v2182 = vpop.f32.mrf.mxu0
        %v2183 = vpop.f32.mrf.mxu0
        %v2184 = vadd.f32 0.0, %v2183
        %v2185 = vpop.f32.mrf.mxu0
        %2186 = vmatprep.mubr.bf16.mxu0 0
        %2187 = vmatmul.mubr.bf16.gmra.mxu0 %v2059
        %v2188 = vpop.f32.mrf.mxu0
        %v2189 = vadd.f32 0.0, %v2188
        %v2190 = vpop.f32.mrf.mxu0
        %v2191 = vpop.f32.mrf.mxu0
        %v2192 = vadd.f32 0.0, %v2191
        %v2193 = vpop.f32.mrf.mxu0
        %2194 = vmatprep.mubr.bf16.mxu0 0
        %2195 = vmatmul.mubr.bf16.gmra.mxu0 %v2062
        %v2196 = vpop.f32.mrf.mxu0
        %v2197 = vadd.f32 0.0, %v2196
        %v2198 = vpop.f32.mrf.mxu0
        %v2199 = vpop.f32.mrf.mxu0
        %v2200 = vadd.f32 0.0, %v2199
        %v2201 = vpop.f32.mrf.mxu0
        %2202 = vmatprep.mubr.bf16.mxu0 0
        %2203 = vmatmul.mubr.bf16.gmra.mxu0 %v2065
        %v2204 = vpop.f32.mrf.mxu0
        %v2205 = vadd.f32 0.0, %v2204
        %v2206 = vpop.f32.mrf.mxu0
        %v2207 = vpop.f32.mrf.mxu0
        %v2208 = vadd.f32 0.0, %v2207
        %v2209 = vpop.f32.mrf.mxu0
        %2210 = vmatprep.mubr.bf16.mxu0 0
        %2211 = vmatmul.mubr.bf16.gmra.mxu0 %v2068
        %v2212 = vpop.f32.mrf.mxu0
        %v2213 = vadd.f32 0.0, %v2212
        %v2214 = vpop.f32.mrf.mxu0
        %v2215 = vpop.f32.mrf.mxu0
        %v2216 = vadd.f32 0.0, %v2215
        %v2217 = vpop.f32.mrf.mxu0
        %2218 = vmatprep.mubr.bf16.mxu0 0
        %2219 = vmatmul.mubr.bf16.gmra.mxu0 %v2071
        %v2220 = vpop.f32.mrf.mxu0
        %v2221 = vadd.f32 0.0, %v2220
        %v2222 = vpop.f32.mrf.mxu0
        %v2223 = vpop.f32.mrf.mxu0
        %v2224 = vadd.f32 0.0, %v2223
        %v2225 = vpop.f32.mrf.mxu0
        %2226 = vmatprep.mubr.bf16.mxu0 0
        %2227 = vmatmul.mubr.bf16.gmra.mxu0 %v2074
        %v2228 = vpop.f32.mrf.mxu0
        %v2229 = vadd.f32 0.0, %v2228
        %v2230 = vpop.f32.mrf.mxu0
        %v2231 = vpop.f32.mrf.mxu0
        %v2232 = vadd.f32 0.0, %v2231
        %v2233 = vpop.f32.mrf.mxu0
        %2234 = vmatprep.mubr.bf16.mxu0 0
        %2235 = vmatmul.mubr.bf16.gmra.mxu0 %v2077
        %v2236 = vpop.f32.mrf.mxu0
        %v2237 = vadd.f32 0.0, %v2236
        %v2238 = vpop.f32.mrf.mxu0
        %v2239 = vpop.f32.mrf.mxu0
        %v2240 = vadd.f32 0.0, %v2239
        %v2241 = vpop.f32.mrf.mxu0
        %2242 = vdwg.mxu0
        %v2243 = vadd.f32 %v1943, %v2117
        %v2244 = vadd.f32 %v1944, %v2120
        %v2245 = vadd.f32 %v1945, %v2125
        %v2246 = vadd.f32 %v1946, %v2128
        %v2247 = vadd.f32 %v1947, %v2133
        %v2248 = vadd.f32 %v1948, %v2136
        %v2249 = vadd.f32 %v1949, %v2141
        %v2250 = vadd.f32 %v1950, %v2144
        %v2251 = vadd.f32 %v1951, %v2149
        %v2252 = vadd.f32 %v1952, %v2152
        %v2253 = vadd.f32 %v1953, %v2157
        %v2254 = vadd.f32 %v1954, %v2160
        %v2255 = vadd.f32 %v1955, %v2165
        %v2256 = vadd.f32 %v1956, %v2168
        %v2257 = vadd.f32 %v1957, %v2173
        %v2258 = vadd.f32 %v1958, %v2176
        %v2259 = vadd.f32 %v1959, %v2181
        %v2260 = vadd.f32 %v1960, %v2184
        %v2261 = vadd.f32 %v1961, %v2189
        %v2262 = vadd.f32 %v1962, %v2192
        %v2263 = vadd.f32 %v1963, %v2197
        %v2264 = vadd.f32 %v1964, %v2200
        %v2265 = vadd.f32 %v1965, %v2205
        %v2266 = vadd.f32 %v1966, %v2208
        %v2267 = vadd.f32 %v1967, %v2213
        %v2268 = vadd.f32 %v1968, %v2216
        %v2269 = vadd.f32 %v1969, %v2221
        %v2270 = vadd.f32 %v1970, %v2224
        %v2271 = vadd.f32 %v1971, %v2229
        %v2272 = vadd.f32 %v1972, %v2232
        %v2273 = vadd.f32 %v1973, %v2237
        %v2274 = vadd.f32 %v1974, %v2240
        %v2275 = vld [vmem:[%s1977 + $0x1] sm:$0xff]
        %v2276 = vld [vmem:[%s1977 + $0x9] sm:$0xff]
        %v2277 = vld [vmem:[%s1977 + $0x11] sm:$0xff]
        %v2278 = vld [vmem:[%s1977 + $0x19] sm:$0xff]
        %v2279 = vld [vmem:[%s1977 + $0x29] sm:$0xff]
        %v2280 = vld [vmem:[%s1977 + $0x31] sm:$0xff]
        %v2281 = vld [vmem:[%s1977 + $0x39] sm:$0xff]
        %v2282 = vld [vmem:[%s1977 + $0x41] sm:$0xff]
        %v2283 = vld [vmem:[%s1977 + $0x51] sm:$0xff]
        %v2284 = vld [vmem:[%s1977 + $0x59] sm:$0xff]
        %v2285 = vld [vmem:[%s1977 + $0x61] sm:$0xff]
        %v2286 = vld [vmem:[%s1977 + $0x69] sm:$0xff]
        %v2287 = vld [vmem:[%s1977 + $0x79] sm:$0xff]
        %v2288 = vld [vmem:[%s1977 + $0x81] sm:$0xff]
        %v2289 = vld [vmem:[%s1977 + $0x89] sm:$0xff]
        %v2290 = vld [vmem:[%s1977 + $0x91] sm:$0xff]
        %v2291 = vld [vmem:[%s1977 + $0xa1] sm:$0xff]
        %v2292 = vld [vmem:[%s1977 + $0xa9] sm:$0xff]
        %v2293 = vld [vmem:[%s1977 + $0xb1] sm:$0xff]
        %v2294 = vld [vmem:[%s1977 + $0xb9] sm:$0xff]
        %v2295 = vld [vmem:[%s1977 + $0xc9] sm:$0xff]
        %v2296 = vld [vmem:[%s1977 + $0xd1] sm:$0xff]
        %v2297 = vld [vmem:[%s1977 + $0xd9] sm:$0xff]
        %v2298 = vld [vmem:[%s1977 + $0xe1] sm:$0xff]
        %v2299 = vld [vmem:[%s1977 + $0xf1] sm:$0xff]
        %v2300 = vld [vmem:[%s1977 + $0xf9] sm:$0xff]
        %v2301 = vld [vmem:[%s1977 + $0x101] sm:$0xff]
        %v2302 = vld [vmem:[%s1977 + $0x109] sm:$0xff]
        %v2303 = vld [vmem:[%s1977 + $0x119] sm:$0xff]
        %v2304 = vld [vmem:[%s1977 + $0x121] sm:$0xff]
        %v2305 = vld [vmem:[%s1977 + $0x129] sm:$0xff]
        %v2306 = vld [vmem:[%s1977 + $0x131] sm:$0xff]
        %v2307 = vpack.c.bf16 %v2276, %v2275
        %v2308 = vpack.c.bf16 %v2278, %v2277
        %v2309 = vpack.c.bf16 %v2280, %v2279
        %v2310 = vpack.c.bf16 %v2282, %v2281
        %v2311 = vpack.c.bf16 %v2284, %v2283
        %v2312 = vpack.c.bf16 %v2286, %v2285
        %v2313 = vpack.c.bf16 %v2288, %v2287
        %v2314 = vpack.c.bf16 %v2290, %v2289
        %v2315 = vpack.c.bf16 %v2292, %v2291
        %v2316 = vpack.c.bf16 %v2294, %v2293
        %v2317 = vpack.c.bf16 %v2296, %v2295
        %v2318 = vpack.c.bf16 %v2298, %v2297
        %v2319 = vpack.c.bf16 %v2300, %v2299
        %v2320 = vpack.c.bf16 %v2302, %v2301
        %v2321 = vpack.c.bf16 %v2304, %v2303
        %v2322 = vpack.c.bf16 %v2306, %v2305
        %v2323 = vld [vmem:[%s1 + $0x8] sm:$0xc]
        %v2325 = vunpack.c.l.b16 %v2323
        %v2326 = vpack.c.b16 %v2325, %v2325
        %v2328 = vshrl.u32 %v2326, 16
        %v2330 = vrot.slane %v2328, 2
        %v2331 = vshll.u32 %v2326, 16
        %v2333 = vrot.slane %v2331, 3
        %v2334 = vor.u32 %v2330, %v2333
        %v2336 = vsel %vm336, %v2307, 0
        %v2339 = vsel %vm336, %v2308, 0
        %v2342 = vsel %vm336, %v2309, 0
        %v2345 = vsel %vm336, %v2310, 0
        %v2348 = vsel %vm336, %v2311, 0
        %v2351 = vsel %vm336, %v2312, 0
        %v2354 = vsel %vm336, %v2313, 0
        %v2357 = vsel %vm336, %v2314, 0
        %v2360 = vsel %vm336, %v2315, 0
        %v2363 = vsel %vm336, %v2316, 0
        %v2366 = vsel %vm336, %v2317, 0
        %v2369 = vsel %vm336, %v2318, 0
        %v2372 = vsel %vm336, %v2319, 0
        %v2375 = vsel %vm336, %v2320, 0
        %v2378 = vsel %vm336, %v2321, 0
        %v2381 = vsel %vm336, %v2322, 0
        %v2384 = vand.u32 %v2334, %v388
        %2386 = vmatprep.subr.bf16.mxu0 0
        %2387 = vmatpush1.bf16.msra.mxu0 0
        %2388 = vmatprep.subr.bf16.mxu0 0
        %2389 = vmatpush1.bf16.msra.mxu0 0
        %2390 = vmatprep.subr.bf16.mxu0 0
        %2391 = vmatpush1.bf16.msra.mxu0 0
        %2392 = vmatprep.subr.bf16.mxu0 0
        %2393 = vmatpush1.bf16.msra.mxu0 0
        %2394 = vmatprep.subr.bf16.mxu0 0
        %2395 = vmatpush1.bf16.msra.mxu0 0
        %2396 = vmatprep.subr.bf16.mxu0 0
        %2397 = vmatpush1.bf16.msra.mxu0 0
        %2398 = vmatprep.subr.bf16.mxu0 0
        %2399 = vmatpush1.bf16.msra.mxu0 0
        %2400 = vmatprep.subr.bf16.mxu0 0
        %2401 = vmatpush1.bf16.msra.mxu0 %v2384
        %2402 = vmatprep.subr.bf16.mxu0 0
        %2403 = vmatpush2.bf16.msra.mxu0 0
        %2404 = vmatprep.subr.bf16.mxu0 0
        %2405 = vmatpush2.bf16.msra.mxu0 0
        %2406 = vmatprep.subr.bf16.mxu0 0
        %2407 = vmatpush2.bf16.msra.mxu0 0
        %2408 = vmatprep.subr.bf16.mxu0 0
        %2409 = vmatpush2.bf16.msra.mxu0 0
        %2410 = vmatprep.subr.bf16.mxu0 0
        %2411 = vmatpush2.bf16.msra.mxu0 0
        %2412 = vmatprep.subr.bf16.mxu0 0
        %2413 = vmatpush2.bf16.msra.mxu0 0
        %2414 = vmatprep.subr.bf16.mxu0 0
        %2415 = vmatpush2.bf16.msra.mxu0 0
        %2416 = vmatprep.subr.bf16.mxu0 0
        %2417 = vmatpush2.bf16.msra.mxu0 0
        %2418 = vmatprep.mubr.bf16.mxu0 0
        %2419 = vmatmul.mubr.bf16.gmra.mxu0 %v2336
        %v2420 = vpop.f32.mrf.mxu0
        %v2421 = vadd.f32 0.0, %v2420
        %v2422 = vpop.f32.mrf.mxu0
        %v2423 = vpop.f32.mrf.mxu0
        %v2424 = vadd.f32 0.0, %v2423
        %v2425 = vpop.f32.mrf.mxu0
        %2426 = vmatprep.mubr.bf16.mxu0 0
        %2427 = vmatmul.mubr.bf16.gmra.mxu0 %v2339
        %v2428 = vpop.f32.mrf.mxu0
        %v2429 = vadd.f32 0.0, %v2428
        %v2430 = vpop.f32.mrf.mxu0
        %v2431 = vpop.f32.mrf.mxu0
        %v2432 = vadd.f32 0.0, %v2431
        %v2433 = vpop.f32.mrf.mxu0
        %2434 = vmatprep.mubr.bf16.mxu0 0
        %2435 = vmatmul.mubr.bf16.gmra.mxu0 %v2342
        %v2436 = vpop.f32.mrf.mxu0
        %v2437 = vadd.f32 0.0, %v2436
        %v2438 = vpop.f32.mrf.mxu0
        %v2439 = vpop.f32.mrf.mxu0
        %v2440 = vadd.f32 0.0, %v2439
        %v2441 = vpop.f32.mrf.mxu0
        %2442 = vmatprep.mubr.bf16.mxu0 0
        %2443 = vmatmul.mubr.bf16.gmra.mxu0 %v2345
        %v2444 = vpop.f32.mrf.mxu0
        %v2445 = vadd.f32 0.0, %v2444
        %v2446 = vpop.f32.mrf.mxu0
        %v2447 = vpop.f32.mrf.mxu0
        %v2448 = vadd.f32 0.0, %v2447
        %v2449 = vpop.f32.mrf.mxu0
        %2450 = vmatprep.mubr.bf16.mxu0 0
        %2451 = vmatmul.mubr.bf16.gmra.mxu0 %v2348
        %v2452 = vpop.f32.mrf.mxu0
        %v2453 = vadd.f32 0.0, %v2452
        %v2454 = vpop.f32.mrf.mxu0
        %v2455 = vpop.f32.mrf.mxu0
        %v2456 = vadd.f32 0.0, %v2455
        %v2457 = vpop.f32.mrf.mxu0
        %2458 = vmatprep.mubr.bf16.mxu0 0
        %2459 = vmatmul.mubr.bf16.gmra.mxu0 %v2351
        %v2460 = vpop.f32.mrf.mxu0
        %v2461 = vadd.f32 0.0, %v2460
        %v2462 = vpop.f32.mrf.mxu0
        %v2463 = vpop.f32.mrf.mxu0
        %v2464 = vadd.f32 0.0, %v2463
        %v2465 = vpop.f32.mrf.mxu0
        %2466 = vmatprep.mubr.bf16.mxu0 0
        %2467 = vmatmul.mubr.bf16.gmra.mxu0 %v2354
        %v2468 = vpop.f32.mrf.mxu0
        %v2469 = vadd.f32 0.0, %v2468
        %v2470 = vpop.f32.mrf.mxu0
        %v2471 = vpop.f32.mrf.mxu0
        %v2472 = vadd.f32 0.0, %v2471
        %v2473 = vpop.f32.mrf.mxu0
        %2474 = vmatprep.mubr.bf16.mxu0 0
        %2475 = vmatmul.mubr.bf16.gmra.mxu0 %v2357
        %v2476 = vpop.f32.mrf.mxu0
        %v2477 = vadd.f32 0.0, %v2476
        %v2478 = vpop.f32.mrf.mxu0
        %v2479 = vpop.f32.mrf.mxu0
        %v2480 = vadd.f32 0.0, %v2479
        %v2481 = vpop.f32.mrf.mxu0
        %2482 = vmatprep.mubr.bf16.mxu0 0
        %2483 = vmatmul.mubr.bf16.gmra.mxu0 %v2360
        %v2484 = vpop.f32.mrf.mxu0
        %v2485 = vadd.f32 0.0, %v2484
        %v2486 = vpop.f32.mrf.mxu0
        %v2487 = vpop.f32.mrf.mxu0
        %v2488 = vadd.f32 0.0, %v2487
        %v2489 = vpop.f32.mrf.mxu0
        %2490 = vmatprep.mubr.bf16.mxu0 0
        %2491 = vmatmul.mubr.bf16.gmra.mxu0 %v2363
        %v2492 = vpop.f32.mrf.mxu0
        %v2493 = vadd.f32 0.0, %v2492
        %v2494 = vpop.f32.mrf.mxu0
        %v2495 = vpop.f32.mrf.mxu0
        %v2496 = vadd.f32 0.0, %v2495
        %v2497 = vpop.f32.mrf.mxu0
        %2498 = vmatprep.mubr.bf16.mxu0 0
        %2499 = vmatmul.mubr.bf16.gmra.mxu0 %v2366
        %v2500 = vpop.f32.mrf.mxu0
        %v2501 = vadd.f32 0.0, %v2500
        %v2502 = vpop.f32.mrf.mxu0
        %v2503 = vpop.f32.mrf.mxu0
        %v2504 = vadd.f32 0.0, %v2503
        %v2505 = vpop.f32.mrf.mxu0
        %2506 = vmatprep.mubr.bf16.mxu0 0
        %2507 = vmatmul.mubr.bf16.gmra.mxu0 %v2369
        %v2508 = vpop.f32.mrf.mxu0
        %v2509 = vadd.f32 0.0, %v2508
        %v2510 = vpop.f32.mrf.mxu0
        %v2511 = vpop.f32.mrf.mxu0
        %v2512 = vadd.f32 0.0, %v2511
        %v2513 = vpop.f32.mrf.mxu0
        %2514 = vmatprep.mubr.bf16.mxu0 0
        %2515 = vmatmul.mubr.bf16.gmra.mxu0 %v2372
        %v2516 = vpop.f32.mrf.mxu0
        %v2517 = vadd.f32 0.0, %v2516
        %v2518 = vpop.f32.mrf.mxu0
        %v2519 = vpop.f32.mrf.mxu0
        %v2520 = vadd.f32 0.0, %v2519
        %v2521 = vpop.f32.mrf.mxu0
        %2522 = vmatprep.mubr.bf16.mxu0 0
        %2523 = vmatmul.mubr.bf16.gmra.mxu0 %v2375
        %v2524 = vpop.f32.mrf.mxu0
        %v2525 = vadd.f32 0.0, %v2524
        %v2526 = vpop.f32.mrf.mxu0
        %v2527 = vpop.f32.mrf.mxu0
        %v2528 = vadd.f32 0.0, %v2527
        %v2529 = vpop.f32.mrf.mxu0
        %2530 = vmatprep.mubr.bf16.mxu0 0
        %2531 = vmatmul.mubr.bf16.gmra.mxu0 %v2378
        %v2532 = vpop.f32.mrf.mxu0
        %v2533 = vadd.f32 0.0, %v2532
        %v2534 = vpop.f32.mrf.mxu0
        %v2535 = vpop.f32.mrf.mxu0
        %v2536 = vadd.f32 0.0, %v2535
        %v2537 = vpop.f32.mrf.mxu0
        %2538 = vmatprep.mubr.bf16.mxu0 0
        %2539 = vmatmul.mubr.bf16.gmra.mxu0 %v2381
        %v2540 = vpop.f32.mrf.mxu0
        %v2541 = vadd.f32 0.0, %v2540
        %v2542 = vpop.f32.mrf.mxu0
        %v2543 = vpop.f32.mrf.mxu0
        %v2544 = vadd.f32 0.0, %v2543
        %v2545 = vpop.f32.mrf.mxu0
        %2546 = vdwg.mxu0
        %v2547 = vadd.f32 %v2243, %v2421
        %v2548 = vadd.f32 %v2244, %v2424
        %v2549 = vadd.f32 %v2245, %v2429
        %v2550 = vadd.f32 %v2246, %v2432
        %v2551 = vadd.f32 %v2247, %v2437
        %v2552 = vadd.f32 %v2248, %v2440
        %v2553 = vadd.f32 %v2249, %v2445
        %v2554 = vadd.f32 %v2250, %v2448
        %v2555 = vadd.f32 %v2251, %v2453
        %v2556 = vadd.f32 %v2252, %v2456
        %v2557 = vadd.f32 %v2253, %v2461
        %v2558 = vadd.f32 %v2254, %v2464
        %v2559 = vadd.f32 %v2255, %v2469
        %v2560 = vadd.f32 %v2256, %v2472
        %v2561 = vadd.f32 %v2257, %v2477
        %v2562 = vadd.f32 %v2258, %v2480
        %v2563 = vadd.f32 %v2259, %v2485
        %v2564 = vadd.f32 %v2260, %v2488
        %v2565 = vadd.f32 %v2261, %v2493
        %v2566 = vadd.f32 %v2262, %v2496
        %v2567 = vadd.f32 %v2263, %v2501
        %v2568 = vadd.f32 %v2264, %v2504
        %v2569 = vadd.f32 %v2265, %v2509
        %v2570 = vadd.f32 %v2266, %v2512
        %v2571 = vadd.f32 %v2267, %v2517
        %v2572 = vadd.f32 %v2268, %v2520
        %v2573 = vadd.f32 %v2269, %v2525
        %v2574 = vadd.f32 %v2270, %v2528
        %v2575 = vadd.f32 %v2271, %v2533
        %v2576 = vadd.f32 %v2272, %v2536
        %v2577 = vadd.f32 %v2273, %v2541
        %v2578 = vadd.f32 %v2274, %v2544
        %v2579 = vld [vmem:[%s1977 + $0x2] sm:$0xff]
        %v2580 = vld [vmem:[%s1977 + $0xa] sm:$0xff]
        %v2581 = vld [vmem:[%s1977 + $0x12] sm:$0xff]
        %v2582 = vld [vmem:[%s1977 + $0x1a] sm:$0xff]
        %v2583 = vld [vmem:[%s1977 + $0x2a] sm:$0xff]
        %v2584 = vld [vmem:[%s1977 + $0x32] sm:$0xff]
        %v2585 = vld [vmem:[%s1977 + $0x3a] sm:$0xff]
        %v2586 = vld [vmem:[%s1977 + $0x42] sm:$0xff]
        %v2587 = vld [vmem:[%s1977 + $0x52] sm:$0xff]
        %v2588 = vld [vmem:[%s1977 + $0x5a] sm:$0xff]
        %v2589 = vld [vmem:[%s1977 + $0x62] sm:$0xff]
        %v2590 = vld [vmem:[%s1977 + $0x6a] sm:$0xff]
        %v2591 = vld [vmem:[%s1977 + $0x7a] sm:$0xff]
        %v2592 = vld [vmem:[%s1977 + $0x82] sm:$0xff]
        %v2593 = vld [vmem:[%s1977 + $0x8a] sm:$0xff]
        %v2594 = vld [vmem:[%s1977 + $0x92] sm:$0xff]
        %v2595 = vld [vmem:[%s1977 + $0xa2] sm:$0xff]
        %v2596 = vld [vmem:[%s1977 + $0xaa] sm:$0xff]
        %v2597 = vld [vmem:[%s1977 + $0xb2] sm:$0xff]
        %v2598 = vld [vmem:[%s1977 + $0xba] sm:$0xff]
        %v2599 = vld [vmem:[%s1977 + $0xca] sm:$0xff]
        %v2600 = vld [vmem:[%s1977 + $0xd2] sm:$0xff]
        %v2601 = vld [vmem:[%s1977 + $0xda] sm:$0xff]
        %v2602 = vld [vmem:[%s1977 + $0xe2] sm:$0xff]
        %v2603 = vld [vmem:[%s1977 + $0xf2] sm:$0xff]
        %v2604 = vld [vmem:[%s1977 + $0xfa] sm:$0xff]
        %v2605 = vld [vmem:[%s1977 + $0x102] sm:$0xff]
        %v2606 = vld [vmem:[%s1977 + $0x10a] sm:$0xff]
        %v2607 = vld [vmem:[%s1977 + $0x11a] sm:$0xff]
        %v2608 = vld [vmem:[%s1977 + $0x122] sm:$0xff]
        %v2609 = vld [vmem:[%s1977 + $0x12a] sm:$0xff]
        %v2610 = vld [vmem:[%s1977 + $0x132] sm:$0xff]
        %v2611 = vpack.c.bf16 %v2580, %v2579
        %v2612 = vpack.c.bf16 %v2582, %v2581
        %v2613 = vpack.c.bf16 %v2584, %v2583
        %v2614 = vpack.c.bf16 %v2586, %v2585
        %v2615 = vpack.c.bf16 %v2588, %v2587
        %v2616 = vpack.c.bf16 %v2590, %v2589
        %v2617 = vpack.c.bf16 %v2592, %v2591
        %v2618 = vpack.c.bf16 %v2594, %v2593
        %v2619 = vpack.c.bf16 %v2596, %v2595
        %v2620 = vpack.c.bf16 %v2598, %v2597
        %v2621 = vpack.c.bf16 %v2600, %v2599
        %v2622 = vpack.c.bf16 %v2602, %v2601
        %v2623 = vpack.c.bf16 %v2604, %v2603
        %v2624 = vpack.c.bf16 %v2606, %v2605
        %v2625 = vpack.c.bf16 %v2608, %v2607
        %v2626 = vpack.c.bf16 %v2610, %v2609
        %v2627 = vld [vmem:[%s1 + $0xc] sm:$0x3]
        %v2629 = vsel %vm336, %v2611, 0
        %v2632 = vsel %vm336, %v2612, 0
        %v2635 = vsel %vm336, %v2613, 0
        %v2638 = vsel %vm336, %v2614, 0
        %v2641 = vsel %vm336, %v2615, 0
        %v2644 = vsel %vm336, %v2616, 0
        %v2647 = vsel %vm336, %v2617, 0
        %v2650 = vsel %vm336, %v2618, 0
        %v2653 = vsel %vm336, %v2619, 0
        %v2656 = vsel %vm336, %v2620, 0
        %v2659 = vsel %vm336, %v2621, 0
        %v2662 = vsel %vm336, %v2622, 0
        %v2665 = vsel %vm336, %v2623, 0
        %v2668 = vsel %vm336, %v2624, 0
        %v2671 = vsel %vm336, %v2625, 0
        %v2674 = vsel %vm336, %v2626, 0
        %v2677 = vand.u32 %v2627, %v388
        %2679 = vmatprep.subr.bf16.mxu0 0
        %2680 = vmatpush1.bf16.msra.mxu0 0
        %2681 = vmatprep.subr.bf16.mxu0 0
        %2682 = vmatpush1.bf16.msra.mxu0 0
        %2683 = vmatprep.subr.bf16.mxu0 0
        %2684 = vmatpush1.bf16.msra.mxu0 0
        %2685 = vmatprep.subr.bf16.mxu0 0
        %2686 = vmatpush1.bf16.msra.mxu0 0
        %2687 = vmatprep.subr.bf16.mxu0 0
        %2688 = vmatpush1.bf16.msra.mxu0 0
        %2689 = vmatprep.subr.bf16.mxu0 0
        %2690 = vmatpush1.bf16.msra.mxu0 0
        %2691 = vmatprep.subr.bf16.mxu0 0
        %2692 = vmatpush1.bf16.msra.mxu0 0
        %2693 = vmatprep.subr.bf16.mxu0 0
        %2694 = vmatpush1.bf16.msra.mxu0 %v2677
        %2695 = vmatprep.subr.bf16.mxu0 0
        %2696 = vmatpush2.bf16.msra.mxu0 0
        %2697 = vmatprep.subr.bf16.mxu0 0
        %2698 = vmatpush2.bf16.msra.mxu0 0
        %2699 = vmatprep.subr.bf16.mxu0 0
        %2700 = vmatpush2.bf16.msra.mxu0 0
        %2701 = vmatprep.subr.bf16.mxu0 0
        %2702 = vmatpush2.bf16.msra.mxu0 0
        %2703 = vmatprep.subr.bf16.mxu0 0
        %2704 = vmatpush2.bf16.msra.mxu0 0
        %2705 = vmatprep.subr.bf16.mxu0 0
        %2706 = vmatpush2.bf16.msra.mxu0 0
        %2707 = vmatprep.subr.bf16.mxu0 0
        %2708 = vmatpush2.bf16.msra.mxu0 0
        %2709 = vmatprep.subr.bf16.mxu0 0
        %2710 = vmatpush2.bf16.msra.mxu0 0
        %2711 = vmatprep.mubr.bf16.mxu0 0
        %2712 = vmatmul.mubr.bf16.gmra.mxu0 %v2629
        %v2713 = vpop.f32.mrf.mxu0
        %v2714 = vadd.f32 0.0, %v2713
        %v2715 = vpop.f32.mrf.mxu0
        %v2716 = vpop.f32.mrf.mxu0
        %v2717 = vadd.f32 0.0, %v2716
        %v2718 = vpop.f32.mrf.mxu0
        %2719 = vmatprep.mubr.bf16.mxu0 0
        %2720 = vmatmul.mubr.bf16.gmra.mxu0 %v2632
        %v2721 = vpop.f32.mrf.mxu0
        %v2722 = vadd.f32 0.0, %v2721
        %v2723 = vpop.f32.mrf.mxu0
        %v2724 = vpop.f32.mrf.mxu0
        %v2725 = vadd.f32 0.0, %v2724
        %v2726 = vpop.f32.mrf.mxu0
        %2727 = vmatprep.mubr.bf16.mxu0 0
        %2728 = vmatmul.mubr.bf16.gmra.mxu0 %v2635
        %v2729 = vpop.f32.mrf.mxu0
        %v2730 = vadd.f32 0.0, %v2729
        %v2731 = vpop.f32.mrf.mxu0
        %v2732 = vpop.f32.mrf.mxu0
        %v2733 = vadd.f32 0.0, %v2732
        %v2734 = vpop.f32.mrf.mxu0
        %2735 = vmatprep.mubr.bf16.mxu0 0
        %2736 = vmatmul.mubr.bf16.gmra.mxu0 %v2638
        %v2737 = vpop.f32.mrf.mxu0
        %v2738 = vadd.f32 0.0, %v2737
        %v2739 = vpop.f32.mrf.mxu0
        %v2740 = vpop.f32.mrf.mxu0
        %v2741 = vadd.f32 0.0, %v2740
        %v2742 = vpop.f32.mrf.mxu0
        %2743 = vmatprep.mubr.bf16.mxu0 0
        %2744 = vmatmul.mubr.bf16.gmra.mxu0 %v2641
        %v2745 = vpop.f32.mrf.mxu0
        %v2746 = vadd.f32 0.0, %v2745
        %v2747 = vpop.f32.mrf.mxu0
        %v2748 = vpop.f32.mrf.mxu0
        %v2749 = vadd.f32 0.0, %v2748
        %v2750 = vpop.f32.mrf.mxu0
        %2751 = vmatprep.mubr.bf16.mxu0 0
        %2752 = vmatmul.mubr.bf16.gmra.mxu0 %v2644
        %v2753 = vpop.f32.mrf.mxu0
        %v2754 = vadd.f32 0.0, %v2753
        %v2755 = vpop.f32.mrf.mxu0
        %v2756 = vpop.f32.mrf.mxu0
        %v2757 = vadd.f32 0.0, %v2756
        %v2758 = vpop.f32.mrf.mxu0
        %2759 = vmatprep.mubr.bf16.mxu0 0
        %2760 = vmatmul.mubr.bf16.gmra.mxu0 %v2647
        %v2761 = vpop.f32.mrf.mxu0
        %v2762 = vadd.f32 0.0, %v2761
        %v2763 = vpop.f32.mrf.mxu0
        %v2764 = vpop.f32.mrf.mxu0
        %v2765 = vadd.f32 0.0, %v2764
        %v2766 = vpop.f32.mrf.mxu0
        %2767 = vmatprep.mubr.bf16.mxu0 0
        %2768 = vmatmul.mubr.bf16.gmra.mxu0 %v2650
        %v2769 = vpop.f32.mrf.mxu0
        %v2770 = vadd.f32 0.0, %v2769
        %v2771 = vpop.f32.mrf.mxu0
        %v2772 = vpop.f32.mrf.mxu0
        %v2773 = vadd.f32 0.0, %v2772
        %v2774 = vpop.f32.mrf.mxu0
        %2775 = vmatprep.mubr.bf16.mxu0 0
        %2776 = vmatmul.mubr.bf16.gmra.mxu0 %v2653
        %v2777 = vpop.f32.mrf.mxu0
        %v2778 = vadd.f32 0.0, %v2777
        %v2779 = vpop.f32.mrf.mxu0
        %v2780 = vpop.f32.mrf.mxu0
        %v2781 = vadd.f32 0.0, %v2780
        %v2782 = vpop.f32.mrf.mxu0
        %2783 = vmatprep.mubr.bf16.mxu0 0
        %2784 = vmatmul.mubr.bf16.gmra.mxu0 %v2656
        %v2785 = vpop.f32.mrf.mxu0
        %v2786 = vadd.f32 0.0, %v2785
        %v2787 = vpop.f32.mrf.mxu0
        %v2788 = vpop.f32.mrf.mxu0
        %v2789 = vadd.f32 0.0, %v2788
        %v2790 = vpop.f32.mrf.mxu0
        %2791 = vmatprep.mubr.bf16.mxu0 0
        %2792 = vmatmul.mubr.bf16.gmra.mxu0 %v2659
        %v2793 = vpop.f32.mrf.mxu0
        %v2794 = vadd.f32 0.0, %v2793
        %v2795 = vpop.f32.mrf.mxu0
        %v2796 = vpop.f32.mrf.mxu0
        %v2797 = vadd.f32 0.0, %v2796
        %v2798 = vpop.f32.mrf.mxu0
        %2799 = vmatprep.mubr.bf16.mxu0 0
        %2800 = vmatmul.mubr.bf16.gmra.mxu0 %v2662
        %v2801 = vpop.f32.mrf.mxu0
        %v2802 = vadd.f32 0.0, %v2801
        %v2803 = vpop.f32.mrf.mxu0
        %v2804 = vpop.f32.mrf.mxu0
        %v2805 = vadd.f32 0.0, %v2804
        %v2806 = vpop.f32.mrf.mxu0
        %2807 = vmatprep.mubr.bf16.mxu0 0
        %2808 = vmatmul.mubr.bf16.gmra.mxu0 %v2665
        %v2809 = vpop.f32.mrf.mxu0
        %v2810 = vadd.f32 0.0, %v2809
        %v2811 = vpop.f32.mrf.mxu0
        %v2812 = vpop.f32.mrf.mxu0
        %v2813 = vadd.f32 0.0, %v2812
        %v2814 = vpop.f32.mrf.mxu0
        %2815 = vmatprep.mubr.bf16.mxu0 0
        %2816 = vmatmul.mubr.bf16.gmra.mxu0 %v2668
        %v2817 = vpop.f32.mrf.mxu0
        %v2818 = vadd.f32 0.0, %v2817
        %v2819 = vpop.f32.mrf.mxu0
        %v2820 = vpop.f32.mrf.mxu0
        %v2821 = vadd.f32 0.0, %v2820
        %v2822 = vpop.f32.mrf.mxu0
        %2823 = vmatprep.mubr.bf16.mxu0 0
        %2824 = vmatmul.mubr.bf16.gmra.mxu0 %v2671
        %v2825 = vpop.f32.mrf.mxu0
        %v2826 = vadd.f32 0.0, %v2825
        %v2827 = vpop.f32.mrf.mxu0
        %v2828 = vpop.f32.mrf.mxu0
        %v2829 = vadd.f32 0.0, %v2828
        %v2830 = vpop.f32.mrf.mxu0
        %2831 = vmatprep.mubr.bf16.mxu0 0
        %2832 = vmatmul.mubr.bf16.gmra.mxu0 %v2674
        %v2833 = vpop.f32.mrf.mxu0
        %v2834 = vadd.f32 0.0, %v2833
        %v2835 = vpop.f32.mrf.mxu0
        %v2836 = vpop.f32.mrf.mxu0
        %v2837 = vadd.f32 0.0, %v2836
        %v2838 = vpop.f32.mrf.mxu0
        %2839 = vdwg.mxu0
        %v2840 = vadd.f32 %v2547, %v2714
        %v2841 = vadd.f32 %v2548, %v2717
        %v2842 = vadd.f32 %v2549, %v2722
        %v2843 = vadd.f32 %v2550, %v2725
        %v2844 = vadd.f32 %v2551, %v2730
        %v2845 = vadd.f32 %v2552, %v2733
        %v2846 = vadd.f32 %v2553, %v2738
        %v2847 = vadd.f32 %v2554, %v2741
        %v2848 = vadd.f32 %v2555, %v2746
        %v2849 = vadd.f32 %v2556, %v2749
        %v2850 = vadd.f32 %v2557, %v2754
        %v2851 = vadd.f32 %v2558, %v2757
        %v2852 = vadd.f32 %v2559, %v2762
        %v2853 = vadd.f32 %v2560, %v2765
        %v2854 = vadd.f32 %v2561, %v2770
        %v2855 = vadd.f32 %v2562, %v2773
        %v2856 = vadd.f32 %v2563, %v2778
        %v2857 = vadd.f32 %v2564, %v2781
        %v2858 = vadd.f32 %v2565, %v2786
        %v2859 = vadd.f32 %v2566, %v2789
        %v2860 = vadd.f32 %v2567, %v2794
        %v2861 = vadd.f32 %v2568, %v2797
        %v2862 = vadd.f32 %v2569, %v2802
        %v2863 = vadd.f32 %v2570, %v2805
        %v2864 = vadd.f32 %v2571, %v2810
        %v2865 = vadd.f32 %v2572, %v2813
        %v2866 = vadd.f32 %v2573, %v2818
        %v2867 = vadd.f32 %v2574, %v2821
        %v2868 = vadd.f32 %v2575, %v2826
        %v2869 = vadd.f32 %v2576, %v2829
        %v2870 = vadd.f32 %v2577, %v2834
        %v2871 = vadd.f32 %v2578, %v2837
        %v2873 = vlaneseq
        %v2874 = vshrl.u32 %v2873, 7
        %v2875 = vsub.s32 0, %v2874
        %v2876 = vrot.slane %v224, %v2875
        %v2878 = vadd.f32 %v2840, %v2876
        %v2879 = vadd.f32 %v2841, %v2876
        %v2880 = vadd.f32 %v2842, %v2876
        %v2881 = vadd.f32 %v2843, %v2876
        %v2882 = vadd.f32 %v2844, %v2876
        %v2883 = vadd.f32 %v2845, %v2876
        %v2884 = vadd.f32 %v2846, %v2876
        %v2885 = vadd.f32 %v2847, %v2876
        %v2886 = vadd.f32 %v2848, %v2876
        %v2887 = vadd.f32 %v2849, %v2876
        %v2888 = vadd.f32 %v2850, %v2876
        %v2889 = vadd.f32 %v2851, %v2876
        %v2890 = vadd.f32 %v2852, %v2876
        %v2891 = vadd.f32 %v2853, %v2876
        %v2892 = vadd.f32 %v2854, %v2876
        %v2893 = vadd.f32 %v2855, %v2876
        %v2894 = vadd.f32 %v2856, %v2876
        %v2895 = vadd.f32 %v2857, %v2876
        %v2896 = vadd.f32 %v2858, %v2876
        %v2897 = vadd.f32 %v2859, %v2876
        %v2898 = vadd.f32 %v2860, %v2876
        %v2899 = vadd.f32 %v2861, %v2876
        %v2900 = vadd.f32 %v2862, %v2876
        %v2901 = vadd.f32 %v2863, %v2876
        %v2902 = vadd.f32 %v2864, %v2876
        %v2903 = vadd.f32 %v2865, %v2876
        %v2904 = vadd.f32 %v2866, %v2876
        %v2905 = vadd.f32 %v2867, %v2876
        %v2906 = vadd.f32 %v2868, %v2876
        %v2907 = vadd.f32 %v2869, %v2876
        %v2908 = vadd.f32 %v2870, %v2876
        %v2909 = vadd.f32 %v2871, %v2876
        %vm2910 = vcmask 523264
        %2911 = vst.msk [vmem:[%s208] sm:$0xff] %vm2910, %v2878
        %2912 = vst.msk [vmem:[%s208 + $0x8] sm:$0xff] %vm2910, %v2879
        %2913 = vst.msk [vmem:[%s208 + $0x10] sm:$0xff] %vm2910, %v2880
        %2914 = vst.msk [vmem:[%s208 + $0x18] sm:$0xff] %vm2910, %v2881
        %2915 = vst.msk [vmem:[%s208 + $0x20] sm:$0xff] %vm2910, %v2882
        %2916 = vst.msk [vmem:[%s208 + $0x28] sm:$0xff] %vm2910, %v2883
        %2917 = vst.msk [vmem:[%s208 + $0x30] sm:$0xff] %vm2910, %v2884
        %2918 = vst.msk [vmem:[%s208 + $0x38] sm:$0xff] %vm2910, %v2885
        %2919 = vst.msk [vmem:[%s208 + $0x40] sm:$0xff] %vm2910, %v2886
        %2920 = vst.msk [vmem:[%s208 + $0x48] sm:$0xff] %vm2910, %v2887
        %2921 = vst.msk [vmem:[%s208 + $0x50] sm:$0xff] %vm2910, %v2888
        %2922 = vst.msk [vmem:[%s208 + $0x58] sm:$0xff] %vm2910, %v2889
        %2923 = vst.msk [vmem:[%s208 + $0x60] sm:$0xff] %vm2910, %v2890
        %2924 = vst.msk [vmem:[%s208 + $0x68] sm:$0xff] %vm2910, %v2891
        %2925 = vst.msk [vmem:[%s208 + $0x70] sm:$0xff] %vm2910, %v2892
        %2926 = vst.msk [vmem:[%s208 + $0x78] sm:$0xff] %vm2910, %v2893
        %2927 = vst.msk [vmem:[%s208 + $0x80] sm:$0xff] %vm2910, %v2894
        %2928 = vst.msk [vmem:[%s208 + $0x88] sm:$0xff] %vm2910, %v2895
        %2929 = vst.msk [vmem:[%s208 + $0x90] sm:$0xff] %vm2910, %v2896
        %2930 = vst.msk [vmem:[%s208 + $0x98] sm:$0xff] %vm2910, %v2897
        %2931 = vst.msk [vmem:[%s208 + $0xa0] sm:$0xff] %vm2910, %v2898
        %2932 = vst.msk [vmem:[%s208 + $0xa8] sm:$0xff] %vm2910, %v2899
        %2933 = vst.msk [vmem:[%s208 + $0xb0] sm:$0xff] %vm2910, %v2900
        %2934 = vst.msk [vmem:[%s208 + $0xb8] sm:$0xff] %vm2910, %v2901
        %2935 = vst.msk [vmem:[%s208 + $0xc0] sm:$0xff] %vm2910, %v2902
        %2936 = vst.msk [vmem:[%s208 + $0xc8] sm:$0xff] %vm2910, %v2903
        %2937 = vst.msk [vmem:[%s208 + $0xd0] sm:$0xff] %vm2910, %v2904
        %2938 = vst.msk [vmem:[%s208 + $0xd8] sm:$0xff] %vm2910, %v2905
        %2939 = vst.msk [vmem:[%s208 + $0xe0] sm:$0xff] %vm2910, %v2906
        %2940 = vst.msk [vmem:[%s208 + $0xe8] sm:$0xff] %vm2910, %v2907
        %2941 = vst.msk [vmem:[%s208 + $0xf0] sm:$0xff] %vm2910, %v2908
        %2942 = vst.msk [vmem:[%s208 + $0xf8] sm:$0xff] %vm2910, %v2909
        %v2943 = vsel %vm2910, %v2878, 0.0
        %v2944 = vsel %vm2910, %v2879, 0.0
        %v2945 = vadd.f32 %v2943, %v2944
        %v2946 = vsel %vm2910, %v2880, 0.0
        %v2947 = vadd.f32 %v2945, %v2946
        %v2948 = vsel %vm2910, %v2881, 0.0
        %v2949 = vadd.f32 %v2947, %v2948
        %v2950 = vsel %vm2910, %v2882, 0.0
        %v2951 = vadd.f32 %v2949, %v2950
        %v2952 = vsel %vm2910, %v2883, 0.0
        %v2953 = vadd.f32 %v2951, %v2952
        %v2954 = vsel %vm2910, %v2884, 0.0
        %v2955 = vadd.f32 %v2953, %v2954
        %v2956 = vsel %vm2910, %v2885, 0.0
        %v2957 = vadd.f32 %v2955, %v2956
        %v2958 = vsel %vm2910, %v2886, 0.0
        %v2959 = vadd.f32 %v2957, %v2958
        %v2960 = vsel %vm2910, %v2887, 0.0
        %v2961 = vadd.f32 %v2959, %v2960
        %v2962 = vsel %vm2910, %v2888, 0.0
        %v2963 = vadd.f32 %v2961, %v2962
        %v2964 = vsel %vm2910, %v2889, 0.0
        %v2965 = vadd.f32 %v2963, %v2964
        %v2966 = vsel %vm2910, %v2890, 0.0
        %v2967 = vadd.f32 %v2965, %v2966
        %v2968 = vsel %vm2910, %v2891, 0.0
        %v2969 = vadd.f32 %v2967, %v2968
        %v2970 = vsel %vm2910, %v2892, 0.0
        %v2971 = vadd.f32 %v2969, %v2970
        %v2972 = vsel %vm2910, %v2893, 0.0
        %v2973 = vadd.f32 %v2971, %v2972
        %v2974 = vsel %vm2910, %v2894, 0.0
        %v2975 = vadd.f32 %v2973, %v2974
        %v2976 = vsel %vm2910, %v2895, 0.0
        %v2977 = vadd.f32 %v2975, %v2976
        %v2978 = vsel %vm2910, %v2896, 0.0
        %v2979 = vadd.f32 %v2977, %v2978
        %v2980 = vsel %vm2910, %v2897, 0.0
        %v2981 = vadd.f32 %v2979, %v2980
        %v2982 = vsel %vm2910, %v2898, 0.0
        %v2983 = vadd.f32 %v2981, %v2982
        %v2984 = vsel %vm2910, %v2899, 0.0
        %v2985 = vadd.f32 %v2983, %v2984
        %v2986 = vsel %vm2910, %v2900, 0.0
        %v2987 = vadd.f32 %v2985, %v2986
        %v2988 = vsel %vm2910, %v2901, 0.0
        %v2989 = vadd.f32 %v2987, %v2988
        %v2990 = vsel %vm2910, %v2902, 0.0
        %v2991 = vadd.f32 %v2989, %v2990
        %v2992 = vsel %vm2910, %v2903, 0.0
        %v2993 = vadd.f32 %v2991, %v2992
        %v2994 = vsel %vm2910, %v2904, 0.0
        %v2995 = vadd.f32 %v2993, %v2994
        %v2996 = vsel %vm2910, %v2905, 0.0
        %v2997 = vadd.f32 %v2995, %v2996
        %v2998 = vsel %vm2910, %v2906, 0.0
        %v2999 = vadd.f32 %v2997, %v2998
        %v3000 = vsel %vm2910, %v2907, 0.0
        %v3001 = vadd.f32 %v2999, %v3000
        %v3002 = vsel %vm2910, %v2908, 0.0
        %v3003 = vadd.f32 %v3001, %v3002
        %v3004 = vsel %vm2910, %v2909, 0.0
        %v3005 = vadd.f32 %v3003, %v3004
        %v3006 = vrot.slane %v3005, 4
        %v3007 = vadd.f32 %v3005, %v3006
        %v3008 = vrot.slane %v3007, 2
        %v3009 = vadd.f32 %v3007, %v3008
        %v3010 = vrot.slane %v3009, 1
        %v3011 = vadd.f32 %v3009, %v3010
        %v3012 = vmul.f32 %v2878, %v2878
        %v3013 = vmul.f32 %v2879, %v2879
        %v3014 = vmul.f32 %v2880, %v2880
        %v3015 = vmul.f32 %v2881, %v2881
        %v3016 = vmul.f32 %v2882, %v2882
        %v3017 = vmul.f32 %v2883, %v2883
        %v3018 = vmul.f32 %v2884, %v2884
        %v3019 = vmul.f32 %v2885, %v2885
        %v3020 = vmul.f32 %v2886, %v2886
        %v3021 = vmul.f32 %v2887, %v2887
        %v3022 = vmul.f32 %v2888, %v2888
        %v3023 = vmul.f32 %v2889, %v2889
        %v3024 = vmul.f32 %v2890, %v2890
        %v3025 = vmul.f32 %v2891, %v2891
        %v3026 = vmul.f32 %v2892, %v2892
        %v3027 = vmul.f32 %v2893, %v2893
        %v3028 = vmul.f32 %v2894, %v2894
        %v3029 = vmul.f32 %v2895, %v2895
        %v3030 = vmul.f32 %v2896, %v2896
        %v3031 = vmul.f32 %v2897, %v2897
        %v3032 = vmul.f32 %v2898, %v2898
        %v3033 = vmul.f32 %v2899, %v2899
        %v3034 = vmul.f32 %v2900, %v2900
        %v3035 = vmul.f32 %v2901, %v2901
        %v3036 = vmul.f32 %v2902, %v2902
        %v3037 = vmul.f32 %v2903, %v2903
        %v3038 = vmul.f32 %v2904, %v2904
        %v3039 = vmul.f32 %v2905, %v2905
        %v3040 = vmul.f32 %v2906, %v2906
        %v3041 = vmul.f32 %v2907, %v2907
        %v3042 = vmul.f32 %v2908, %v2908
        %v3043 = vmul.f32 %v2909, %v2909
        %v3044 = vsel %vm2910, %v3012, 0.0
        %v3045 = vsel %vm2910, %v3013, 0.0
        %v3046 = vadd.f32 %v3044, %v3045
        %v3047 = vsel %vm2910, %v3014, 0.0
        %v3048 = vadd.f32 %v3046, %v3047
        %v3049 = vsel %vm2910, %v3015, 0.0
        %v3050 = vadd.f32 %v3048, %v3049
        %v3051 = vsel %vm2910, %v3016, 0.0
        %v3052 = vadd.f32 %v3050, %v3051
        %v3053 = vsel %vm2910, %v3017, 0.0
        %v3054 = vadd.f32 %v3052, %v3053
        %v3055 = vsel %vm2910, %v3018, 0.0
        %v3056 = vadd.f32 %v3054, %v3055
        %v3057 = vsel %vm2910, %v3019, 0.0
        %v3058 = vadd.f32 %v3056, %v3057
        %v3059 = vsel %vm2910, %v3020, 0.0
        %v3060 = vadd.f32 %v3058, %v3059
        %v3061 = vsel %vm2910, %v3021, 0.0
        %v3062 = vadd.f32 %v3060, %v3061
        %v3063 = vsel %vm2910, %v3022, 0.0
        %v3064 = vadd.f32 %v3062, %v3063
        %v3065 = vsel %vm2910, %v3023, 0.0
        %v3066 = vadd.f32 %v3064, %v3065
        %v3067 = vsel %vm2910, %v3024, 0.0
        %v3068 = vadd.f32 %v3066, %v3067
        %v3069 = vsel %vm2910, %v3025, 0.0
        %v3070 = vadd.f32 %v3068, %v3069
        %v3071 = vsel %vm2910, %v3026, 0.0
        %v3072 = vadd.f32 %v3070, %v3071
        %v3073 = vsel %vm2910, %v3027, 0.0
        %v3074 = vadd.f32 %v3072, %v3073
        %v3075 = vsel %vm2910, %v3028, 0.0
        %v3076 = vadd.f32 %v3074, %v3075
        %v3077 = vsel %vm2910, %v3029, 0.0
        %v3078 = vadd.f32 %v3076, %v3077
        %v3079 = vsel %vm2910, %v3030, 0.0
        %v3080 = vadd.f32 %v3078, %v3079
        %v3081 = vsel %vm2910, %v3031, 0.0
        %v3082 = vadd.f32 %v3080, %v3081
        %v3083 = vsel %vm2910, %v3032, 0.0
        %v3084 = vadd.f32 %v3082, %v3083
        %v3085 = vsel %vm2910, %v3033, 0.0
        %v3086 = vadd.f32 %v3084, %v3085
        %v3087 = vsel %vm2910, %v3034, 0.0
        %v3088 = vadd.f32 %v3086, %v3087
        %v3089 = vsel %vm2910, %v3035, 0.0
        %v3090 = vadd.f32 %v3088, %v3089
        %v3091 = vsel %vm2910, %v3036, 0.0
        %v3092 = vadd.f32 %v3090, %v3091
        %v3093 = vsel %vm2910, %v3037, 0.0
        %v3094 = vadd.f32 %v3092, %v3093
        %v3095 = vsel %vm2910, %v3038, 0.0
        %v3096 = vadd.f32 %v3094, %v3095
        %v3097 = vsel %vm2910, %v3039, 0.0
        %v3098 = vadd.f32 %v3096, %v3097
        %v3099 = vsel %vm2910, %v3040, 0.0
        %v3100 = vadd.f32 %v3098, %v3099
        %v3101 = vsel %vm2910, %v3041, 0.0
        %v3102 = vadd.f32 %v3100, %v3101
        %v3103 = vsel %vm2910, %v3042, 0.0
        %v3104 = vadd.f32 %v3102, %v3103
        %v3105 = vsel %vm2910, %v3043, 0.0
        %v3106 = vadd.f32 %v3104, %v3105
        %v3107 = vrot.slane %v3106, 4
        %v3108 = vadd.f32 %v3106, %v3107
        %v3109 = vrot.slane %v3108, 2
        %v3110 = vadd.f32 %v3108, %v3109
        %v3111 = vrot.slane %v3110, 1
        %v3112 = vadd.f32 %v3110, %v3111
        %p3113 = scmp.eq.s32.totalorder %s27, 0
        // Predicated region
        $region33: #{tpu_custom_call.1} parent=31 // pred_check
          %p3114 = pneg %p3113
        $region34: #{tpu_custom_call.1} parent=31 // pred_check_branch
          %3116 = sbr.rel (%p3114) target = $region36
        $region35: #{tpu_custom_call.1} parent=31 // pred_region
          %vm3117 = vcmask 517120
          %3118 = vst.msk [vmem:[%s215] sm:$0x3] %vm3117, 0.0
        $region36: #{tpu_custom_call.1} parent=31 // pred_fallthru
          _
        %v3119 = vld [vmem:[%s215] sm:$0x3]
        %v3120 = vsel %vm385, %v3011, %v3112
        %v3121 = vadd.f32 %v3119, %v3120
        %vm3122 = vcmask 517120
        %3123 = vst.msk [vmem:[%s215] sm:$0x3] %vm3122, %v3121
        %s3124 = sand.u32 %s112, 1
        %s3125 = scalar_lea.sflag [#allocation3], %s3124
        %s3126 = sand.u32 %s112, 1
        %s3127 = smul.addr %s3126, 256
        %s3128 = scalar_lea.vmem [#allocation2], %s3127
        %s3129 = sand.u32 %s138, 1
        %s3130 = scalar_lea.sflag [#allocation5], %s3129
        %s3131 = sand.u32 %s138, 1
        %s3132 = smul.addr %s3131, 2
        %s3133 = scalar_lea.vmem [#allocation4], %s3132
        // Predicated region
        $region37: #{tpu_custom_call.1} parent=31 // pred_check
          %p3134 = pneg %p122
        $region38: #{tpu_custom_call.1} parent=31 // pred_check_branch
          %3136 = sbr.rel (%p3134) target = $region40
        $region39: #{tpu_custom_call.1} parent=31 // pred_region
          %s3137 = smul.u32 8, %s27
          %s3139 = ssub.s32 4096, 4096
          %3140 = vsyncadd %s3125, %s3139
          %s3141 = smul.addr %s3137, 4
          %s3142 = smul.addr %s26, 128
          %s3143 = sadd.s32 %s3141, %s3142
          %s3144 = smul.addr %s3143, 128
          %s3145 = scalar_lea.hbm %s3, %s3144
          %s3146 = sshll.u32 %s3128, 4
          %s3147 = int_to_ptr.vmem [resolvable:$true] %s3146
          %3152 = dma.vmem_to_hbm [thread:$0]  %s3147, 4096, %s3145, %s3125, 128, 128, 8
        $region40: #{tpu_custom_call.1} parent=31 // pred_fallthru
          _
        // Predicated region
        $region41: #{tpu_custom_call.1} parent=31 // pred_check
          %p3153 = pneg %p148
        $region42: #{tpu_custom_call.1} parent=31 // pred_check_branch
          %3155 = sbr.rel (%p3153) target = $region44
        $region43: #{tpu_custom_call.1} parent=31 // pred_region
          %s3157 = ssub.s32 32, 32
          %3158 = vsyncadd %s3130, %s3157
          %s3159 = smul.addr %s26, 32
          %s3160 = scalar_lea.hbm %s4, %s3159
          %s3162 = sshll.u32 %s3133, 4
          %s3163 = int_to_ptr.vmem [resolvable:$true] %s3162
          %3165 = dma.vmem_to_hbm [thread:$0]  %s3163, 32, %s3160, %s3130
        $region44: #{tpu_custom_call.1} parent=31 // pred_fallthru
          _
      $region32: #{tpu_custom_call.1} parent=5 // pred_fallthru
        _
      %p3166 = scmp.le.s32.totalorder 2, %s17
      // Predicated region
      $region45: #{tpu_custom_call.1} parent=5 // pred_check
        %p3167 = pneg %p3166
      $region46: #{tpu_custom_call.1} parent=5 // pred_check_branch
        %3169 = sbr.rel (%p3167) target = $region48
      $region47: #{tpu_custom_call.1} parent=5 // pred_region
        %s3170 = ssub.s32 %s17, 2
        // Predicated region
        $region49: #{tpu_custom_call.1} parent=47 // pred_check
          %p3171 = pneg %p128
        $region50: #{tpu_custom_call.1} parent=47 // pred_check_branch
          %3173 = sbr.rel (%p3171) target = $region52
        $region51: #{tpu_custom_call.1} parent=47 // pred_region
          %s3174 = sand.u32 %s113, 1
          %s3175 = scalar_lea.sflag [#allocation3], %s3174
          %s3176 = sand.u32 %s113, 1
          %s3177 = smul.addr %s3176, 256
          %s3178 = scalar_lea.vmem [#allocation2], %s3177
          %3179 = dma.done %s3175, 4096
        $region52: #{tpu_custom_call.1} parent=47 // pred_fallthru
          _
        // Predicated region
        $region53: #{tpu_custom_call.1} parent=47 // pred_check
          %p3180 = pneg %p154
        $region54: #{tpu_custom_call.1} parent=47 // pred_check_branch
          %3182 = sbr.rel (%p3180) target = $region56
        $region55: #{tpu_custom_call.1} parent=47 // pred_region
          %s3183 = sand.u32 %s139, 1
          %s3184 = scalar_lea.sflag [#allocation5], %s3183
          %s3185 = sand.u32 %s139, 1
          %s3186 = smul.addr %s3185, 2
          %s3187 = scalar_lea.vmem [#allocation4], %s3186
          %3188 = dma.done %s3184, 32
        $region56: #{tpu_custom_call.1} parent=47 // pred_fallthru
          _
      $region48: #{tpu_custom_call.1} parent=5 // pred_fallthru
        _
    $region6: #{tpu_custom_call.1} parent=1 // loop_footer
      %s21 = sadd.s32 1, %s17
    $region7: #{tpu_custom_call.1} parent=1 // loop_footer_branch
      %16 = sbr.rel target = $region3
    $region8: #{tpu_custom_call.1} parent=1 // loop_exit
      _
    %3189 = vsyncpa [#allocation3], 1
    %s3190 = scalar_lea.sflag [#allocation3], 1
    %3191 = vsyncpa %s3190, 1
    %3192 = vsyncpa [#allocation5], 1
    %s3193 = scalar_lea.sflag [#allocation5], 1
    %3194 = vsyncpa %s3193, 1

</llo_original>
